<compile_context>
chip_gen: v7x
topology: tpu7x:2x2x1
jax: 0.10.0
libtpu: 0.0.40
codegen_flags: <defaults>
</compile_context>

<pallas_src>
import jax
import jax.numpy as jnp
from jax.experimental import pallas as pl
from jax.experimental.pallas import tpu as pltpu  # noqa: F401  (kept for TPU-specific tuning hooks)

# ---------------- config (small, consistent with the module's forward) ----------------
VOCAB = 100
TYPE_VOCAB = 2
MAX_POS = 16
HIDDEN = 32          # stands in for hidden_size=768
NUM_HEADS = 4
HEAD_DIM = HIDDEN // NUM_HEADS
INTERMEDIATE = 64
NUM_LAYERS = 2
NUM_CLASSES = 7
CLS_PAD = 128        # lane-dense classifier output width (sliced to NUM_CLASSES in the wrapper)
SEQ = 8
BATCH = 2
LN_EPS = 1e-12
DR_RATE = 0.1        # dropout is identity at inference (eval mode)
# TODO(synk): training-mode nn.Dropout (stochastic masking via pltpu.prng_*) not implemented;
#             eval-mode identity is used, which matches inference semantics.


def _layer_norm(x, gamma, beta, eps=LN_EPS):
    mean = jnp.mean(x, axis=-1, keepdims=True)
    var = jnp.mean(jnp.square(x - mean), axis=-1, keepdims=True)
    return (x - mean) * jax.lax.rsqrt(var + eps) * gamma + beta


# ---------------- Pallas kernel: full fused forward (embeddings + encoder + pooler + classifier) ----------------
def bert_forward_kernel(tok_ref, seg_ref, vlen_ref,
                        tok_emb_ref, misc_ref,
                        wqkv_ref, bqkv_ref, wo_ref, lsmall_ref,
                        w1_ref, b1_ref, w2_ref,
                        wp_ref, wc_ref, cb_ref, out_ref):
    BS = tok_ref.shape[0]
    B = vlen_ref.shape[0]
    S = BS // B
    H, NH, HD = HIDDEN, NUM_HEADS, HEAD_DIM
    scale = 1.0 / (HD ** 0.5)
    bf16 = jnp.bfloat16

    misc = misc_ref[...]          # [2+S+3, H] packed f32: seg_emb(2) | pos(S) | emb_ln_g | emb_ln_b | pooler_b

    # ---- embeddings (in-kernel): one-hot token gather on the MXU + segment select + positions ----
    tok = tok_ref[...]                                                     # [BS, 1] int32
    tok_oh = jnp.where(
        jax.lax.broadcasted_iota(jnp.int32, (BS, VOCAB), 1) == tok, 1.0, 0.0)
    x = jnp.dot(tok_oh, tok_emb_ref[...], preferred_element_type=jnp.float32)   # [BS, H]
    segf = seg_ref[...].astype(jnp.float32)                                # [BS, 1] in {0, 1}
    x = x + misc[0:1, :] * (1.0 - segf) + misc[1:2, :] * segf
    x = x + jnp.tile(misc[2:2 + S, :], (B, 1))                             # positional embeddings
    x = _layer_norm(x, misc[2 + S:3 + S, :], misc[3 + S:4 + S, :])

    # ---- additive attention bias from valid_length, hoisted & materialized once ----
    cols = jax.lax.broadcasted_iota(jnp.int32, (B, S), 1)
    bias_b = jnp.where(cols < vlen_ref[...], 0.0, -10000.0).reshape(B, 1, S)
    bias_n = jnp.tile(jnp.broadcast_to(bias_b, (B, S, S)), (NH, 1, 1))     # [NH*B, S, S]

    def to_heads(t2d):   # [BS, H] -> [NH*B, S, HD]  (merged (head, batch) axis, n = h*B + b)
        t3d = t2d.reshape(B, S, H)
        return jnp.concatenate(
            [t3d[:, :, h * HD:(h + 1) * HD] for h in range(NH)], axis=0).astype(bf16)

    for l in range(NUM_LAYERS):        # static unroll; stacked weights stay resident in VMEM
        # TODO(synk): at real BERT sizes (H=768, 12 layers) on v7x (64 MiB VMEM) this layer loop
        #             should become a grid axis with per-layer weight BlockSpecs streamed HBM->VMEM.
        ls = lsmall_ref[l]             # [6, H] packed f32: bo, ln1_g, ln1_b, b2, ln2_g, ln2_b

        # fused QKV projection: one [BS, H] @ [H, 3H] bf16 MXU pass, f32 accumulation
        qkv = jnp.dot(x.astype(bf16), wqkv_ref[l],
                      preferred_element_type=jnp.float32) + bqkv_ref[l]
        q_n = to_heads(qkv[:, :H] * scale)                  # q pre-scaled once
        k_n = to_heads(qkv[:, H:2 * H])
        v_n = to_heads(qkv[:, 2 * H:])

        # attention: TWO batched dot_generals over all (head, batch) pairs
        sc = jnp.einsum('nqd,nkd->nqk', q_n, k_n,
                        preferred_element_type=jnp.float32) + bias_n       # [NH*B, S, S]
        sc = sc - jnp.max(sc, axis=-1, keepdims=True)
        p = jnp.exp(sc)
        p = p / jnp.sum(p, axis=-1, keepdims=True)          # exact divide (softmax parity)
        ctx = jnp.einsum('nqk,nkd->nqd', p.astype(bf16), v_n,
                         preferred_element_type=jnp.float32)               # [NH*B, S, HD]

        # output projection with the head merge folded in (no lane-wise concat):
        # Wo is stored per-head as [NH, HD, H]; sum the per-head partial products.
        ctx_h = ctx.reshape(NH, BS, HD).astype(bf16)
        attn_n = jnp.einsum('ntd,ndo->nto', ctx_h, wo_ref[l],
                            preferred_element_type=jnp.float32)            # [NH, BS, H]
        attn = ls[0:1, :]                                   # bo, broadcasts over BS rows
        for h in range(NH):
            attn = attn + attn_n[h]
        x = _layer_norm(x + attn, ls[1:2, :], ls[2:3, :])

        # FFN
        h1 = jnp.dot(x.astype(bf16), w1_ref[l],
                     preferred_element_type=jnp.float32) + b1_ref[l]
        # TODO(synk): PyTorch nn.GELU default is exact erf; tanh approximation used here.
        h1 = jax.nn.gelu(h1, approximate=True)
        ffn = jnp.dot(h1.astype(bf16), w2_ref[l],
                      preferred_element_type=jnp.float32) + ls[3:4, :]
        x = _layer_norm(x + ffn, ls[4:5, :], ls[5:6, :])

    # ---- pooler on [CLS] tokens (strided view, no per-row concat) + classifier ----
    cls_tok = x.reshape(B, S, H)[:, 0, :]                   # [B, H]
    pooled = jnp.tanh(jnp.dot(cls_tok.astype(bf16), wp_ref[...],
                              preferred_element_type=jnp.float32) + misc[4 + S:5 + S, :])
    # dropout (eval mode) == identity; classifier written lane-dense into a [B, CLS_PAD] block
    out_ref[...] = jnp.dot(pooled.astype(bf16), wc_ref[...],
                           preferred_element_type=jnp.float32) + cb_ref[...]


# ---------------- parameter init (deterministic, synthetic; per-layer weights stacked & packed) ----------------
def init_params(key):
    def nrm(k, shape, scale=0.02, dtype=jnp.float32):
        return (scale * jax.random.normal(k, shape)).astype(dtype)

    keys = iter(jax.random.split(key, 16))
    L, H, I, NH, HD = NUM_LAYERS, HIDDEN, INTERMEDIATE, NUM_HEADS, HEAD_DIM

    seg_emb = nrm(next(keys), (TYPE_VOCAB, H))
    pos_emb = nrm(next(keys), (MAX_POS, H))
    cls_w = nrm(next(keys), (H, NUM_CLASSES))
    # packed small f32 params: rows [seg(2) | pos(SEQ) | emb_ln_g | emb_ln_b | pooler_b]
    misc = jnp.concatenate([seg_emb, pos_emb[:SEQ],
                            jnp.ones((1, H), jnp.float32),
                            jnp.zeros((1, H), jnp.float32),
                            jnp.zeros((1, H), jnp.float32)], axis=0)
    # packed per-layer small f32 params: [L, 6, H] = bo, ln1_g, ln1_b, b2, ln2_g, ln2_b
    lsmall = jnp.stack([jnp.zeros((L, H)), jnp.ones((L, H)), jnp.zeros((L, H)),
                        jnp.zeros((L, H)), jnp.ones((L, H)), jnp.zeros((L, H))],
                       axis=1).astype(jnp.float32)

    params = {
        "tok_emb": nrm(next(keys), (VOCAB, H)),                           # f32: exact one-hot gather
        "misc": misc,
        "wqkv": nrm(next(keys), (L, H, 3 * H), dtype=jnp.bfloat16),       # fused Wq|Wk|Wv, bf16 MXU operand
        "bqkv": jnp.zeros((L, 1, 3 * H), jnp.float32),
        "wo": nrm(next(keys), (L, H, H)).reshape(L, NH, HD, H).astype(jnp.bfloat16),
        "lsmall": lsmall,
        "w1": nrm(next(keys), (L, H, I), dtype=jnp.bfloat16),
        "b1": jnp.zeros((L, 1, I), jnp.float32),
        "w2": nrm(next(keys), (L, I, H), dtype=jnp.bfloat16),
        "pooler_w": nrm(next(keys), (H, H), dtype=jnp.bfloat16),
        # classifier padded lane-dense to CLS_PAD; real logits occupy [:, :NUM_CLASSES]
        "cls_w_pad": jnp.zeros((H, CLS_PAD), jnp.bfloat16)
                        .at[:, :NUM_CLASSES].set(cls_w.astype(jnp.bfloat16)),
        "cls_b_pad": jnp.zeros((1, CLS_PAD), jnp.float32),
    }
    return params


# ---------------- forward (mirrors BERTClassifier.forward) ----------------
def bert_classifier_forward(token_ids, valid_length, segment_ids, params):
    B, S = token_ids.shape
    tok = token_ids.reshape(B * S, 1).astype(jnp.int32)
    seg = segment_ids.reshape(B * S, 1).astype(jnp.int32)
    vlen = valid_length.reshape(B, 1).astype(jnp.int32)

    logits_pad = pl.pallas_call(
        bert_forward_kernel,
        out_shape=jax.ShapeDtypeStruct((B, CLS_PAD), jnp.float32),
    )(tok, seg, vlen,
      params["tok_emb"], params["misc"],
      params["wqkv"], params["bqkv"], params["wo"], params["lsmall"],
      params["w1"], params["b1"], params["w2"],
      params["pooler_w"], params["cls_w_pad"], params["cls_b_pad"])
    return logits_pad[:, :NUM_CLASSES]                                     # [B, NUM_CLASSES]


if __name__ == "__main__":
    key = jax.random.PRNGKey(0)
    kp, kt, ks = jax.random.split(key, 3)
    params = init_params(kp)

    token_ids = jax.random.randint(kt, (BATCH, SEQ), 0, VOCAB, dtype=jnp.int32)
    valid_length = jnp.array([5, 8], dtype=jnp.int32)
    segment_ids = jax.random.randint(ks, (BATCH, SEQ), 0, TYPE_VOCAB, dtype=jnp.int32)

    fwd = jax.jit(bert_classifier_forward)
    logits = jax.block_until_ready(fwd(token_ids, valid_length, segment_ids, params))
    assert logits.shape == (BATCH, NUM_CLASSES) and logits.dtype == jnp.float32
    assert bool(jnp.all(jnp.isfinite(logits)))
    print("KERNEL_OK")
</pallas_src>

<mosaic_0001>
module attributes {stable_mosaic.version = 11 : i64} {
  func.func @bert_forward_kernel(%arg0: memref<16x1xi32, #tpu.memory_space<vmem>>, %arg1: memref<16x1xi32, #tpu.memory_space<vmem>>, %arg2: memref<2x1xi32, #tpu.memory_space<vmem>>, %arg3: memref<100x32xf32, #tpu.memory_space<vmem>>, %arg4: memref<13x32xf32, #tpu.memory_space<vmem>>, %arg5: memref<2x32x96xbf16, #tpu.memory_space<vmem>>, %arg6: memref<2x1x96xf32, #tpu.memory_space<vmem>>, %arg7: memref<2x4x8x32xbf16, #tpu.memory_space<vmem>>, %arg8: memref<2x6x32xf32, #tpu.memory_space<vmem>>, %arg9: memref<2x32x64xbf16, #tpu.memory_space<vmem>>, %arg10: memref<2x1x64xf32, #tpu.memory_space<vmem>>, %arg11: memref<2x64x32xbf16, #tpu.memory_space<vmem>>, %arg12: memref<32x32xbf16, #tpu.memory_space<vmem>>, %arg13: memref<32x128xbf16, #tpu.memory_space<vmem>>, %arg14: memref<1x128xf32, #tpu.memory_space<vmem>>, %arg15: memref<2x128xf32, #tpu.memory_space<vmem>>) attributes {dimension_semantics = [], scalar_prefetch = 0 : i64, scratch_operands = 0 : i64, tpu.core_type = #tpu.core_type<tc>} {
    %c0 = arith.constant 0 : index
    %c0_0 = arith.constant 0 : index
    %0 = vector.load %arg4[%c0, %c0_0] : memref<13x32xf32, #tpu.memory_space<vmem>>, vector<13x32xf32>
    %c0_1 = arith.constant 0 : index
    %c0_2 = arith.constant 0 : index
    %1 = vector.load %arg0[%c0_1, %c0_2] : memref<16x1xi32, #tpu.memory_space<vmem>>, vector<16x1xi32>
    %2 = tpu.iota {dimensions = array<i32: 1>} : vector<16x100xi32>
    %3 = vector.broadcast %1 : vector<16x1xi32> to vector<16x100xi32>
    %4 = arith.cmpi eq, %2, %3 : vector<16x100xi32>
    %cst = arith.constant 1.000000e+00 : f32
    %cst_3 = arith.constant 0.000000e+00 : f32
    %5 = vector.broadcast %cst : f32 to vector<16x100xf32>
    %6 = vector.broadcast %cst_3 : f32 to vector<16x100xf32>
    %7 = arith.select %4, %5, %6 : vector<16x100xi1>, vector<16x100xf32>
    %c0_4 = arith.constant 0 : index
    %c0_5 = arith.constant 0 : index
    %8 = vector.load %arg3[%c0_4, %c0_5] : memref<100x32xf32, #tpu.memory_space<vmem>>, vector<100x32xf32>
    %cst_6 = arith.constant dense<0.000000e+00> : vector<16x32xf32>
    %9 = tpu.matmul %7, %8, %cst_6 {dimension_numbers = #tpu.dot_dimension_numbers<[1], [0], [0], [1], [0, 0, 1, 1], [], []>} : vector<16x100xf32>, vector<100x32xf32>, vector<16x32xf32> -> vector<16x32xf32>
    %c0_7 = arith.constant 0 : index
    %c0_8 = arith.constant 0 : index
    %10 = vector.load %arg1[%c0_7, %c0_8] : memref<16x1xi32, #tpu.memory_space<vmem>>, vector<16x1xi32>
    %11 = arith.sitofp %10 : vector<16x1xi32> to vector<16x1xf32>
    %12 = vector.extract_strided_slice %0 {offsets = [0, 0], sizes = [1, 32], strides = [1, 1]} : vector<13x32xf32> to vector<1x32xf32>
    %cst_9 = arith.constant 1.000000e+00 : f32
    %13 = vector.broadcast %cst_9 : f32 to vector<16x1xf32>
    %14 = arith.subf %13, %11 : vector<16x1xf32>
    %15 = vector.broadcast %12 : vector<1x32xf32> to vector<16x32xf32>
    %16 = vector.broadcast %14 : vector<16x1xf32> to vector<16x32xf32>
    %17 = arith.mulf %15, %16 : vector<16x32xf32>
    %18 = arith.addf %9, %17 : vector<16x32xf32>
    %19 = vector.extract_strided_slice %0 {offsets = [1, 0], sizes = [1, 32], strides = [1, 1]} : vector<13x32xf32> to vector<1x32xf32>
    %20 = vector.broadcast %19 : vector<1x32xf32> to vector<16x32xf32>
    %21 = vector.broadcast %11 : vector<16x1xf32> to vector<16x32xf32>
    %22 = arith.mulf %20, %21 : vector<16x32xf32>
    %23 = arith.addf %18, %22 : vector<16x32xf32>
    %24 = vector.extract_strided_slice %0 {offsets = [2, 0], sizes = [8, 32], strides = [1, 1]} : vector<13x32xf32> to vector<8x32xf32>
    %25 = tpu.concatenate %24, %24 in 0 : vector<8x32xf32>, vector<8x32xf32> -> vector<16x32xf32>
    %26 = arith.addf %23, %25 : vector<16x32xf32>
    %27 = vector.extract_strided_slice %0 {offsets = [10, 0], sizes = [1, 32], strides = [1, 1]} : vector<13x32xf32> to vector<1x32xf32>
    %28 = vector.extract_strided_slice %0 {offsets = [11, 0], sizes = [1, 32], strides = [1, 1]} : vector<13x32xf32> to vector<1x32xf32>
    %cst_10 = arith.constant dense<0.000000e+00> : vector<16xf32>
    %29 = vector.multi_reduction <add>, %26, %cst_10 [1] : vector<16x32xf32> to vector<16xf32>
    %30 = vector.shape_cast %29 : vector<16xf32> to vector<16x1xf32>
    %cst_11 = arith.constant 3.200000e+01 : f32
    %31 = vector.broadcast %cst_11 : f32 to vector<16x1xf32>
    %32 = arith.divf %30, %31 : vector<16x1xf32>
    %33 = vector.broadcast %32 : vector<16x1xf32> to vector<16x32xf32>
    %34 = arith.subf %26, %33 : vector<16x32xf32>
    %35 = arith.mulf %34, %34 : vector<16x32xf32>
    %cst_12 = arith.constant dense<0.000000e+00> : vector<16xf32>
    %36 = vector.multi_reduction <add>, %35, %cst_12 [1] : vector<16x32xf32> to vector<16xf32>
    %37 = vector.shape_cast %36 : vector<16xf32> to vector<16x1xf32>
    %cst_13 = arith.constant 3.200000e+01 : f32
    %38 = vector.broadcast %cst_13 : f32 to vector<16x1xf32>
    %39 = arith.divf %37, %38 : vector<16x1xf32>
    %40 = vector.broadcast %32 : vector<16x1xf32> to vector<16x32xf32>
    %41 = arith.subf %26, %40 : vector<16x32xf32>
    %cst_14 = arith.constant 9.99999996E-13 : f32
    %42 = vector.broadcast %cst_14 : f32 to vector<16x1xf32>
    %43 = arith.addf %39, %42 : vector<16x1xf32>
    %44 = math.rsqrt %43 : vector<16x1xf32>
    %45 = vector.broadcast %44 : vector<16x1xf32> to vector<16x32xf32>
    %46 = arith.mulf %41, %45 : vector<16x32xf32>
    %47 = vector.broadcast %27 : vector<1x32xf32> to vector<16x32xf32>
    %48 = arith.mulf %46, %47 : vector<16x32xf32>
    %49 = vector.broadcast %28 : vector<1x32xf32> to vector<16x32xf32>
    %50 = arith.addf %48, %49 : vector<16x32xf32>
    %51 = tpu.iota {dimensions = array<i32: 1>} : vector<2x8xi32>
    %c0_15 = arith.constant 0 : index
    %c0_16 = arith.constant 0 : index
    %52 = vector.load %arg2[%c0_15, %c0_16] : memref<2x1xi32, #tpu.memory_space<vmem>>, vector<2x1xi32>
    %53 = vector.broadcast %52 : vector<2x1xi32> to vector<2x8xi32>
    %54 = arith.cmpi slt, %51, %53 : vector<2x8xi32>
    %cst_17 = arith.constant 0.000000e+00 : f32
    %cst_18 = arith.constant -1.000000e+04 : f32
    %55 = vector.broadcast %cst_17 : f32 to vector<2x8xf32>
    %56 = vector.broadcast %cst_18 : f32 to vector<2x8xf32>
    %57 = arith.select %54, %55, %56 : vector<2x8xi1>, vector<2x8xf32>
    %58 = vector.shape_cast %57 : vector<2x8xf32> to vector<2x1x8xf32>
    %59 = vector.shape_cast %58 : vector<2x1x8xf32> to vector<2x1x8xf32>
    %60 = vector.broadcast %59 : vector<2x1x8xf32> to vector<2x8x8xf32>
    %61 = tpu.concatenate %60, %60, %60, %60 in 0 : vector<2x8x8xf32>, vector<2x8x8xf32>, vector<2x8x8xf32>, vector<2x8x8xf32> -> vector<8x8x8xf32>
    %c0_19 = arith.constant 0 : index
    %c0_20 = arith.constant 0 : index
    %c0_21 = arith.constant 0 : index
    %62 = vector.load %arg8[%c0_19, %c0_20, %c0_21] : memref<2x6x32xf32, #tpu.memory_space<vmem>>, vector<1x6x32xf32>
    %63 = vector.shape_cast %62 : vector<1x6x32xf32> to vector<6x32xf32>
    %64 = arith.truncf %50 : vector<16x32xf32> to vector<16x32xbf16>
    %c0_22 = arith.constant 0 : index
    %c0_23 = arith.constant 0 : index
    %c0_24 = arith.constant 0 : index
    %65 = vector.load %arg5[%c0_22, %c0_23, %c0_24] : memref<2x32x96xbf16, #tpu.memory_space<vmem>>, vector<1x32x96xbf16>
    %66 = vector.shape_cast %65 : vector<1x32x96xbf16> to vector<32x96xbf16>
    %cst_25 = arith.constant dense<0.000000e+00> : vector<16x96xf32>
    %67 = tpu.matmul %64, %66, %cst_25 {dimension_numbers = #tpu.dot_dimension_numbers<[1], [0], [0], [1], [0, 0, 1, 1], [], []>} : vector<16x32xbf16>, vector<32x96xbf16>, vector<16x96xf32> -> vector<16x96xf32>
    %c0_26 = arith.constant 0 : index
    %c0_27 = arith.constant 0 : index
    %c0_28 = arith.constant 0 : index
    %68 = vector.load %arg6[%c0_26, %c0_27, %c0_28] : memref<2x1x96xf32, #tpu.memory_space<vmem>>, vector<1x1x96xf32>
    %69 = vector.shape_cast %68 : vector<1x1x96xf32> to vector<1x96xf32>
    %70 = vector.broadcast %69 : vector<1x96xf32> to vector<16x96xf32>
    %71 = arith.addf %67, %70 : vector<16x96xf32>
    %72 = vector.extract_strided_slice %71 {offsets = [0, 0], sizes = [16, 32], strides = [1, 1]} : vector<16x96xf32> to vector<16x32xf32>
    %cst_29 = arith.constant 0.353553385 : f32
    %73 = vector.broadcast %cst_29 : f32 to vector<16x32xf32>
    %74 = arith.mulf %72, %73 : vector<16x32xf32>
    %75 = vector.shape_cast %74 : vector<16x32xf32> to vector<2x8x32xf32>
    %76 = vector.extract_strided_slice %75 {offsets = [0, 0, 0], sizes = [2, 8, 8], strides = [1, 1, 1]} : vector<2x8x32xf32> to vector<2x8x8xf32>
    %77 = vector.extract_strided_slice %75 {offsets = [0, 0, 8], sizes = [2, 8, 8], strides = [1, 1, 1]} : vector<2x8x32xf32> to vector<2x8x8xf32>
    %78 = vector.extract_strided_slice %75 {offsets = [0, 0, 16], sizes = [2, 8, 8], strides = [1, 1, 1]} : vector<2x8x32xf32> to vector<2x8x8xf32>
    %79 = vector.extract_strided_slice %75 {offsets = [0, 0, 24], sizes = [2, 8, 8], strides = [1, 1, 1]} : vector<2x8x32xf32> to vector<2x8x8xf32>
    %80 = tpu.concatenate %76, %77, %78, %79 in 0 : vector<2x8x8xf32>, vector<2x8x8xf32>, vector<2x8x8xf32>, vector<2x8x8xf32> -> vector<8x8x8xf32>
    %81 = arith.truncf %80 : vector<8x8x8xf32> to vector<8x8x8xbf16>
    %82 = vector.extract_strided_slice %71 {offsets = [0, 32], sizes = [16, 32], strides = [1, 1]} : vector<16x96xf32> to vector<16x32xf32>
    %83 = vector.shape_cast %82 : vector<16x32xf32> to vector<2x8x32xf32>
    %84 = vector.extract_strided_slice %83 {offsets = [0, 0, 0], sizes = [2, 8, 8], strides = [1, 1, 1]} : vector<2x8x32xf32> to vector<2x8x8xf32>
    %85 = vector.extract_strided_slice %83 {offsets = [0, 0, 8], sizes = [2, 8, 8], strides = [1, 1, 1]} : vector<2x8x32xf32> to vector<2x8x8xf32>
    %86 = vector.extract_strided_slice %83 {offsets = [0, 0, 16], sizes = [2, 8, 8], strides = [1, 1, 1]} : vector<2x8x32xf32> to vector<2x8x8xf32>
    %87 = vector.extract_strided_slice %83 {offsets = [0, 0, 24], sizes = [2, 8, 8], strides = [1, 1, 1]} : vector<2x8x32xf32> to vector<2x8x8xf32>
    %88 = tpu.concatenate %84, %85, %86, %87 in 0 : vector<2x8x8xf32>, vector<2x8x8xf32>, vector<2x8x8xf32>, vector<2x8x8xf32> -> vector<8x8x8xf32>
    %89 = arith.truncf %88 : vector<8x8x8xf32> to vector<8x8x8xbf16>
    %90 = vector.extract_strided_slice %71 {offsets = [0, 64], sizes = [16, 32], strides = [1, 1]} : vector<16x96xf32> to vector<16x32xf32>
    %91 = vector.shape_cast %90 : vector<16x32xf32> to vector<2x8x32xf32>
    %92 = vector.extract_strided_slice %91 {offsets = [0, 0, 0], sizes = [2, 8, 8], strides = [1, 1, 1]} : vector<2x8x32xf32> to vector<2x8x8xf32>
    %93 = vector.extract_strided_slice %91 {offsets = [0, 0, 8], sizes = [2, 8, 8], strides = [1, 1, 1]} : vector<2x8x32xf32> to vector<2x8x8xf32>
    %94 = vector.extract_strided_slice %91 {offsets = [0, 0, 16], sizes = [2, 8, 8], strides = [1, 1, 1]} : vector<2x8x32xf32> to vector<2x8x8xf32>
    %95 = vector.extract_strided_slice %91 {offsets = [0, 0, 24], sizes = [2, 8, 8], strides = [1, 1, 1]} : vector<2x8x32xf32> to vector<2x8x8xf32>
    %96 = tpu.concatenate %92, %93, %94, %95 in 0 : vector<2x8x8xf32>, vector<2x8x8xf32>, vector<2x8x8xf32>, vector<2x8x8xf32> -> vector<8x8x8xf32>
    %97 = arith.truncf %96 : vector<8x8x8xf32> to vector<8x8x8xbf16>
    "tpu.trace_start"() <{level = 10 : i32, message = "nqd,nkd->nqk"}> : () -> ()
    %cst_30 = arith.constant dense<0.000000e+00> : vector<8x8x8xf32>
    %98 = tpu.matmul %81, %89, %cst_30 {dimension_numbers = #tpu.dot_dimension_numbers<[2], [2], [1], [1], [0, 0, 0, 1, 1, 1], [0], [0]>} : vector<8x8x8xbf16>, vector<8x8x8xbf16>, vector<8x8x8xf32> -> vector<8x8x8xf32>
    "tpu.trace_stop"() : () -> ()
    %99 = arith.addf %98, %61 : vector<8x8x8xf32>
    %cst_31 = arith.constant dense<0xFF800000> : vector<8x8xf32>
    %100 = vector.multi_reduction <maximumf>, %99, %cst_31 [2] : vector<8x8x8xf32> to vector<8x8xf32>
    %101 = vector.shape_cast %100 : vector<8x8xf32> to vector<8x8x1xf32>
    %102 = vector.broadcast %101 : vector<8x8x1xf32> to vector<8x8x8xf32>
    %103 = arith.subf %99, %102 : vector<8x8x8xf32>
    %104 = math.exp %103 : vector<8x8x8xf32>
    %cst_32 = arith.constant dense<0.000000e+00> : vector<8x8xf32>
    %105 = vector.multi_reduction <add>, %104, %cst_32 [2] : vector<8x8x8xf32> to vector<8x8xf32>
    %106 = vector.shape_cast %105 : vector<8x8xf32> to vector<8x8x1xf32>
    %107 = vector.broadcast %106 : vector<8x8x1xf32> to vector<8x8x8xf32>
    %108 = arith.divf %104, %107 : vector<8x8x8xf32>
    %109 = arith.truncf %108 : vector<8x8x8xf32> to vector<8x8x8xbf16>
    "tpu.trace_start"() <{level = 10 : i32, message = "nqk,nkd->nqd"}> : () -> ()
    %cst_33 = arith.constant dense<0.000000e+00> : vector<8x8x8xf32>
    %110 = tpu.matmul %109, %97, %cst_33 {dimension_numbers = #tpu.dot_dimension_numbers<[2], [1], [1], [2], [0, 0, 0, 1, 1, 2], [0], [0]>} : vector<8x8x8xbf16>, vector<8x8x8xbf16>, vector<8x8x8xf32> -> vector<8x8x8xf32>
    "tpu.trace_stop"() : () -> ()
    %111 = vector.shape_cast %110 : vector<8x8x8xf32> to vector<4x16x8xf32>
    %112 = arith.truncf %111 : vector<4x16x8xf32> to vector<4x16x8xbf16>
    %c0_34 = arith.constant 0 : index
    %c0_35 = arith.constant 0 : index
    %c0_36 = arith.constant 0 : index
    %c0_37 = arith.constant 0 : index
    %113 = vector.load %arg7[%c0_34, %c0_35, %c0_36, %c0_37] : memref<2x4x8x32xbf16, #tpu.memory_space<vmem>>, vector<1x4x8x32xbf16>
    %114 = vector.shape_cast %113 : vector<1x4x8x32xbf16> to vector<4x8x32xbf16>
    "tpu.trace_start"() <{level = 10 : i32, message = "ntd,ndo->nto"}> : () -> ()
    %cst_38 = arith.constant dense<0.000000e+00> : vector<4x16x32xf32>
    %115 = tpu.matmul %112, %114, %cst_38 {dimension_numbers = #tpu.dot_dimension_numbers<[2], [1], [1], [2], [0, 0, 0, 1, 1, 2], [0], [0]>} : vector<4x16x8xbf16>, vector<4x8x32xbf16>, vector<4x16x32xf32> -> vector<4x16x32xf32>
    "tpu.trace_stop"() : () -> ()
    %116 = vector.extract_strided_slice %63 {offsets = [0, 0], sizes = [1, 32], strides = [1, 1]} : vector<6x32xf32> to vector<1x32xf32>
    %117 = vector.extract_strided_slice %115 {offsets = [0, 0, 0], sizes = [1, 16, 32], strides = [1, 1, 1]} : vector<4x16x32xf32> to vector<1x16x32xf32>
    %118 = vector.shape_cast %117 : vector<1x16x32xf32> to vector<16x32xf32>
    %119 = vector.broadcast %116 : vector<1x32xf32> to vector<16x32xf32>
    %120 = arith.addf %119, %118 : vector<16x32xf32>
    %121 = vector.extract_strided_slice %115 {offsets = [1, 0, 0], sizes = [1, 16, 32], strides = [1, 1, 1]} : vector<4x16x32xf32> to vector<1x16x32xf32>
    %122 = vector.shape_cast %121 : vector<1x16x32xf32> to vector<16x32xf32>
    %123 = arith.addf %120, %122 : vector<16x32xf32>
    %124 = vector.extract_strided_slice %115 {offsets = [2, 0, 0], sizes = [1, 16, 32], strides = [1, 1, 1]} : vector<4x16x32xf32> to vector<1x16x32xf32>
    %125 = vector.shape_cast %124 : vector<1x16x32xf32> to vector<16x32xf32>
    %126 = arith.addf %123, %125 : vector<16x32xf32>
    %127 = vector.extract_strided_slice %115 {offsets = [3, 0, 0], sizes = [1, 16, 32], strides = [1, 1, 1]} : vector<4x16x32xf32> to vector<1x16x32xf32>
    %128 = vector.shape_cast %127 : vector<1x16x32xf32> to vector<16x32xf32>
    %129 = arith.addf %126, %128 : vector<16x32xf32>
    %130 = arith.addf %50, %129 : vector<16x32xf32>
    %131 = vector.extract_strided_slice %63 {offsets = [1, 0], sizes = [1, 32], strides = [1, 1]} : vector<6x32xf32> to vector<1x32xf32>
    %132 = vector.extract_strided_slice %63 {offsets = [2, 0], sizes = [1, 32], strides = [1, 1]} : vector<6x32xf32> to vector<1x32xf32>
    %cst_39 = arith.constant dense<0.000000e+00> : vector<16xf32>
    %133 = vector.multi_reduction <add>, %130, %cst_39 [1] : vector<16x32xf32> to vector<16xf32>
    %134 = vector.shape_cast %133 : vector<16xf32> to vector<16x1xf32>
    %cst_40 = arith.constant 3.200000e+01 : f32
    %135 = vector.broadcast %cst_40 : f32 to vector<16x1xf32>
    %136 = arith.divf %134, %135 : vector<16x1xf32>
    %137 = vector.broadcast %136 : vector<16x1xf32> to vector<16x32xf32>
    %138 = arith.subf %130, %137 : vector<16x32xf32>
    %139 = arith.mulf %138, %138 : vector<16x32xf32>
    %cst_41 = arith.constant dense<0.000000e+00> : vector<16xf32>
    %140 = vector.multi_reduction <add>, %139, %cst_41 [1] : vector<16x32xf32> to vector<16xf32>
    %141 = vector.shape_cast %140 : vector<16xf32> to vector<16x1xf32>
    %cst_42 = arith.constant 3.200000e+01 : f32
    %142 = vector.broadcast %cst_42 : f32 to vector<16x1xf32>
    %143 = arith.divf %141, %142 : vector<16x1xf32>
    %144 = vector.broadcast %136 : vector<16x1xf32> to vector<16x32xf32>
    %145 = arith.subf %130, %144 : vector<16x32xf32>
    %cst_43 = arith.constant 9.99999996E-13 : f32
    %146 = vector.broadcast %cst_43 : f32 to vector<16x1xf32>
    %147 = arith.addf %143, %146 : vector<16x1xf32>
    %148 = math.rsqrt %147 : vector<16x1xf32>
    %149 = vector.broadcast %148 : vector<16x1xf32> to vector<16x32xf32>
    %150 = arith.mulf %145, %149 : vector<16x32xf32>
    %151 = vector.broadcast %131 : vector<1x32xf32> to vector<16x32xf32>
    %152 = arith.mulf %150, %151 : vector<16x32xf32>
    %153 = vector.broadcast %132 : vector<1x32xf32> to vector<16x32xf32>
    %154 = arith.addf %152, %153 : vector<16x32xf32>
    %155 = arith.truncf %154 : vector<16x32xf32> to vector<16x32xbf16>
    %c0_44 = arith.constant 0 : index
    %c0_45 = arith.constant 0 : index
    %c0_46 = arith.constant 0 : index
    %156 = vector.load %arg9[%c0_44, %c0_45, %c0_46] : memref<2x32x64xbf16, #tpu.memory_space<vmem>>, vector<1x32x64xbf16>
    %157 = vector.shape_cast %156 : vector<1x32x64xbf16> to vector<32x64xbf16>
    %cst_47 = arith.constant dense<0.000000e+00> : vector<16x64xf32>
    %158 = tpu.matmul %155, %157, %cst_47 {dimension_numbers = #tpu.dot_dimension_numbers<[1], [0], [0], [1], [0, 0, 1, 1], [], []>} : vector<16x32xbf16>, vector<32x64xbf16>, vector<16x64xf32> -> vector<16x64xf32>
    %c0_48 = arith.constant 0 : index
    %c0_49 = arith.constant 0 : index
    %c0_50 = arith.constant 0 : index
    %159 = vector.load %arg10[%c0_48, %c0_49, %c0_50] : memref<2x1x64xf32, #tpu.memory_space<vmem>>, vector<1x1x64xf32>
    %160 = vector.shape_cast %159 : vector<1x1x64xf32> to vector<1x64xf32>
    %161 = vector.broadcast %160 : vector<1x64xf32> to vector<16x64xf32>
    %162 = arith.addf %158, %161 : vector<16x64xf32>
    %163 = arith.mulf %162, %162 : vector<16x64xf32>
    %164 = arith.mulf %162, %163 : vector<16x64xf32>
    %cst_51 = arith.constant 4.471500e-02 : f32
    %165 = vector.broadcast %cst_51 : f32 to vector<16x64xf32>
    %166 = arith.mulf %165, %164 : vector<16x64xf32>
    %167 = arith.addf %162, %166 : vector<16x64xf32>
    %cst_52 = arith.constant 0.797884583 : f32
    %168 = vector.broadcast %cst_52 : f32 to vector<16x64xf32>
    %169 = arith.mulf %168, %167 : vector<16x64xf32>
    %170 = math.tanh %169 : vector<16x64xf32>
    %cst_53 = arith.constant 1.000000e+00 : f32
    %171 = vector.broadcast %cst_53 : f32 to vector<16x64xf32>
    %172 = arith.addf %171, %170 : vector<16x64xf32>
    %cst_54 = arith.constant 5.000000e-01 : f32
    %173 = vector.broadcast %cst_54 : f32 to vector<16x64xf32>
    %174 = arith.mulf %173, %172 : vector<16x64xf32>
    %175 = arith.mulf %162, %174 : vector<16x64xf32>
    %176 = arith.truncf %175 : vector<16x64xf32> to vector<16x64xbf16>
    %c0_55 = arith.constant 0 : index
    %c0_56 = arith.constant 0 : index
    %c0_57 = arith.constant 0 : index
    %177 = vector.load %arg11[%c0_55, %c0_56, %c0_57] : memref<2x64x32xbf16, #tpu.memory_space<vmem>>, vector<1x64x32xbf16>
    %178 = vector.shape_cast %177 : vector<1x64x32xbf16> to vector<64x32xbf16>
    %cst_58 = arith.constant dense<0.000000e+00> : vector<16x32xf32>
    %179 = tpu.matmul %176, %178, %cst_58 {dimension_numbers = #tpu.dot_dimension_numbers<[1], [0], [0], [1], [0, 0, 1, 1], [], []>} : vector<16x64xbf16>, vector<64x32xbf16>, vector<16x32xf32> -> vector<16x32xf32>
    %180 = vector.extract_strided_slice %63 {offsets = [3, 0], sizes = [1, 32], strides = [1, 1]} : vector<6x32xf32> to vector<1x32xf32>
    %181 = vector.broadcast %180 : vector<1x32xf32> to vector<16x32xf32>
    %182 = arith.addf %179, %181 : vector<16x32xf32>
    %183 = arith.addf %154, %182 : vector<16x32xf32>
    %184 = vector.extract_strided_slice %63 {offsets = [4, 0], sizes = [1, 32], strides = [1, 1]} : vector<6x32xf32> to vector<1x32xf32>
    %185 = vector.extract_strided_slice %63 {offsets = [5, 0], sizes = [1, 32], strides = [1, 1]} : vector<6x32xf32> to vector<1x32xf32>
    %cst_59 = arith.constant dense<0.000000e+00> : vector<16xf32>
    %186 = vector.multi_reduction <add>, %183, %cst_59 [1] : vector<16x32xf32> to vector<16xf32>
    %187 = vector.shape_cast %186 : vector<16xf32> to vector<16x1xf32>
    %cst_60 = arith.constant 3.200000e+01 : f32
    %188 = vector.broadcast %cst_60 : f32 to vector<16x1xf32>
    %189 = arith.divf %187, %188 : vector<16x1xf32>
    %190 = vector.broadcast %189 : vector<16x1xf32> to vector<16x32xf32>
    %191 = arith.subf %183, %190 : vector<16x32xf32>
    %192 = arith.mulf %191, %191 : vector<16x32xf32>
    %cst_61 = arith.constant dense<0.000000e+00> : vector<16xf32>
    %193 = vector.multi_reduction <add>, %192, %cst_61 [1] : vector<16x32xf32> to vector<16xf32>
    %194 = vector.shape_cast %193 : vector<16xf32> to vector<16x1xf32>
    %cst_62 = arith.constant 3.200000e+01 : f32
    %195 = vector.broadcast %cst_62 : f32 to vector<16x1xf32>
    %196 = arith.divf %194, %195 : vector<16x1xf32>
    %197 = vector.broadcast %189 : vector<16x1xf32> to vector<16x32xf32>
    %198 = arith.subf %183, %197 : vector<16x32xf32>
    %cst_63 = arith.constant 9.99999996E-13 : f32
    %199 = vector.broadcast %cst_63 : f32 to vector<16x1xf32>
    %200 = arith.addf %196, %199 : vector<16x1xf32>
    %201 = math.rsqrt %200 : vector<16x1xf32>
    %202 = vector.broadcast %201 : vector<16x1xf32> to vector<16x32xf32>
    %203 = arith.mulf %198, %202 : vector<16x32xf32>
    %204 = vector.broadcast %184 : vector<1x32xf32> to vector<16x32xf32>
    %205 = arith.mulf %203, %204 : vector<16x32xf32>
    %206 = vector.broadcast %185 : vector<1x32xf32> to vector<16x32xf32>
    %207 = arith.addf %205, %206 : vector<16x32xf32>
    %c1 = arith.constant 1 : index
    %c0_64 = arith.constant 0 : index
    %c0_65 = arith.constant 0 : index
    %208 = vector.load %arg8[%c1, %c0_64, %c0_65] : memref<2x6x32xf32, #tpu.memory_space<vmem>>, vector<1x6x32xf32>
    %209 = vector.shape_cast %208 : vector<1x6x32xf32> to vector<6x32xf32>
    %210 = arith.truncf %207 : vector<16x32xf32> to vector<16x32xbf16>
    %c1_66 = arith.constant 1 : index
    %c0_67 = arith.constant 0 : index
    %c0_68 = arith.constant 0 : index
    %211 = vector.load %arg5[%c1_66, %c0_67, %c0_68] : memref<2x32x96xbf16, #tpu.memory_space<vmem>>, vector<1x32x96xbf16>
    %212 = vector.shape_cast %211 : vector<1x32x96xbf16> to vector<32x96xbf16>
    %cst_69 = arith.constant dense<0.000000e+00> : vector<16x96xf32>
    %213 = tpu.matmul %210, %212, %cst_69 {dimension_numbers = #tpu.dot_dimension_numbers<[1], [0], [0], [1], [0, 0, 1, 1], [], []>} : vector<16x32xbf16>, vector<32x96xbf16>, vector<16x96xf32> -> vector<16x96xf32>
    %c1_70 = arith.constant 1 : index
    %c0_71 = arith.constant 0 : index
    %c0_72 = arith.constant 0 : index
    %214 = vector.load %arg6[%c1_70, %c0_71, %c0_72] : memref<2x1x96xf32, #tpu.memory_space<vmem>>, vector<1x1x96xf32>
    %215 = vector.shape_cast %214 : vector<1x1x96xf32> to vector<1x96xf32>
    %216 = vector.broadcast %215 : vector<1x96xf32> to vector<16x96xf32>
    %217 = arith.addf %213, %216 : vector<16x96xf32>
    %218 = vector.extract_strided_slice %217 {offsets = [0, 0], sizes = [16, 32], strides = [1, 1]} : vector<16x96xf32> to vector<16x32xf32>
    %cst_73 = arith.constant 0.353553385 : f32
    %219 = vector.broadcast %cst_73 : f32 to vector<16x32xf32>
    %220 = arith.mulf %218, %219 : vector<16x32xf32>
    %221 = vector.shape_cast %220 : vector<16x32xf32> to vector<2x8x32xf32>
    %222 = vector.extract_strided_slice %221 {offsets = [0, 0, 0], sizes = [2, 8, 8], strides = [1, 1, 1]} : vector<2x8x32xf32> to vector<2x8x8xf32>
    %223 = vector.extract_strided_slice %221 {offsets = [0, 0, 8], sizes = [2, 8, 8], strides = [1, 1, 1]} : vector<2x8x32xf32> to vector<2x8x8xf32>
    %224 = vector.extract_strided_slice %221 {offsets = [0, 0, 16], sizes = [2, 8, 8], strides = [1, 1, 1]} : vector<2x8x32xf32> to vector<2x8x8xf32>
    %225 = vector.extract_strided_slice %221 {offsets = [0, 0, 24], sizes = [2, 8, 8], strides = [1, 1, 1]} : vector<2x8x32xf32> to vector<2x8x8xf32>
    %226 = tpu.concatenate %222, %223, %224, %225 in 0 : vector<2x8x8xf32>, vector<2x8x8xf32>, vector<2x8x8xf32>, vector<2x8x8xf32> -> vector<8x8x8xf32>
    %227 = arith.truncf %226 : vector<8x8x8xf32> to vector<8x8x8xbf16>
    %228 = vector.extract_strided_slice %217 {offsets = [0, 32], sizes = [16, 32], strides = [1, 1]} : vector<16x96xf32> to vector<16x32xf32>
    %229 = vector.shape_cast %228 : vector<16x32xf32> to vector<2x8x32xf32>
    %230 = vector.extract_strided_slice %229 {offsets = [0, 0, 0], sizes = [2, 8, 8], strides = [1, 1, 1]} : vector<2x8x32xf32> to vector<2x8x8xf32>
    %231 = vector.extract_strided_slice %229 {offsets = [0, 0, 8], sizes = [2, 8, 8], strides = [1, 1, 1]} : vector<2x8x32xf32> to vector<2x8x8xf32>
    %232 = vector.extract_strided_slice %229 {offsets = [0, 0, 16], sizes = [2, 8, 8], strides = [1, 1, 1]} : vector<2x8x32xf32> to vector<2x8x8xf32>
    %233 = vector.extract_strided_slice %229 {offsets = [0, 0, 24], sizes = [2, 8, 8], strides = [1, 1, 1]} : vector<2x8x32xf32> to vector<2x8x8xf32>
    %234 = tpu.concatenate %230, %231, %232, %233 in 0 : vector<2x8x8xf32>, vector<2x8x8xf32>, vector<2x8x8xf32>, vector<2x8x8xf32> -> vector<8x8x8xf32>
    %235 = arith.truncf %234 : vector<8x8x8xf32> to vector<8x8x8xbf16>
    %236 = vector.extract_strided_slice %217 {offsets = [0, 64], sizes = [16, 32], strides = [1, 1]} : vector<16x96xf32> to vector<16x32xf32>
    %237 = vector.shape_cast %236 : vector<16x32xf32> to vector<2x8x32xf32>
    %238 = vector.extract_strided_slice %237 {offsets = [0, 0, 0], sizes = [2, 8, 8], strides = [1, 1, 1]} : vector<2x8x32xf32> to vector<2x8x8xf32>
    %239 = vector.extract_strided_slice %237 {offsets = [0, 0, 8], sizes = [2, 8, 8], strides = [1, 1, 1]} : vector<2x8x32xf32> to vector<2x8x8xf32>
    %240 = vector.extract_strided_slice %237 {offsets = [0, 0, 16], sizes = [2, 8, 8], strides = [1, 1, 1]} : vector<2x8x32xf32> to vector<2x8x8xf32>
    %241 = vector.extract_strided_slice %237 {offsets = [0, 0, 24], sizes = [2, 8, 8], strides = [1, 1, 1]} : vector<2x8x32xf32> to vector<2x8x8xf32>
    %242 = tpu.concatenate %238, %239, %240, %241 in 0 : vector<2x8x8xf32>, vector<2x8x8xf32>, vector<2x8x8xf32>, vector<2x8x8xf32> -> vector<8x8x8xf32>
    %243 = arith.truncf %242 : vector<8x8x8xf32> to vector<8x8x8xbf16>
    "tpu.trace_start"() <{level = 10 : i32, message = "nqd,nkd->nqk"}> : () -> ()
    %cst_74 = arith.constant dense<0.000000e+00> : vector<8x8x8xf32>
    %244 = tpu.matmul %227, %235, %cst_74 {dimension_numbers = #tpu.dot_dimension_numbers<[2], [2], [1], [1], [0, 0, 0, 1, 1, 1], [0], [0]>} : vector<8x8x8xbf16>, vector<8x8x8xbf16>, vector<8x8x8xf32> -> vector<8x8x8xf32>
    "tpu.trace_stop"() : () -> ()
    %245 = arith.addf %244, %61 : vector<8x8x8xf32>
    %cst_75 = arith.constant dense<0xFF800000> : vector<8x8xf32>
    %246 = vector.multi_reduction <maximumf>, %245, %cst_75 [2] : vector<8x8x8xf32> to vector<8x8xf32>
    %247 = vector.shape_cast %246 : vector<8x8xf32> to vector<8x8x1xf32>
    %248 = vector.broadcast %247 : vector<8x8x1xf32> to vector<8x8x8xf32>
    %249 = arith.subf %245, %248 : vector<8x8x8xf32>
    %250 = math.exp %249 : vector<8x8x8xf32>
    %cst_76 = arith.constant dense<0.000000e+00> : vector<8x8xf32>
    %251 = vector.multi_reduction <add>, %250, %cst_76 [2] : vector<8x8x8xf32> to vector<8x8xf32>
    %252 = vector.shape_cast %251 : vector<8x8xf32> to vector<8x8x1xf32>
    %253 = vector.broadcast %252 : vector<8x8x1xf32> to vector<8x8x8xf32>
    %254 = arith.divf %250, %253 : vector<8x8x8xf32>
    %255 = arith.truncf %254 : vector<8x8x8xf32> to vector<8x8x8xbf16>
    "tpu.trace_start"() <{level = 10 : i32, message = "nqk,nkd->nqd"}> : () -> ()
    %cst_77 = arith.constant dense<0.000000e+00> : vector<8x8x8xf32>
    %256 = tpu.matmul %255, %243, %cst_77 {dimension_numbers = #tpu.dot_dimension_numbers<[2], [1], [1], [2], [0, 0, 0, 1, 1, 2], [0], [0]>} : vector<8x8x8xbf16>, vector<8x8x8xbf16>, vector<8x8x8xf32> -> vector<8x8x8xf32>
    "tpu.trace_stop"() : () -> ()
    %257 = vector.shape_cast %256 : vector<8x8x8xf32> to vector<4x16x8xf32>
    %258 = arith.truncf %257 : vector<4x16x8xf32> to vector<4x16x8xbf16>
    %c1_78 = arith.constant 1 : index
    %c0_79 = arith.constant 0 : index
    %c0_80 = arith.constant 0 : index
    %c0_81 = arith.constant 0 : index
    %259 = vector.load %arg7[%c1_78, %c0_79, %c0_80, %c0_81] : memref<2x4x8x32xbf16, #tpu.memory_space<vmem>>, vector<1x4x8x32xbf16>
    %260 = vector.shape_cast %259 : vector<1x4x8x32xbf16> to vector<4x8x32xbf16>
    "tpu.trace_start"() <{level = 10 : i32, message = "ntd,ndo->nto"}> : () -> ()
    %cst_82 = arith.constant dense<0.000000e+00> : vector<4x16x32xf32>
    %261 = tpu.matmul %258, %260, %cst_82 {dimension_numbers = #tpu.dot_dimension_numbers<[2], [1], [1], [2], [0, 0, 0, 1, 1, 2], [0], [0]>} : vector<4x16x8xbf16>, vector<4x8x32xbf16>, vector<4x16x32xf32> -> vector<4x16x32xf32>
    "tpu.trace_stop"() : () -> ()
    %262 = vector.extract_strided_slice %209 {offsets = [0, 0], sizes = [1, 32], strides = [1, 1]} : vector<6x32xf32> to vector<1x32xf32>
    %263 = vector.extract_strided_slice %261 {offsets = [0, 0, 0], sizes = [1, 16, 32], strides = [1, 1, 1]} : vector<4x16x32xf32> to vector<1x16x32xf32>
    %264 = vector.shape_cast %263 : vector<1x16x32xf32> to vector<16x32xf32>
    %265 = vector.broadcast %262 : vector<1x32xf32> to vector<16x32xf32>
    %266 = arith.addf %265, %264 : vector<16x32xf32>
    %267 = vector.extract_strided_slice %261 {offsets = [1, 0, 0], sizes = [1, 16, 32], strides = [1, 1, 1]} : vector<4x16x32xf32> to vector<1x16x32xf32>
    %268 = vector.shape_cast %267 : vector<1x16x32xf32> to vector<16x32xf32>
    %269 = arith.addf %266, %268 : vector<16x32xf32>
    %270 = vector.extract_strided_slice %261 {offsets = [2, 0, 0], sizes = [1, 16, 32], strides = [1, 1, 1]} : vector<4x16x32xf32> to vector<1x16x32xf32>
    %271 = vector.shape_cast %270 : vector<1x16x32xf32> to vector<16x32xf32>
    %272 = arith.addf %269, %271 : vector<16x32xf32>
    %273 = vector.extract_strided_slice %261 {offsets = [3, 0, 0], sizes = [1, 16, 32], strides = [1, 1, 1]} : vector<4x16x32xf32> to vector<1x16x32xf32>
    %274 = vector.shape_cast %273 : vector<1x16x32xf32> to vector<16x32xf32>
    %275 = arith.addf %272, %274 : vector<16x32xf32>
    %276 = arith.addf %207, %275 : vector<16x32xf32>
    %277 = vector.extract_strided_slice %209 {offsets = [1, 0], sizes = [1, 32], strides = [1, 1]} : vector<6x32xf32> to vector<1x32xf32>
    %278 = vector.extract_strided_slice %209 {offsets = [2, 0], sizes = [1, 32], strides = [1, 1]} : vector<6x32xf32> to vector<1x32xf32>
    %cst_83 = arith.constant dense<0.000000e+00> : vector<16xf32>
    %279 = vector.multi_reduction <add>, %276, %cst_83 [1] : vector<16x32xf32> to vector<16xf32>
    %280 = vector.shape_cast %279 : vector<16xf32> to vector<16x1xf32>
    %cst_84 = arith.constant 3.200000e+01 : f32
    %281 = vector.broadcast %cst_84 : f32 to vector<16x1xf32>
    %282 = arith.divf %280, %281 : vector<16x1xf32>
    %283 = vector.broadcast %282 : vector<16x1xf32> to vector<16x32xf32>
    %284 = arith.subf %276, %283 : vector<16x32xf32>
    %285 = arith.mulf %284, %284 : vector<16x32xf32>
    %cst_85 = arith.constant dense<0.000000e+00> : vector<16xf32>
    %286 = vector.multi_reduction <add>, %285, %cst_85 [1] : vector<16x32xf32> to vector<16xf32>
    %287 = vector.shape_cast %286 : vector<16xf32> to vector<16x1xf32>
    %cst_86 = arith.constant 3.200000e+01 : f32
    %288 = vector.broadcast %cst_86 : f32 to vector<16x1xf32>
    %289 = arith.divf %287, %288 : vector<16x1xf32>
    %290 = vector.broadcast %282 : vector<16x1xf32> to vector<16x32xf32>
    %291 = arith.subf %276, %290 : vector<16x32xf32>
    %cst_87 = arith.constant 9.99999996E-13 : f32
    %292 = vector.broadcast %cst_87 : f32 to vector<16x1xf32>
    %293 = arith.addf %289, %292 : vector<16x1xf32>
    %294 = math.rsqrt %293 : vector<16x1xf32>
    %295 = vector.broadcast %294 : vector<16x1xf32> to vector<16x32xf32>
    %296 = arith.mulf %291, %295 : vector<16x32xf32>
    %297 = vector.broadcast %277 : vector<1x32xf32> to vector<16x32xf32>
    %298 = arith.mulf %296, %297 : vector<16x32xf32>
    %299 = vector.broadcast %278 : vector<1x32xf32> to vector<16x32xf32>
    %300 = arith.addf %298, %299 : vector<16x32xf32>
    %301 = arith.truncf %300 : vector<16x32xf32> to vector<16x32xbf16>
    %c1_88 = arith.constant 1 : index
    %c0_89 = arith.constant 0 : index
    %c0_90 = arith.constant 0 : index
    %302 = vector.load %arg9[%c1_88, %c0_89, %c0_90] : memref<2x32x64xbf16, #tpu.memory_space<vmem>>, vector<1x32x64xbf16>
    %303 = vector.shape_cast %302 : vector<1x32x64xbf16> to vector<32x64xbf16>
    %cst_91 = arith.constant dense<0.000000e+00> : vector<16x64xf32>
    %304 = tpu.matmul %301, %303, %cst_91 {dimension_numbers = #tpu.dot_dimension_numbers<[1], [0], [0], [1], [0, 0, 1, 1], [], []>} : vector<16x32xbf16>, vector<32x64xbf16>, vector<16x64xf32> -> vector<16x64xf32>
    %c1_92 = arith.constant 1 : index
    %c0_93 = arith.constant 0 : index
    %c0_94 = arith.constant 0 : index
    %305 = vector.load %arg10[%c1_92, %c0_93, %c0_94] : memref<2x1x64xf32, #tpu.memory_space<vmem>>, vector<1x1x64xf32>
    %306 = vector.shape_cast %305 : vector<1x1x64xf32> to vector<1x64xf32>
    %307 = vector.broadcast %306 : vector<1x64xf32> to vector<16x64xf32>
    %308 = arith.addf %304, %307 : vector<16x64xf32>
    %309 = arith.mulf %308, %308 : vector<16x64xf32>
    %310 = arith.mulf %308, %309 : vector<16x64xf32>
    %cst_95 = arith.constant 4.471500e-02 : f32
    %311 = vector.broadcast %cst_95 : f32 to vector<16x64xf32>
    %312 = arith.mulf %311, %310 : vector<16x64xf32>
    %313 = arith.addf %308, %312 : vector<16x64xf32>
    %cst_96 = arith.constant 0.797884583 : f32
    %314 = vector.broadcast %cst_96 : f32 to vector<16x64xf32>
    %315 = arith.mulf %314, %313 : vector<16x64xf32>
    %316 = math.tanh %315 : vector<16x64xf32>
    %cst_97 = arith.constant 1.000000e+00 : f32
    %317 = vector.broadcast %cst_97 : f32 to vector<16x64xf32>
    %318 = arith.addf %317, %316 : vector<16x64xf32>
    %cst_98 = arith.constant 5.000000e-01 : f32
    %319 = vector.broadcast %cst_98 : f32 to vector<16x64xf32>
    %320 = arith.mulf %319, %318 : vector<16x64xf32>
    %321 = arith.mulf %308, %320 : vector<16x64xf32>
    %322 = arith.truncf %321 : vector<16x64xf32> to vector<16x64xbf16>
    %c1_99 = arith.constant 1 : index
    %c0_100 = arith.constant 0 : index
    %c0_101 = arith.constant 0 : index
    %323 = vector.load %arg11[%c1_99, %c0_100, %c0_101] : memref<2x64x32xbf16, #tpu.memory_space<vmem>>, vector<1x64x32xbf16>
    %324 = vector.shape_cast %323 : vector<1x64x32xbf16> to vector<64x32xbf16>
    %cst_102 = arith.constant dense<0.000000e+00> : vector<16x32xf32>
    %325 = tpu.matmul %322, %324, %cst_102 {dimension_numbers = #tpu.dot_dimension_numbers<[1], [0], [0], [1], [0, 0, 1, 1], [], []>} : vector<16x64xbf16>, vector<64x32xbf16>, vector<16x32xf32> -> vector<16x32xf32>
    %326 = vector.extract_strided_slice %209 {offsets = [3, 0], sizes = [1, 32], strides = [1, 1]} : vector<6x32xf32> to vector<1x32xf32>
    %327 = vector.broadcast %326 : vector<1x32xf32> to vector<16x32xf32>
    %328 = arith.addf %325, %327 : vector<16x32xf32>
    %329 = arith.addf %300, %328 : vector<16x32xf32>
    %330 = vector.extract_strided_slice %209 {offsets = [4, 0], sizes = [1, 32], strides = [1, 1]} : vector<6x32xf32> to vector<1x32xf32>
    %331 = vector.extract_strided_slice %209 {offsets = [5, 0], sizes = [1, 32], strides = [1, 1]} : vector<6x32xf32> to vector<1x32xf32>
    %cst_103 = arith.constant dense<0.000000e+00> : vector<16xf32>
    %332 = vector.multi_reduction <add>, %329, %cst_103 [1] : vector<16x32xf32> to vector<16xf32>
    %333 = vector.shape_cast %332 : vector<16xf32> to vector<16x1xf32>
    %cst_104 = arith.constant 3.200000e+01 : f32
    %334 = vector.broadcast %cst_104 : f32 to vector<16x1xf32>
    %335 = arith.divf %333, %334 : vector<16x1xf32>
    %336 = vector.broadcast %335 : vector<16x1xf32> to vector<16x32xf32>
    %337 = arith.subf %329, %336 : vector<16x32xf32>
    %338 = arith.mulf %337, %337 : vector<16x32xf32>
    %cst_105 = arith.constant dense<0.000000e+00> : vector<16xf32>
    %339 = vector.multi_reduction <add>, %338, %cst_105 [1] : vector<16x32xf32> to vector<16xf32>
    %340 = vector.shape_cast %339 : vector<16xf32> to vector<16x1xf32>
    %cst_106 = arith.constant 3.200000e+01 : f32
    %341 = vector.broadcast %cst_106 : f32 to vector<16x1xf32>
    %342 = arith.divf %340, %341 : vector<16x1xf32>
    %343 = vector.broadcast %335 : vector<16x1xf32> to vector<16x32xf32>
    %344 = arith.subf %329, %343 : vector<16x32xf32>
    %cst_107 = arith.constant 9.99999996E-13 : f32
    %345 = vector.broadcast %cst_107 : f32 to vector<16x1xf32>
    %346 = arith.addf %342, %345 : vector<16x1xf32>
    %347 = math.rsqrt %346 : vector<16x1xf32>
    %348 = vector.broadcast %347 : vector<16x1xf32> to vector<16x32xf32>
    %349 = arith.mulf %344, %348 : vector<16x32xf32>
    %350 = vector.broadcast %330 : vector<1x32xf32> to vector<16x32xf32>
    %351 = arith.mulf %349, %350 : vector<16x32xf32>
    %352 = vector.broadcast %331 : vector<1x32xf32> to vector<16x32xf32>
    %353 = arith.addf %351, %352 : vector<16x32xf32>
    %354 = vector.shape_cast %353 : vector<16x32xf32> to vector<2x8x32xf32>
    %355 = vector.extract_strided_slice %354 {offsets = [0, 0, 0], sizes = [2, 1, 32], strides = [1, 1, 1]} : vector<2x8x32xf32> to vector<2x1x32xf32>
    %356 = vector.shape_cast %355 : vector<2x1x32xf32> to vector<2x32xf32>
    %357 = arith.truncf %356 : vector<2x32xf32> to vector<2x32xbf16>
    %c0_108 = arith.constant 0 : index
    %c0_109 = arith.constant 0 : index
    %358 = vector.load %arg12[%c0_108, %c0_109] : memref<32x32xbf16, #tpu.memory_space<vmem>>, vector<32x32xbf16>
    %cst_110 = arith.constant dense<0.000000e+00> : vector<2x32xf32>
    %359 = tpu.matmul %357, %358, %cst_110 {dimension_numbers = #tpu.dot_dimension_numbers<[1], [0], [0], [1], [0, 0, 1, 1], [], []>} : vector<2x32xbf16>, vector<32x32xbf16>, vector<2x32xf32> -> vector<2x32xf32>
    %360 = vector.extract_strided_slice %0 {offsets = [12, 0], sizes = [1, 32], strides = [1, 1]} : vector<13x32xf32> to vector<1x32xf32>
    %361 = vector.broadcast %360 : vector<1x32xf32> to vector<2x32xf32>
    %362 = arith.addf %359, %361 : vector<2x32xf32>
    %363 = math.tanh %362 : vector<2x32xf32>
    %364 = arith.truncf %363 : vector<2x32xf32> to vector<2x32xbf16>
    %c0_111 = arith.constant 0 : index
    %c0_112 = arith.constant 0 : index
    %365 = vector.load %arg13[%c0_111, %c0_112] : memref<32x128xbf16, #tpu.memory_space<vmem>>, vector<32x128xbf16>
    %cst_113 = arith.constant dense<0.000000e+00> : vector<2x128xf32>
    %366 = tpu.matmul %364, %365, %cst_113 {dimension_numbers = #tpu.dot_dimension_numbers<[1], [0], [0], [1], [0, 0, 1, 1], [], []>} : vector<2x32xbf16>, vector<32x128xbf16>, vector<2x128xf32> -> vector<2x128xf32>
    %c0_114 = arith.constant 0 : index
    %c0_115 = arith.constant 0 : index
    %367 = vector.load %arg14[%c0_114, %c0_115] : memref<1x128xf32, #tpu.memory_space<vmem>>, vector<1x128xf32>
    %368 = vector.broadcast %367 : vector<1x128xf32> to vector<2x128xf32>
    %369 = arith.addf %366, %368 : vector<2x128xf32>
    %c0_116 = arith.constant 0 : index
    %c0_117 = arith.constant 0 : index
    %370 = vector.load %arg15[%c0_116, %c0_117] : memref<2x128xf32, #tpu.memory_space<vmem>>, vector<2x128xf32>
    tpu.vector_store %arg15[%c0_116, %c0_117], %369 {strides = array<i32>} : memref<2x128xf32, #tpu.memory_space<vmem>>, vector<2x128xf32>,
    return
  }
}

</mosaic_0001>

<llo_original>
// kernel: bert_classifier_forward.1
$region0: #{bert_classifier_forward.1}
  #allocation0 [shape = 'u32[]', space=smem, size = 0x4, offset = 0x4, fixed_abs, tag = 'smem constant byte address 0x4 - core index']
  #allocation1 [shape = 'u32[144,128]{1,0:T(1,128)}', space=vmem, size = 0x12000, scoped, tag = 'internal scratch']
  %s0 = inlined_call_operand.vmem [shape: s32[16,1], index: 0, kind: input, shape index: {}]
  %s1 = inlined_call_operand.vmem [shape: s32[16,1], index: 1, kind: input, shape index: {}]
  %s2 = inlined_call_operand.vmem [shape: s32[2,1], index: 2, kind: input, shape index: {}]
  %s3 = inlined_call_operand.vmem [shape: f32[100,32], index: 3, kind: input, shape index: {}]
  %s4 = inlined_call_operand.vmem [shape: f32[13,32], index: 4, kind: input, shape index: {}]
  %s5 = inlined_call_operand.vmem [shape: bf16[2,32,96], index: 5, kind: input, shape index: {}]
  %s6 = inlined_call_operand.vmem [shape: f32[2,1,96], index: 6, kind: input, shape index: {}]
  %s7 = inlined_call_operand.vmem [shape: bf16[2,4,8,32], index: 7, kind: input, shape index: {}]
  %s8 = inlined_call_operand.vmem [shape: f32[2,6,32], index: 8, kind: input, shape index: {}]
  %s9 = inlined_call_operand.vmem [shape: bf16[2,32,64], index: 9, kind: input, shape index: {}]
  %s10 = inlined_call_operand.vmem [shape: f32[2,1,64], index: 10, kind: input, shape index: {}]
  %s11 = inlined_call_operand.vmem [shape: bf16[2,64,32], index: 11, kind: input, shape index: {}]
  %s12 = inlined_call_operand.vmem [shape: bf16[32,32], index: 12, kind: input, shape index: {}]
  %s13 = inlined_call_operand.vmem [shape: bf16[32,128], index: 13, kind: input, shape index: {}]
  %s14 = inlined_call_operand.vmem [shape: f32[1,128], index: 14, kind: input, shape index: {}]
  %s15 = inlined_call_operand.hbm [shape: f32[2,128], index: 15, kind: output, shape index: {}]
  %s16 = sld [smem:[#allocation0]]
  $region70: #{bert_classifier_forward.1} parent=0
    _
  %s18 = ssub.s32 1, %s16
  %s19 = scalar_select 0, %s18, %s16
  $region1: #{bert_classifier_forward.1} parent=0
    #allocation2 [shape = 'u8[1024]{0}', space=vmem, size = 0x400, scoped, tag = 'output window, operand 0, single buffered']
    #allocation3 [shape = 's32[1]{0}', space=sflag, size = 0x4, scoped, tag = 'scoped memory for bert_classifier_forward.1']
    %20 = vsyncpa [#allocation3], 0
    // Predicated region
    $region2: #{bert_classifier_forward.1} parent=1 // pred_check
      _
    $region3: #{bert_classifier_forward.1} parent=1 // pred_check_branch
      %22 = sbr.rel (0) target = $region5
    $region4: #{bert_classifier_forward.1} parent=1 // pred_region
      _
    $region5: #{bert_classifier_forward.1} parent=1 // pred_fallthru
      _
    // Predicated region
    $region6: #{bert_classifier_forward.1} parent=1 // pred_check
      _
    $region7: #{bert_classifier_forward.1} parent=1 // pred_check_branch
      %24 = sbr.rel (0) target = $region9
    $region8: #{bert_classifier_forward.1} parent=1 // pred_region
      _
    $region9: #{bert_classifier_forward.1} parent=1 // pred_fallthru
      _
    // Predicated region
    $region10: #{bert_classifier_forward.1} parent=1 // pred_check
      _
    $region11: #{bert_classifier_forward.1} parent=1 // pred_check_branch
      %26 = sbr.rel (0) target = $region13
    $region12: #{bert_classifier_forward.1} parent=1 // pred_region
      _
    $region13: #{bert_classifier_forward.1} parent=1 // pred_fallthru
      _
    // Predicated region
    $region14: #{bert_classifier_forward.1} parent=1 // pred_check
      _
    $region15: #{bert_classifier_forward.1} parent=1 // pred_check_branch
      %28 = sbr.rel (0) target = $region17
    $region16: #{bert_classifier_forward.1} parent=1 // pred_region
      _
    $region17: #{bert_classifier_forward.1} parent=1 // pred_fallthru
      _
    // Predicated region
    $region18: #{bert_classifier_forward.1} parent=1 // pred_check
      _
    $region19: #{bert_classifier_forward.1} parent=1 // pred_check_branch
      %30 = sbr.rel (0) target = $region21
    $region20: #{bert_classifier_forward.1} parent=1 // pred_region
      _
    $region21: #{bert_classifier_forward.1} parent=1 // pred_fallthru
      _
    // Predicated region
    $region22: #{bert_classifier_forward.1} parent=1 // pred_check
      _
    $region23: #{bert_classifier_forward.1} parent=1 // pred_check_branch
      %32 = sbr.rel (0) target = $region25
    $region24: #{bert_classifier_forward.1} parent=1 // pred_region
      _
    $region25: #{bert_classifier_forward.1} parent=1 // pred_fallthru
      _
    // Predicated region
    $region26: #{bert_classifier_forward.1} parent=1 // pred_check
      _
    $region27: #{bert_classifier_forward.1} parent=1 // pred_check_branch
      %34 = sbr.rel (0) target = $region29
    $region28: #{bert_classifier_forward.1} parent=1 // pred_region
      _
    $region29: #{bert_classifier_forward.1} parent=1 // pred_fallthru
      _
    // Predicated region
    $region30: #{bert_classifier_forward.1} parent=1 // pred_check
      _
    $region31: #{bert_classifier_forward.1} parent=1 // pred_check_branch
      %36 = sbr.rel (0) target = $region33
    $region32: #{bert_classifier_forward.1} parent=1 // pred_region
      _
    $region33: #{bert_classifier_forward.1} parent=1 // pred_fallthru
      _
    // Predicated region
    $region34: #{bert_classifier_forward.1} parent=1 // pred_check
      _
    $region35: #{bert_classifier_forward.1} parent=1 // pred_check_branch
      %38 = sbr.rel (0) target = $region37
    $region36: #{bert_classifier_forward.1} parent=1 // pred_region
      _
    $region37: #{bert_classifier_forward.1} parent=1 // pred_fallthru
      _
    // Predicated region
    $region38: #{bert_classifier_forward.1} parent=1 // pred_check
      _
    $region39: #{bert_classifier_forward.1} parent=1 // pred_check_branch
      %40 = sbr.rel (0) target = $region41
    $region40: #{bert_classifier_forward.1} parent=1 // pred_region
      _
    $region41: #{bert_classifier_forward.1} parent=1 // pred_fallthru
      _
    // Predicated region
    $region42: #{bert_classifier_forward.1} parent=1 // pred_check
      _
    $region43: #{bert_classifier_forward.1} parent=1 // pred_check_branch
      %42 = sbr.rel (0) target = $region45
    $region44: #{bert_classifier_forward.1} parent=1 // pred_region
      _
    $region45: #{bert_classifier_forward.1} parent=1 // pred_fallthru
      _
    // Predicated region
    $region46: #{bert_classifier_forward.1} parent=1 // pred_check
      _
    $region47: #{bert_classifier_forward.1} parent=1 // pred_check_branch
      %44 = sbr.rel (0) target = $region49
    $region48: #{bert_classifier_forward.1} parent=1 // pred_region
      _
    $region49: #{bert_classifier_forward.1} parent=1 // pred_fallthru
      _
    // Predicated region
    $region50: #{bert_classifier_forward.1} parent=1 // pred_check
      _
    $region51: #{bert_classifier_forward.1} parent=1 // pred_check_branch
      %46 = sbr.rel (0) target = $region53
    $region52: #{bert_classifier_forward.1} parent=1 // pred_region
      _
    $region53: #{bert_classifier_forward.1} parent=1 // pred_fallthru
      _
    // Predicated region
    $region54: #{bert_classifier_forward.1} parent=1 // pred_check
      _
    $region55: #{bert_classifier_forward.1} parent=1 // pred_check_branch
      %48 = sbr.rel (0) target = $region57
    $region56: #{bert_classifier_forward.1} parent=1 // pred_region
      _
    $region57: #{bert_classifier_forward.1} parent=1 // pred_fallthru
      _
    // Predicated region
    $region58: #{bert_classifier_forward.1} parent=1 // pred_check
      _
    $region59: #{bert_classifier_forward.1} parent=1 // pred_check_branch
      %50 = sbr.rel (0) target = $region61
    $region60: #{bert_classifier_forward.1} parent=1 // pred_region
      _
    $region61: #{bert_classifier_forward.1} parent=1 // pred_fallthru
      _
    %v52 = vld [vmem:[%s4] sm:$0xff]
    %v53 = vld [vmem:[%s4 + $0x8] sm:$0x1f]
    %v54 = vld [vmem:[%s0] sm:$0xff]
    %v55 = vld [vmem:[%s0 + $0x8] sm:$0xff]
    %v56 = vlaneseq
    %v57 = vand.u32 %v56, 127
    %58 = vset.pattern.permute.xlu0 0
    %59 = vperm.xlu0 %58, %v54
    %v60 = vpop.permute.xlu0 %59
    %61 = vset.pattern.permute.xlu0 0
    %62 = vperm.xlu0 %61, %v55
    %v63 = vpop.permute.xlu0 %62
    %vm64 = vcmp.eq.s32.totalorder %v57, %v60
    %vm65 = vcmp.eq.s32.totalorder %v57, %v63
    %v66 = vsel %vm64, 1.0, 0.0
    %v67 = vsel %vm65, 1.0, 0.0
    %v68 = vld [vmem:[%s3] sm:$0xff]
    %v69 = vld [vmem:[%s3 + $0x8] sm:$0xff]
    %v70 = vld [vmem:[%s3 + $0x10] sm:$0xff]
    %v71 = vld [vmem:[%s3 + $0x18] sm:$0xff]
    %v72 = vld [vmem:[%s3 + $0x20] sm:$0xff]
    %v73 = vld [vmem:[%s3 + $0x28] sm:$0xff]
    %v74 = vld [vmem:[%s3 + $0x30] sm:$0xff]
    %v75 = vld [vmem:[%s3 + $0x38] sm:$0xff]
    %v76 = vld [vmem:[%s3 + $0x40] sm:$0xff]
    %v77 = vld [vmem:[%s3 + $0x48] sm:$0xff]
    %v78 = vld [vmem:[%s3 + $0x50] sm:$0xff]
    %v79 = vld [vmem:[%s3 + $0x58] sm:$0xff]
    %v80 = vld [vmem:[%s3 + $0x60] sm:$0xf]
    %v81 = vld [vmem:[%s1] sm:$0xff]
    %v82 = vld [vmem:[%s1 + $0x8] sm:$0xff]
    %v83 = vcvt.s32.f32 %v81
    %v84 = vcvt.s32.f32 %v82
    %v85 = vsub.f32 1.0, %v83
    %v86 = vsub.f32 1.0, %v84
    %v87 = vlaneseq
    %v88 = vshrl.u32 %v87, 7
    %v89 = vsub.s32 0, %v88
    %v90 = vrot.slane %v52, %v89
    %92 = vset.pattern.permute.xlu0 0
    %93 = vperm.xlu0 %92, %v85
    %v94 = vpop.permute.xlu0 %93
    %97 = vset.pattern.permute.xlu0 0
    %98 = vperm.xlu0 %97, %v86
    %v99 = vpop.permute.xlu0 %98
    %v101 = vmul.f32 %v90, %v94
    %v102 = vmul.f32 %v90, %v99
    %vm103 = vcmask 818176
    %v105 = vsel %vm103, %v66, 0
    %v108 = vsel %vm103, %v67, 0
    %vm110 = vcmask 1043456
    %v112 = vsel %vm110, %v80, 0
    %114 = vmatprep.subr.mxu0 0.0
    %115 = vmatpush1.msra.mxu0 %v68
    %116 = vmatprep.subr.mxu0 0.0
    %117 = vmatpush1.msra.mxu0 %v69
    %118 = vmatprep.subr.mxu0 0.0
    %119 = vmatpush1.msra.mxu0 %v70
    %120 = vmatprep.subr.mxu0 0.0
    %121 = vmatpush1.msra.mxu0 %v71
    %122 = vmatprep.subr.mxu0 0.0
    %123 = vmatpush1.msra.mxu0 %v72
    %124 = vmatprep.subr.mxu0 0.0
    %125 = vmatpush1.msra.mxu0 %v73
    %126 = vmatprep.subr.mxu0 0.0
    %127 = vmatpush1.msra.mxu0 %v74
    %128 = vmatprep.subr.mxu0 0.0
    %129 = vmatpush1.msra.mxu0 %v75
    %130 = vmatprep.subr.mxu0 0.0
    %131 = vmatpush1.msra.mxu0 %v76
    %132 = vmatprep.subr.mxu0 0.0
    %133 = vmatpush1.msra.mxu0 %v77
    %134 = vmatprep.subr.mxu0 0.0
    %135 = vmatpush1.msra.mxu0 %v78
    %136 = vmatprep.subr.mxu0 0.0
    %137 = vmatpush1.msra.mxu0 %v79
    %138 = vmatprep.subr.mxu0 0.0
    %139 = vmatpush1.msra.mxu0 %v112
    %140 = vmatprep.subr.mxu0 0.0
    %141 = vmatpush1.msra.mxu0 0.0
    %142 = vmatprep.subr.mxu0 0.0
    %143 = vmatpush1.msra.mxu0 0.0
    %144 = vmatprep.subr.mxu0 0.0
    %145 = vmatpush1.msra.mxu0 0.0
    %146 = vmatprep.subr.mxu0 0.0
    %147 = vmatpush1.msra.mxu0 0.0
    %148 = vmatprep.subr.mxu0 0.0
    %149 = vmatpush1.msra.mxu0 0.0
    %150 = vmatprep.subr.mxu0 0.0
    %151 = vmatpush1.msra.mxu0 0.0
    %152 = vmatprep.subr.mxu0 0.0
    %153 = vmatpush1.msra.mxu0 0.0
    %154 = vmatprep.subr.mxu0 0.0
    %155 = vmatpush1.msra.mxu0 0.0
    %156 = vmatprep.subr.mxu0 0.0
    %157 = vmatpush1.msra.mxu0 0.0
    %158 = vmatprep.subr.mxu0 0.0
    %159 = vmatpush1.msra.mxu0 0.0
    %160 = vmatprep.subr.mxu0 0.0
    %161 = vmatpush1.msra.mxu0 0.0
    %162 = vmatprep.subr.mxu0 0.0
    %163 = vmatpush1.msra.mxu0 0.0
    %164 = vmatprep.subr.mxu0 0.0
    %165 = vmatpush1.msra.mxu0 0.0
    %166 = vmatprep.subr.mxu0 0.0
    %167 = vmatpush1.msra.mxu0 0.0
    %168 = vmatprep.subr.mxu0 0.0
    %169 = vmatpush1.msra.mxu0 0.0
    %170 = vmatprep.subr.mxu0 0.0
    %171 = vmatpush1.msra.mxu0 0.0
    %172 = vmatprep.subr.mxu0 0.0
    %173 = vmatpush1.msra.mxu0 0.0
    %174 = vmatprep.subr.mxu0 0.0
    %175 = vmatpush1.msra.mxu0 0.0
    %176 = vmatprep.subr.mxu0 0.0
    %177 = vmatpush1.msra.mxu0 0.0
    %178 = vmatprep.mubr.f32.mxu0 0.0
    %179 = vmatmul.mubr.f32.gmra.mrb[0].mxu0 %v105
    %v180 = vpop.f32.mrb[0].mxu0
    %v181 = vadd.f32 %v101, %v180
    %v182 = vpop.f32.mrb[0].mxu0
    %183 = vmatprep.mubr.f32.mxu0 0.0
    %184 = vmatmul.mubr.f32.gmra.mrb[0].mxu0 %v108
    %v185 = vpop.f32.mrb[0].mxu0
    %v186 = vadd.f32 %v102, %v185
    %v187 = vpop.f32.mrb[0].mxu0
    %188 = vdwg.mxu0
    %v189 = vlaneseq
    %v190 = vshrl.u32 %v189, 7
    %v191 = vsub.s32 1, %v190
    %v192 = vrot.slane %v52, %v191
    %194 = vset.pattern.permute.xlu0 0
    %195 = vperm.xlu0 %194, %v83
    %v196 = vpop.permute.xlu0 %195
    %199 = vset.pattern.permute.xlu0 0
    %200 = vperm.xlu0 %199, %v84
    %v201 = vpop.permute.xlu0 %200
    %v203 = vmul.f32 %v192, %v196
    %v204 = vmul.f32 %v192, %v201
    %v205 = vadd.f32 %v181, %v203
    %v206 = vadd.f32 %v186, %v204
    %vm209 = vcmask 1045504
    %v210 = vrot.slane %v52, 2
    %v211 = vrot.slane %v53, 2
    %v212 = vsel %vm209, %v210, %v211
    %v214 = vadd.f32 %v205, %v212
    %v215 = vadd.f32 %v206, %v212
    %vm216 = vcmask 261120
    %v217 = vsel %vm216, %v214, 0.0
    %218 = vadd.xlane.f32.xlu0 %v217
    %v219 = vpop.xlane.xlu0 %218
    %v220 = vsel %vm216, %v215, 0.0
    %221 = vadd.xlane.f32.xlu0 %v220
    %v222 = vpop.xlane.xlu0 %221
    %v223 = vrcp.pop 32.0
    %v224 = vmul.f32 %v219, %v223
    %v225 = vmul.f32 %v222, %v223
    %v226 = vsub.f32 %v214, %v224
    %v227 = vsub.f32 %v215, %v225
    %v228 = vmul.f32 %v226, %v226
    %v229 = vmul.f32 %v227, %v227
    %v230 = vsel %vm216, %v228, 0.0
    %231 = vadd.xlane.f32.xlu0 %v230
    %v232 = vpop.xlane.xlu0 %231
    %v233 = vsel %vm216, %v229, 0.0
    %234 = vadd.xlane.f32.xlu0 %v233
    %v235 = vpop.xlane.xlu0 %234
    %v236 = vmul.f32 %v232, %v223
    %v237 = vmul.f32 %v235, %v223
    %v238 = vadd.f32 %v236, 1e-12
    %v239 = vadd.f32 %v237, 1e-12
    %v240 = vrsqrt.pop %v238
    %v241 = vrsqrt.pop %v239
    %v242 = vmul.f32 %v226, %v240
    %v243 = vmul.f32 %v227, %v241
    %v244 = vlaneseq
    %v245 = vshrl.u32 %v244, 7
    %v246 = vsub.s32 2, %v245
    %v247 = vrot.slane %v53, %v246
    %v248 = vmul.f32 %v242, %v247
    %v249 = vmul.f32 %v243, %v247
    %v250 = vlaneseq
    %v251 = vshrl.u32 %v250, 7
    %v252 = vsub.s32 3, %v251
    %v253 = vrot.slane %v53, %v252
    %v254 = vadd.f32 %v248, %v253
    %v255 = vadd.f32 %v249, %v253
    %v256 = vld [vmem:[%s2] sm:$0x3]
    %257 = vset.pattern.permute.xlu0 0
    %258 = vperm.xlu0 %257, %v256
    %v259 = vpop.permute.xlu0 %258
    %vm260 = vcmp.lt.s32.totalorder %v57, %v259
    %v261 = vsel %vm260, 0.0, -10000.0
    %v264 = vunpack.c.l.s4 1966171168
    %v265 = vunpack.c.0.s8 %v264
    %v266 = vlaneseq
    %v267 = vshrl.u32 %v266, 7
    %v268 = vsub.s32 %v265, %v267
    %v269 = vrot.slane %v261, %v268
    %v270 = vcombine.high %v269, %v269
    %v272 = vunpack.c.l.s4 1966171168
    %v273 = vunpack.c.0.s8 %v272
    %v274 = vlaneseq
    %v275 = vshrl.u32 %v274, 7
    %v276 = vsub.s32 %v273, %v275
    %v277 = vrot.slane %v269, %v276
    %v279 = vunpack.c.l.s4 1966171168
    %v280 = vunpack.c.0.s8 %v279
    %v281 = vlaneseq
    %v282 = vshrl.u32 %v281, 7
    %v283 = vsub.s32 %v280, %v282
    %v284 = vrot.slane %v270, %v283
    %v285 = vlaneseq
    %v286 = vshrl.u32 %v285, 7
    %v287 = vsub.s32 0, %v286
    %v288 = vrot.slane %v277, %v287
    %v289 = vlaneseq
    %v290 = vshrl.u32 %v289, 7
    %v291 = vsub.s32 0, %v290
    %v292 = vrot.slane %v284, %v291
    %v295 = vld [vmem:[%s8] sm:$0x3f]
    %v296 = vpack.c.bf16 %v255, %v254
    %v297 = vld [vmem:[%s5] sm:$0xf]
    %v298 = vld [vmem:[%s5 + $0x4] sm:$0xf]
    %v299 = vld [vmem:[%s5 + $0x8] sm:$0xf]
    %v300 = vld [vmem:[%s5 + $0xc] sm:$0xf]
    %v301 = vld [vmem:[%s6] sm:$0x1]
    %v303 = vlaneseq
    %v304 = vshrl.u32 %v303, 7
    %v305 = vsub.s32 0, %v304
    %v306 = vrot.slane %v301, %v305
    %v312 = vunpack.c.l.b16 %v297
    %v313 = vunpack.c.l.b16 %v298
    %v314 = vunpack.c.l.b16 %v299
    %v315 = vunpack.c.l.b16 %v300
    %v316 = vpack.c.b16 %v313, %v312
    %v317 = vpack.c.b16 %v315, %v314
    %v321 = vsel %vm216, %v296, 0
    %323 = vmatprep.subr.bf16.mxu0 0
    %324 = vmatpush1.bf16.msra.mxu0 %v316
    %325 = vmatprep.subr.bf16.mxu0 0
    %326 = vmatpush1.bf16.msra.mxu0 %v317
    %327 = vmatprep.subr.bf16.mxu0 0
    %328 = vmatpush1.bf16.msra.mxu0 0
    %329 = vmatprep.subr.bf16.mxu0 0
    %330 = vmatpush1.bf16.msra.mxu0 0
    %331 = vmatprep.subr.bf16.mxu0 0
    %332 = vmatpush1.bf16.msra.mxu0 0
    %333 = vmatprep.subr.bf16.mxu0 0
    %334 = vmatpush1.bf16.msra.mxu0 0
    %335 = vmatprep.subr.bf16.mxu0 0
    %336 = vmatpush1.bf16.msra.mxu0 0
    %337 = vmatprep.subr.bf16.mxu0 0
    %338 = vmatpush1.bf16.msra.mxu0 0
    %339 = vmatprep.subr.bf16.mxu0 0
    %340 = vmatpush1.bf16.msra.mxu0 0
    %341 = vmatprep.subr.bf16.mxu0 0
    %342 = vmatpush1.bf16.msra.mxu0 0
    %343 = vmatprep.subr.bf16.mxu0 0
    %344 = vmatpush1.bf16.msra.mxu0 0
    %345 = vmatprep.subr.bf16.mxu0 0
    %346 = vmatpush1.bf16.msra.mxu0 0
    %347 = vmatprep.subr.bf16.mxu0 0
    %348 = vmatpush1.bf16.msra.mxu0 0
    %349 = vmatprep.subr.bf16.mxu0 0
    %350 = vmatpush1.bf16.msra.mxu0 0
    %351 = vmatprep.subr.bf16.mxu0 0
    %352 = vmatpush1.bf16.msra.mxu0 0
    %353 = vmatprep.subr.bf16.mxu0 0
    %354 = vmatpush1.bf16.msra.mxu0 0
    %355 = vmatprep.mubr.bf16.mxu0 0
    %356 = vmatmul.mubr.bf16.gmra.mrb[0].mxu0 %v321
    %v357 = vpop.f32.mrb[0].mxu0
    %v358 = vadd.f32 %v306, %v357
    %v359 = vpop.f32.mrb[0].mxu0
    %v360 = vpop.f32.mrb[0].mxu0
    %v361 = vadd.f32 %v306, %v360
    %v362 = vpop.f32.mrb[0].mxu0
    %363 = vdwg.mxu0
    %v364 = vmul.f32 %v358, 0.35355338
    %v365 = vmul.f32 %v361, 0.35355338
    %368 = vrot.lane.b32.xlu0 %v364, 120
    %v369 = vpop.permute.xlu0 %368
    %370 = vrot.lane.b32.xlu0 %v365, 120
    %v371 = vpop.permute.xlu0 %370
    %374 = vrot.lane.b32.xlu0 %v364, 112
    %v375 = vpop.permute.xlu0 %374
    %376 = vrot.lane.b32.xlu0 %v365, 112
    %v377 = vpop.permute.xlu0 %376
    %380 = vrot.lane.b32.xlu0 %v364, 104
    %v381 = vpop.permute.xlu0 %380
    %382 = vrot.lane.b32.xlu0 %v365, 104
    %v383 = vpop.permute.xlu0 %382
    %v386 = vpack.c.bf16 %v364, %v364
    %v387 = vpack.c.bf16 %v365, %v365
    %v388 = vpack.c.bf16 %v369, %v369
    %v389 = vpack.c.bf16 %v371, %v371
    %v390 = vpack.c.bf16 %v375, %v375
    %v391 = vpack.c.bf16 %v377, %v377
    %v392 = vpack.c.bf16 %v381, %v381
    %v393 = vpack.c.bf16 %v383, %v383
    %396 = vrot.lane.b32.xlu0 %v358, 120
    %v397 = vpop.permute.xlu0 %396
    %398 = vrot.lane.b32.xlu0 %v361, 120
    %v399 = vpop.permute.xlu0 %398
    %402 = vrot.lane.b32.xlu0 %v358, 112
    %v403 = vpop.permute.xlu0 %402
    %404 = vrot.lane.b32.xlu0 %v361, 112
    %v405 = vpop.permute.xlu0 %404
    %408 = vrot.lane.b32.xlu0 %v358, 104
    %v409 = vpop.permute.xlu0 %408
    %410 = vrot.lane.b32.xlu0 %v361, 104
    %v411 = vpop.permute.xlu0 %410
    %v414 = vpack.c.bf16 %v358, %v358
    %v415 = vpack.c.bf16 %v361, %v361
    %v416 = vpack.c.bf16 %v397, %v397
    %v417 = vpack.c.bf16 %v399, %v399
    %v418 = vpack.c.bf16 %v403, %v403
    %v419 = vpack.c.bf16 %v405, %v405
    %v420 = vpack.c.bf16 %v409, %v409
    %v421 = vpack.c.bf16 %v411, %v411
    %423 = vrot.lane.b32.xlu0 %v414, 96
    %v424 = vpop.permute.xlu0 %423
    %vm425 = vcmask 64512
    %v427 = vsel %vm425, %v386, 0
    %v430 = vsel %vm425, %v424, 0
    %432 = vmatprep.subr.bf16.mxu0 0
    %433 = vmatpush1.bf16.xpose.msra.mxu0 %v430
    %434 = vmatprep.subr.bf16.mxu0 0
    %435 = vmatpush1.bf16.xpose.msra.mxu0 0
    %436 = vmatprep.subr.bf16.mxu0 0
    %437 = vmatpush1.bf16.xpose.msra.mxu0 0
    %438 = vmatprep.subr.bf16.mxu0 0
    %439 = vmatpush1.bf16.xpose.msra.mxu0 0
    %440 = vmatprep.subr.bf16.mxu0 0
    %441 = vmatpush1.bf16.xpose.msra.mxu0 0
    %442 = vmatprep.subr.bf16.mxu0 0
    %443 = vmatpush1.bf16.xpose.msra.mxu0 0
    %444 = vmatprep.subr.bf16.mxu0 0
    %445 = vmatpush1.bf16.xpose.msra.mxu0 0
    %446 = vmatprep.subr.bf16.mxu0 0
    %447 = vmatpush1.bf16.xpose.msra.mxu0 0
    %448 = vmatprep.subr.bf16.mxu0 0
    %449 = vmatpush1.bf16.xpose.msra.mxu0 0
    %450 = vmatprep.subr.bf16.mxu0 0
    %451 = vmatpush1.bf16.xpose.msra.mxu0 0
    %452 = vmatprep.subr.bf16.mxu0 0
    %453 = vmatpush1.bf16.xpose.msra.mxu0 0
    %454 = vmatprep.subr.bf16.mxu0 0
    %455 = vmatpush1.bf16.xpose.msra.mxu0 0
    %456 = vmatprep.subr.bf16.mxu0 0
    %457 = vmatpush1.bf16.xpose.msra.mxu0 0
    %458 = vmatprep.subr.bf16.mxu0 0
    %459 = vmatpush1.bf16.xpose.msra.mxu0 0
    %460 = vmatprep.subr.bf16.mxu0 0
    %461 = vmatpush1.bf16.xpose.msra.mxu0 0
    %462 = vmatprep.subr.bf16.mxu0 0
    %463 = vmatpush1.bf16.xpose.msra.mxu0 0
    %464 = vmatprep.mubr.bf16.mxu0 0
    %465 = vmatmul.mubr.bf16.gmra.mrb[0].mxu0 %v427
    %v466 = vpop.f32.mrb[0].mxu0
    %v467 = vadd.f32 %v288, %v466
    %v468 = vpop.f32.mrb[0].mxu0
    %v469 = vpop.f32.mrb[0].mxu0
    %v470 = vpop.f32.mrb[0].mxu0
    %471 = vdwg.mxu0
    %473 = vrot.lane.b32.xlu0 %v415, 96
    %v474 = vpop.permute.xlu0 %473
    %v476 = vsel %vm425, %v387, 0
    %v479 = vsel %vm425, %v474, 0
    %481 = vmatprep.subr.bf16.mxu0 0
    %482 = vmatpush1.bf16.xpose.msra.mxu0 %v479
    %483 = vmatprep.subr.bf16.mxu0 0
    %484 = vmatpush1.bf16.xpose.msra.mxu0 0
    %485 = vmatprep.subr.bf16.mxu0 0
    %486 = vmatpush1.bf16.xpose.msra.mxu0 0
    %487 = vmatprep.subr.bf16.mxu0 0
    %488 = vmatpush1.bf16.xpose.msra.mxu0 0
    %489 = vmatprep.subr.bf16.mxu0 0
    %490 = vmatpush1.bf16.xpose.msra.mxu0 0
    %491 = vmatprep.subr.bf16.mxu0 0
    %492 = vmatpush1.bf16.xpose.msra.mxu0 0
    %493 = vmatprep.subr.bf16.mxu0 0
    %494 = vmatpush1.bf16.xpose.msra.mxu0 0
    %495 = vmatprep.subr.bf16.mxu0 0
    %496 = vmatpush1.bf16.xpose.msra.mxu0 0
    %497 = vmatprep.subr.bf16.mxu0 0
    %498 = vmatpush1.bf16.xpose.msra.mxu0 0
    %499 = vmatprep.subr.bf16.mxu0 0
    %500 = vmatpush1.bf16.xpose.msra.mxu0 0
    %501 = vmatprep.subr.bf16.mxu0 0
    %502 = vmatpush1.bf16.xpose.msra.mxu0 0
    %503 = vmatprep.subr.bf16.mxu0 0
    %504 = vmatpush1.bf16.xpose.msra.mxu0 0
    %505 = vmatprep.subr.bf16.mxu0 0
    %506 = vmatpush1.bf16.xpose.msra.mxu0 0
    %507 = vmatprep.subr.bf16.mxu0 0
    %508 = vmatpush1.bf16.xpose.msra.mxu0 0
    %509 = vmatprep.subr.bf16.mxu0 0
    %510 = vmatpush1.bf16.xpose.msra.mxu0 0
    %511 = vmatprep.subr.bf16.mxu0 0
    %512 = vmatpush1.bf16.xpose.msra.mxu0 0
    %513 = vmatprep.mubr.bf16.mxu0 0
    %514 = vmatmul.mubr.bf16.gmra.mrb[0].mxu0 %v476
    %v515 = vpop.f32.mrb[0].mxu0
    %v516 = vadd.f32 %v292, %v515
    %v517 = vpop.f32.mrb[0].mxu0
    %v518 = vpop.f32.mrb[0].mxu0
    %v519 = vpop.f32.mrb[0].mxu0
    %520 = vdwg.mxu0
    %522 = vrot.lane.b32.xlu0 %v416, 96
    %v523 = vpop.permute.xlu0 %522
    %v525 = vsel %vm425, %v388, 0
    %v528 = vsel %vm425, %v523, 0
    %530 = vmatprep.subr.bf16.mxu0 0
    %531 = vmatpush1.bf16.xpose.msra.mxu0 %v528
    %532 = vmatprep.subr.bf16.mxu0 0
    %533 = vmatpush1.bf16.xpose.msra.mxu0 0
    %534 = vmatprep.subr.bf16.mxu0 0
    %535 = vmatpush1.bf16.xpose.msra.mxu0 0
    %536 = vmatprep.subr.bf16.mxu0 0
    %537 = vmatpush1.bf16.xpose.msra.mxu0 0
    %538 = vmatprep.subr.bf16.mxu0 0
    %539 = vmatpush1.bf16.xpose.msra.mxu0 0
    %540 = vmatprep.subr.bf16.mxu0 0
    %541 = vmatpush1.bf16.xpose.msra.mxu0 0
    %542 = vmatprep.subr.bf16.mxu0 0
    %543 = vmatpush1.bf16.xpose.msra.mxu0 0
    %544 = vmatprep.subr.bf16.mxu0 0
    %545 = vmatpush1.bf16.xpose.msra.mxu0 0
    %546 = vmatprep.subr.bf16.mxu0 0
    %547 = vmatpush1.bf16.xpose.msra.mxu0 0
    %548 = vmatprep.subr.bf16.mxu0 0
    %549 = vmatpush1.bf16.xpose.msra.mxu0 0
    %550 = vmatprep.subr.bf16.mxu0 0
    %551 = vmatpush1.bf16.xpose.msra.mxu0 0
    %552 = vmatprep.subr.bf16.mxu0 0
    %553 = vmatpush1.bf16.xpose.msra.mxu0 0
    %554 = vmatprep.subr.bf16.mxu0 0
    %555 = vmatpush1.bf16.xpose.msra.mxu0 0
    %556 = vmatprep.subr.bf16.mxu0 0
    %557 = vmatpush1.bf16.xpose.msra.mxu0 0
    %558 = vmatprep.subr.bf16.mxu0 0
    %559 = vmatpush1.bf16.xpose.msra.mxu0 0
    %560 = vmatprep.subr.bf16.mxu0 0
    %561 = vmatpush1.bf16.xpose.msra.mxu0 0
    %562 = vmatprep.mubr.bf16.mxu0 0
    %563 = vmatmul.mubr.bf16.gmra.mrb[0].mxu0 %v525
    %v564 = vpop.f32.mrb[0].mxu0
    %v565 = vadd.f32 %v288, %v564
    %v566 = vpop.f32.mrb[0].mxu0
    %v567 = vpop.f32.mrb[0].mxu0
    %v568 = vpop.f32.mrb[0].mxu0
    %569 = vdwg.mxu0
    %571 = vrot.lane.b32.xlu0 %v417, 96
    %v572 = vpop.permute.xlu0 %571
    %v574 = vsel %vm425, %v389, 0
    %v577 = vsel %vm425, %v572, 0
    %579 = vmatprep.subr.bf16.mxu0 0
    %580 = vmatpush1.bf16.xpose.msra.mxu0 %v577
    %581 = vmatprep.subr.bf16.mxu0 0
    %582 = vmatpush1.bf16.xpose.msra.mxu0 0
    %583 = vmatprep.subr.bf16.mxu0 0
    %584 = vmatpush1.bf16.xpose.msra.mxu0 0
    %585 = vmatprep.subr.bf16.mxu0 0
    %586 = vmatpush1.bf16.xpose.msra.mxu0 0
    %587 = vmatprep.subr.bf16.mxu0 0
    %588 = vmatpush1.bf16.xpose.msra.mxu0 0
    %589 = vmatprep.subr.bf16.mxu0 0
    %590 = vmatpush1.bf16.xpose.msra.mxu0 0
    %591 = vmatprep.subr.bf16.mxu0 0
    %592 = vmatpush1.bf16.xpose.msra.mxu0 0
    %593 = vmatprep.subr.bf16.mxu0 0
    %594 = vmatpush1.bf16.xpose.msra.mxu0 0
    %595 = vmatprep.subr.bf16.mxu0 0
    %596 = vmatpush1.bf16.xpose.msra.mxu0 0
    %597 = vmatprep.subr.bf16.mxu0 0
    %598 = vmatpush1.bf16.xpose.msra.mxu0 0
    %599 = vmatprep.subr.bf16.mxu0 0
    %600 = vmatpush1.bf16.xpose.msra.mxu0 0
    %601 = vmatprep.subr.bf16.mxu0 0
    %602 = vmatpush1.bf16.xpose.msra.mxu0 0
    %603 = vmatprep.subr.bf16.mxu0 0
    %604 = vmatpush1.bf16.xpose.msra.mxu0 0
    %605 = vmatprep.subr.bf16.mxu0 0
    %606 = vmatpush1.bf16.xpose.msra.mxu0 0
    %607 = vmatprep.subr.bf16.mxu0 0
    %608 = vmatpush1.bf16.xpose.msra.mxu0 0
    %609 = vmatprep.subr.bf16.mxu0 0
    %610 = vmatpush1.bf16.xpose.msra.mxu0 0
    %611 = vmatprep.mubr.bf16.mxu0 0
    %612 = vmatmul.mubr.bf16.gmra.mrb[0].mxu0 %v574
    %v613 = vpop.f32.mrb[0].mxu0
    %v614 = vadd.f32 %v292, %v613
    %v615 = vpop.f32.mrb[0].mxu0
    %v616 = vpop.f32.mrb[0].mxu0
    %v617 = vpop.f32.mrb[0].mxu0
    %618 = vdwg.mxu0
    %620 = vrot.lane.b32.xlu0 %v418, 96
    %v621 = vpop.permute.xlu0 %620
    %v623 = vsel %vm425, %v390, 0
    %v626 = vsel %vm425, %v621, 0
    %628 = vmatprep.subr.bf16.mxu0 0
    %629 = vmatpush1.bf16.xpose.msra.mxu0 %v626
    %630 = vmatprep.subr.bf16.mxu0 0
    %631 = vmatpush1.bf16.xpose.msra.mxu0 0
    %632 = vmatprep.subr.bf16.mxu0 0
    %633 = vmatpush1.bf16.xpose.msra.mxu0 0
    %634 = vmatprep.subr.bf16.mxu0 0
    %635 = vmatpush1.bf16.xpose.msra.mxu0 0
    %636 = vmatprep.subr.bf16.mxu0 0
    %637 = vmatpush1.bf16.xpose.msra.mxu0 0
    %638 = vmatprep.subr.bf16.mxu0 0
    %639 = vmatpush1.bf16.xpose.msra.mxu0 0
    %640 = vmatprep.subr.bf16.mxu0 0
    %641 = vmatpush1.bf16.xpose.msra.mxu0 0
    %642 = vmatprep.subr.bf16.mxu0 0
    %643 = vmatpush1.bf16.xpose.msra.mxu0 0
    %644 = vmatprep.subr.bf16.mxu0 0
    %645 = vmatpush1.bf16.xpose.msra.mxu0 0
    %646 = vmatprep.subr.bf16.mxu0 0
    %647 = vmatpush1.bf16.xpose.msra.mxu0 0
    %648 = vmatprep.subr.bf16.mxu0 0
    %649 = vmatpush1.bf16.xpose.msra.mxu0 0
    %650 = vmatprep.subr.bf16.mxu0 0
    %651 = vmatpush1.bf16.xpose.msra.mxu0 0
    %652 = vmatprep.subr.bf16.mxu0 0
    %653 = vmatpush1.bf16.xpose.msra.mxu0 0
    %654 = vmatprep.subr.bf16.mxu0 0
    %655 = vmatpush1.bf16.xpose.msra.mxu0 0
    %656 = vmatprep.subr.bf16.mxu0 0
    %657 = vmatpush1.bf16.xpose.msra.mxu0 0
    %658 = vmatprep.subr.bf16.mxu0 0
    %659 = vmatpush1.bf16.xpose.msra.mxu0 0
    %660 = vmatprep.mubr.bf16.mxu0 0
    %661 = vmatmul.mubr.bf16.gmra.mrb[0].mxu0 %v623
    %v662 = vpop.f32.mrb[0].mxu0
    %v663 = vadd.f32 %v288, %v662
    %v664 = vpop.f32.mrb[0].mxu0
    %v665 = vpop.f32.mrb[0].mxu0
    %v666 = vpop.f32.mrb[0].mxu0
    %667 = vdwg.mxu0
    %669 = vrot.lane.b32.xlu0 %v419, 96
    %v670 = vpop.permute.xlu0 %669
    %v672 = vsel %vm425, %v391, 0
    %v675 = vsel %vm425, %v670, 0
    %677 = vmatprep.subr.bf16.mxu0 0
    %678 = vmatpush1.bf16.xpose.msra.mxu0 %v675
    %679 = vmatprep.subr.bf16.mxu0 0
    %680 = vmatpush1.bf16.xpose.msra.mxu0 0
    %681 = vmatprep.subr.bf16.mxu0 0
    %682 = vmatpush1.bf16.xpose.msra.mxu0 0
    %683 = vmatprep.subr.bf16.mxu0 0
    %684 = vmatpush1.bf16.xpose.msra.mxu0 0
    %685 = vmatprep.subr.bf16.mxu0 0
    %686 = vmatpush1.bf16.xpose.msra.mxu0 0
    %687 = vmatprep.subr.bf16.mxu0 0
    %688 = vmatpush1.bf16.xpose.msra.mxu0 0
    %689 = vmatprep.subr.bf16.mxu0 0
    %690 = vmatpush1.bf16.xpose.msra.mxu0 0
    %691 = vmatprep.subr.bf16.mxu0 0
    %692 = vmatpush1.bf16.xpose.msra.mxu0 0
    %693 = vmatprep.subr.bf16.mxu0 0
    %694 = vmatpush1.bf16.xpose.msra.mxu0 0
    %695 = vmatprep.subr.bf16.mxu0 0
    %696 = vmatpush1.bf16.xpose.msra.mxu0 0
    %697 = vmatprep.subr.bf16.mxu0 0
    %698 = vmatpush1.bf16.xpose.msra.mxu0 0
    %699 = vmatprep.subr.bf16.mxu0 0
    %700 = vmatpush1.bf16.xpose.msra.mxu0 0
    %701 = vmatprep.subr.bf16.mxu0 0
    %702 = vmatpush1.bf16.xpose.msra.mxu0 0
    %703 = vmatprep.subr.bf16.mxu0 0
    %704 = vmatpush1.bf16.xpose.msra.mxu0 0
    %705 = vmatprep.subr.bf16.mxu0 0
    %706 = vmatpush1.bf16.xpose.msra.mxu0 0
    %707 = vmatprep.subr.bf16.mxu0 0
    %708 = vmatpush1.bf16.xpose.msra.mxu0 0
    %709 = vmatprep.mubr.bf16.mxu0 0
    %710 = vmatmul.mubr.bf16.gmra.mrb[0].mxu0 %v672
    %v711 = vpop.f32.mrb[0].mxu0
    %v712 = vadd.f32 %v292, %v711
    %v713 = vpop.f32.mrb[0].mxu0
    %v714 = vpop.f32.mrb[0].mxu0
    %v715 = vpop.f32.mrb[0].mxu0
    %716 = vdwg.mxu0
    %718 = vrot.lane.b32.xlu0 %v420, 96
    %v719 = vpop.permute.xlu0 %718
    %v721 = vsel %vm425, %v392, 0
    %v724 = vsel %vm425, %v719, 0
    %726 = vmatprep.subr.bf16.mxu0 0
    %727 = vmatpush1.bf16.xpose.msra.mxu0 %v724
    %728 = vmatprep.subr.bf16.mxu0 0
    %729 = vmatpush1.bf16.xpose.msra.mxu0 0
    %730 = vmatprep.subr.bf16.mxu0 0
    %731 = vmatpush1.bf16.xpose.msra.mxu0 0
    %732 = vmatprep.subr.bf16.mxu0 0
    %733 = vmatpush1.bf16.xpose.msra.mxu0 0
    %734 = vmatprep.subr.bf16.mxu0 0
    %735 = vmatpush1.bf16.xpose.msra.mxu0 0
    %736 = vmatprep.subr.bf16.mxu0 0
    %737 = vmatpush1.bf16.xpose.msra.mxu0 0
    %738 = vmatprep.subr.bf16.mxu0 0
    %739 = vmatpush1.bf16.xpose.msra.mxu0 0
    %740 = vmatprep.subr.bf16.mxu0 0
    %741 = vmatpush1.bf16.xpose.msra.mxu0 0
    %742 = vmatprep.subr.bf16.mxu0 0
    %743 = vmatpush1.bf16.xpose.msra.mxu0 0
    %744 = vmatprep.subr.bf16.mxu0 0
    %745 = vmatpush1.bf16.xpose.msra.mxu0 0
    %746 = vmatprep.subr.bf16.mxu0 0
    %747 = vmatpush1.bf16.xpose.msra.mxu0 0
    %748 = vmatprep.subr.bf16.mxu0 0
    %749 = vmatpush1.bf16.xpose.msra.mxu0 0
    %750 = vmatprep.subr.bf16.mxu0 0
    %751 = vmatpush1.bf16.xpose.msra.mxu0 0
    %752 = vmatprep.subr.bf16.mxu0 0
    %753 = vmatpush1.bf16.xpose.msra.mxu0 0
    %754 = vmatprep.subr.bf16.mxu0 0
    %755 = vmatpush1.bf16.xpose.msra.mxu0 0
    %756 = vmatprep.subr.bf16.mxu0 0
    %757 = vmatpush1.bf16.xpose.msra.mxu0 0
    %758 = vmatprep.mubr.bf16.mxu0 0
    %759 = vmatmul.mubr.bf16.gmra.mrb[0].mxu0 %v721
    %v760 = vpop.f32.mrb[0].mxu0
    %v761 = vadd.f32 %v288, %v760
    %v762 = vpop.f32.mrb[0].mxu0
    %v763 = vpop.f32.mrb[0].mxu0
    %v764 = vpop.f32.mrb[0].mxu0
    %765 = vdwg.mxu0
    %767 = vrot.lane.b32.xlu0 %v421, 96
    %v768 = vpop.permute.xlu0 %767
    %v770 = vsel %vm425, %v393, 0
    %v773 = vsel %vm425, %v768, 0
    %775 = vmatprep.subr.bf16.mxu0 0
    %776 = vmatpush1.bf16.xpose.msra.mxu0 %v773
    %777 = vmatprep.subr.bf16.mxu0 0
    %778 = vmatpush1.bf16.xpose.msra.mxu0 0
    %779 = vmatprep.subr.bf16.mxu0 0
    %780 = vmatpush1.bf16.xpose.msra.mxu0 0
    %781 = vmatprep.subr.bf16.mxu0 0
    %782 = vmatpush1.bf16.xpose.msra.mxu0 0
    %783 = vmatprep.subr.bf16.mxu0 0
    %784 = vmatpush1.bf16.xpose.msra.mxu0 0
    %785 = vmatprep.subr.bf16.mxu0 0
    %786 = vmatpush1.bf16.xpose.msra.mxu0 0
    %787 = vmatprep.subr.bf16.mxu0 0
    %788 = vmatpush1.bf16.xpose.msra.mxu0 0
    %789 = vmatprep.subr.bf16.mxu0 0
    %790 = vmatpush1.bf16.xpose.msra.mxu0 0
    %791 = vmatprep.subr.bf16.mxu0 0
    %792 = vmatpush1.bf16.xpose.msra.mxu0 0
    %793 = vmatprep.subr.bf16.mxu0 0
    %794 = vmatpush1.bf16.xpose.msra.mxu0 0
    %795 = vmatprep.subr.bf16.mxu0 0
    %796 = vmatpush1.bf16.xpose.msra.mxu0 0
    %797 = vmatprep.subr.bf16.mxu0 0
    %798 = vmatpush1.bf16.xpose.msra.mxu0 0
    %799 = vmatprep.subr.bf16.mxu0 0
    %800 = vmatpush1.bf16.xpose.msra.mxu0 0
    %801 = vmatprep.subr.bf16.mxu0 0
    %802 = vmatpush1.bf16.xpose.msra.mxu0 0
    %803 = vmatprep.subr.bf16.mxu0 0
    %804 = vmatpush1.bf16.xpose.msra.mxu0 0
    %805 = vmatprep.subr.bf16.mxu0 0
    %806 = vmatpush1.bf16.xpose.msra.mxu0 0
    %807 = vmatprep.mubr.bf16.mxu0 0
    %808 = vmatmul.mubr.bf16.gmra.mrb[0].mxu0 %v770
    %v809 = vpop.f32.mrb[0].mxu0
    %v810 = vadd.f32 %v292, %v809
    %v811 = vpop.f32.mrb[0].mxu0
    %v812 = vpop.f32.mrb[0].mxu0
    %v813 = vpop.f32.mrb[0].mxu0
    %814 = vdwg.mxu0
    %v815 = vsel %vm425, %v467, -inf
    %816 = vmax.xlane.f32.xlu0 %v815
    %v817 = vpop.xlane.xlu0 %816
    %v818 = vsel %vm425, %v516, -inf
    %819 = vmax.xlane.f32.xlu0 %v818
    %v820 = vpop.xlane.xlu0 %819
    %v821 = vsel %vm425, %v565, -inf
    %822 = vmax.xlane.f32.xlu0 %v821
    %v823 = vpop.xlane.xlu0 %822
    %v824 = vsel %vm425, %v614, -inf
    %825 = vmax.xlane.f32.xlu0 %v824
    %v826 = vpop.xlane.xlu0 %825
    %v827 = vsel %vm425, %v663, -inf
    %828 = vmax.xlane.f32.xlu0 %v827
    %v829 = vpop.xlane.xlu0 %828
    %v830 = vsel %vm425, %v712, -inf
    %831 = vmax.xlane.f32.xlu0 %v830
    %v832 = vpop.xlane.xlu0 %831
    %v833 = vsel %vm425, %v761, -inf
    %834 = vmax.xlane.f32.xlu0 %v833
    %v835 = vpop.xlane.xlu0 %834
    %v836 = vsel %vm425, %v810, -inf
    %837 = vmax.xlane.f32.xlu0 %v836
    %v838 = vpop.xlane.xlu0 %837
    %v839 = vsub.f32 %v467, %v817
    %v840 = vsub.f32 %v516, %v820
    %v841 = vsub.f32 %v565, %v823
    %v842 = vsub.f32 %v614, %v826
    %v843 = vsub.f32 %v663, %v829
    %v844 = vsub.f32 %v712, %v832
    %v845 = vsub.f32 %v761, %v835
    %v846 = vsub.f32 %v810, %v838
    %v847 = vmul.f32 %v839, 1.442695
    %v848 = vpow.pop %v847
    %v849 = vmul.f32 %v840, 1.442695
    %v850 = vpow.pop %v849
    %v851 = vmul.f32 %v841, 1.442695
    %v852 = vpow.pop %v851
    %v853 = vmul.f32 %v842, 1.442695
    %v854 = vpow.pop %v853
    %v855 = vmul.f32 %v843, 1.442695
    %v856 = vpow.pop %v855
    %v857 = vmul.f32 %v844, 1.442695
    %v858 = vpow.pop %v857
    %v859 = vmul.f32 %v845, 1.442695
    %v860 = vpow.pop %v859
    %v861 = vmul.f32 %v846, 1.442695
    %v862 = vpow.pop %v861
    %v863 = vsel %vm425, %v848, 0.0
    %864 = vadd.xlane.f32.xlu0 %v863
    %v865 = vpop.xlane.xlu0 %864
    %v866 = vsel %vm425, %v850, 0.0
    %867 = vadd.xlane.f32.xlu0 %v866
    %v868 = vpop.xlane.xlu0 %867
    %v869 = vsel %vm425, %v852, 0.0
    %870 = vadd.xlane.f32.xlu0 %v869
    %v871 = vpop.xlane.xlu0 %870
    %v872 = vsel %vm425, %v854, 0.0
    %873 = vadd.xlane.f32.xlu0 %v872
    %v874 = vpop.xlane.xlu0 %873
    %v875 = vsel %vm425, %v856, 0.0
    %876 = vadd.xlane.f32.xlu0 %v875
    %v877 = vpop.xlane.xlu0 %876
    %v878 = vsel %vm425, %v858, 0.0
    %879 = vadd.xlane.f32.xlu0 %v878
    %v880 = vpop.xlane.xlu0 %879
    %v881 = vsel %vm425, %v860, 0.0
    %882 = vadd.xlane.f32.xlu0 %v881
    %v883 = vpop.xlane.xlu0 %882
    %v884 = vsel %vm425, %v862, 0.0
    %885 = vadd.xlane.f32.xlu0 %v884
    %v886 = vpop.xlane.xlu0 %885
    %v887 = vrcp.pop %v865
    %v888 = vmul.f32 %v848, %v887
    %v889 = vrcp.pop %v868
    %v890 = vmul.f32 %v850, %v889
    %v891 = vrcp.pop %v871
    %v892 = vmul.f32 %v852, %v891
    %v893 = vrcp.pop %v874
    %v894 = vmul.f32 %v854, %v893
    %v895 = vrcp.pop %v877
    %v896 = vmul.f32 %v856, %v895
    %v897 = vrcp.pop %v880
    %v898 = vmul.f32 %v858, %v897
    %v899 = vrcp.pop %v883
    %v900 = vmul.f32 %v860, %v899
    %v901 = vrcp.pop %v886
    %v902 = vmul.f32 %v862, %v901
    %v903 = vpack.c.bf16 %v888, %v888
    %v904 = vpack.c.bf16 %v890, %v890
    %v905 = vpack.c.bf16 %v892, %v892
    %v906 = vpack.c.bf16 %v894, %v894
    %v907 = vpack.c.bf16 %v896, %v896
    %v908 = vpack.c.bf16 %v898, %v898
    %v909 = vpack.c.bf16 %v900, %v900
    %v910 = vpack.c.bf16 %v902, %v902
    %911 = vrot.lane.b32.xlu0 %v414, 64
    %v912 = vpop.permute.xlu0 %911
    %v914 = vsel %vm425, %v903, 0
    %v917 = vsel %vm110, %v912, 0
    %919 = vmatprep.subr.bf16.mxu0 0
    %920 = vmatpush1.bf16.msra.mxu0 %v917
    %921 = vmatprep.subr.bf16.mxu0 0
    %922 = vmatpush1.bf16.msra.mxu0 0
    %923 = vmatprep.subr.bf16.mxu0 0
    %924 = vmatpush1.bf16.msra.mxu0 0
    %925 = vmatprep.subr.bf16.mxu0 0
    %926 = vmatpush1.bf16.msra.mxu0 0
    %927 = vmatprep.subr.bf16.mxu0 0
    %928 = vmatpush1.bf16.msra.mxu0 0
    %929 = vmatprep.subr.bf16.mxu0 0
    %930 = vmatpush1.bf16.msra.mxu0 0
    %931 = vmatprep.subr.bf16.mxu0 0
    %932 = vmatpush1.bf16.msra.mxu0 0
    %933 = vmatprep.subr.bf16.mxu0 0
    %934 = vmatpush1.bf16.msra.mxu0 0
    %935 = vmatprep.subr.bf16.mxu0 0
    %936 = vmatpush1.bf16.msra.mxu0 0
    %937 = vmatprep.subr.bf16.mxu0 0
    %938 = vmatpush1.bf16.msra.mxu0 0
    %939 = vmatprep.subr.bf16.mxu0 0
    %940 = vmatpush1.bf16.msra.mxu0 0
    %941 = vmatprep.subr.bf16.mxu0 0
    %942 = vmatpush1.bf16.msra.mxu0 0
    %943 = vmatprep.subr.bf16.mxu0 0
    %944 = vmatpush1.bf16.msra.mxu0 0
    %945 = vmatprep.subr.bf16.mxu0 0
    %946 = vmatpush1.bf16.msra.mxu0 0
    %947 = vmatprep.subr.bf16.mxu0 0
    %948 = vmatpush1.bf16.msra.mxu0 0
    %949 = vmatprep.subr.bf16.mxu0 0
    %950 = vmatpush1.bf16.msra.mxu0 0
    %951 = vmatprep.mubr.bf16.mxu0 0
    %952 = vmatmul.mubr.bf16.gmra.mrb[0].mxu0 %v914
    %v953 = vpop.f32.mrb[0].mxu0
    %v954 = vadd.f32 0.0, %v953
    %v955 = vpop.f32.mrb[0].mxu0
    %v956 = vpop.f32.mrb[0].mxu0
    %v957 = vpop.f32.mrb[0].mxu0
    %958 = vdwg.mxu0
    %959 = vrot.lane.b32.xlu0 %v415, 64
    %v960 = vpop.permute.xlu0 %959
    %v962 = vsel %vm425, %v904, 0
    %v965 = vsel %vm110, %v960, 0
    %967 = vmatprep.subr.bf16.mxu0 0
    %968 = vmatpush1.bf16.msra.mxu0 %v965
    %969 = vmatprep.subr.bf16.mxu0 0
    %970 = vmatpush1.bf16.msra.mxu0 0
    %971 = vmatprep.subr.bf16.mxu0 0
    %972 = vmatpush1.bf16.msra.mxu0 0
    %973 = vmatprep.subr.bf16.mxu0 0
    %974 = vmatpush1.bf16.msra.mxu0 0
    %975 = vmatprep.subr.bf16.mxu0 0
    %976 = vmatpush1.bf16.msra.mxu0 0
    %977 = vmatprep.subr.bf16.mxu0 0
    %978 = vmatpush1.bf16.msra.mxu0 0
    %979 = vmatprep.subr.bf16.mxu0 0
    %980 = vmatpush1.bf16.msra.mxu0 0
    %981 = vmatprep.subr.bf16.mxu0 0
    %982 = vmatpush1.bf16.msra.mxu0 0
    %983 = vmatprep.subr.bf16.mxu0 0
    %984 = vmatpush1.bf16.msra.mxu0 0
    %985 = vmatprep.subr.bf16.mxu0 0
    %986 = vmatpush1.bf16.msra.mxu0 0
    %987 = vmatprep.subr.bf16.mxu0 0
    %988 = vmatpush1.bf16.msra.mxu0 0
    %989 = vmatprep.subr.bf16.mxu0 0
    %990 = vmatpush1.bf16.msra.mxu0 0
    %991 = vmatprep.subr.bf16.mxu0 0
    %992 = vmatpush1.bf16.msra.mxu0 0
    %993 = vmatprep.subr.bf16.mxu0 0
    %994 = vmatpush1.bf16.msra.mxu0 0
    %995 = vmatprep.subr.bf16.mxu0 0
    %996 = vmatpush1.bf16.msra.mxu0 0
    %997 = vmatprep.subr.bf16.mxu0 0
    %998 = vmatpush1.bf16.msra.mxu0 0
    %999 = vmatprep.mubr.bf16.mxu0 0
    %1000 = vmatmul.mubr.bf16.gmra.mrb[0].mxu0 %v962
    %v1001 = vpop.f32.mrb[0].mxu0
    %v1002 = vadd.f32 0.0, %v1001
    %v1003 = vpop.f32.mrb[0].mxu0
    %v1004 = vpop.f32.mrb[0].mxu0
    %v1005 = vpop.f32.mrb[0].mxu0
    %1006 = vdwg.mxu0
    %1007 = vrot.lane.b32.xlu0 %v416, 64
    %v1008 = vpop.permute.xlu0 %1007
    %v1010 = vsel %vm425, %v905, 0
    %v1013 = vsel %vm110, %v1008, 0
    %1015 = vmatprep.subr.bf16.mxu0 0
    %1016 = vmatpush1.bf16.msra.mxu0 %v1013
    %1017 = vmatprep.subr.bf16.mxu0 0
    %1018 = vmatpush1.bf16.msra.mxu0 0
    %1019 = vmatprep.subr.bf16.mxu0 0
    %1020 = vmatpush1.bf16.msra.mxu0 0
    %1021 = vmatprep.subr.bf16.mxu0 0
    %1022 = vmatpush1.bf16.msra.mxu0 0
    %1023 = vmatprep.subr.bf16.mxu0 0
    %1024 = vmatpush1.bf16.msra.mxu0 0
    %1025 = vmatprep.subr.bf16.mxu0 0
    %1026 = vmatpush1.bf16.msra.mxu0 0
    %1027 = vmatprep.subr.bf16.mxu0 0
    %1028 = vmatpush1.bf16.msra.mxu0 0
    %1029 = vmatprep.subr.bf16.mxu0 0
    %1030 = vmatpush1.bf16.msra.mxu0 0
    %1031 = vmatprep.subr.bf16.mxu0 0
    %1032 = vmatpush1.bf16.msra.mxu0 0
    %1033 = vmatprep.subr.bf16.mxu0 0
    %1034 = vmatpush1.bf16.msra.mxu0 0
    %1035 = vmatprep.subr.bf16.mxu0 0
    %1036 = vmatpush1.bf16.msra.mxu0 0
    %1037 = vmatprep.subr.bf16.mxu0 0
    %1038 = vmatpush1.bf16.msra.mxu0 0
    %1039 = vmatprep.subr.bf16.mxu0 0
    %1040 = vmatpush1.bf16.msra.mxu0 0
    %1041 = vmatprep.subr.bf16.mxu0 0
    %1042 = vmatpush1.bf16.msra.mxu0 0
    %1043 = vmatprep.subr.bf16.mxu0 0
    %1044 = vmatpush1.bf16.msra.mxu0 0
    %1045 = vmatprep.subr.bf16.mxu0 0
    %1046 = vmatpush1.bf16.msra.mxu0 0
    %1047 = vmatprep.mubr.bf16.mxu0 0
    %1048 = vmatmul.mubr.bf16.gmra.mrb[0].mxu0 %v1010
    %v1049 = vpop.f32.mrb[0].mxu0
    %v1050 = vadd.f32 0.0, %v1049
    %v1051 = vpop.f32.mrb[0].mxu0
    %v1052 = vpop.f32.mrb[0].mxu0
    %v1053 = vpop.f32.mrb[0].mxu0
    %1054 = vdwg.mxu0
    %1055 = vrot.lane.b32.xlu0 %v417, 64
    %v1056 = vpop.permute.xlu0 %1055
    %v1058 = vsel %vm425, %v906, 0
    %v1061 = vsel %vm110, %v1056, 0
    %1063 = vmatprep.subr.bf16.mxu0 0
    %1064 = vmatpush1.bf16.msra.mxu0 %v1061
    %1065 = vmatprep.subr.bf16.mxu0 0
    %1066 = vmatpush1.bf16.msra.mxu0 0
    %1067 = vmatprep.subr.bf16.mxu0 0
    %1068 = vmatpush1.bf16.msra.mxu0 0
    %1069 = vmatprep.subr.bf16.mxu0 0
    %1070 = vmatpush1.bf16.msra.mxu0 0
    %1071 = vmatprep.subr.bf16.mxu0 0
    %1072 = vmatpush1.bf16.msra.mxu0 0
    %1073 = vmatprep.subr.bf16.mxu0 0
    %1074 = vmatpush1.bf16.msra.mxu0 0
    %1075 = vmatprep.subr.bf16.mxu0 0
    %1076 = vmatpush1.bf16.msra.mxu0 0
    %1077 = vmatprep.subr.bf16.mxu0 0
    %1078 = vmatpush1.bf16.msra.mxu0 0
    %1079 = vmatprep.subr.bf16.mxu0 0
    %1080 = vmatpush1.bf16.msra.mxu0 0
    %1081 = vmatprep.subr.bf16.mxu0 0
    %1082 = vmatpush1.bf16.msra.mxu0 0
    %1083 = vmatprep.subr.bf16.mxu0 0
    %1084 = vmatpush1.bf16.msra.mxu0 0
    %1085 = vmatprep.subr.bf16.mxu0 0
    %1086 = vmatpush1.bf16.msra.mxu0 0
    %1087 = vmatprep.subr.bf16.mxu0 0
    %1088 = vmatpush1.bf16.msra.mxu0 0
    %1089 = vmatprep.subr.bf16.mxu0 0
    %1090 = vmatpush1.bf16.msra.mxu0 0
    %1091 = vmatprep.subr.bf16.mxu0 0
    %1092 = vmatpush1.bf16.msra.mxu0 0
    %1093 = vmatprep.subr.bf16.mxu0 0
    %1094 = vmatpush1.bf16.msra.mxu0 0
    %1095 = vmatprep.mubr.bf16.mxu0 0
    %1096 = vmatmul.mubr.bf16.gmra.mrb[0].mxu0 %v1058
    %v1097 = vpop.f32.mrb[0].mxu0
    %v1098 = vadd.f32 0.0, %v1097
    %v1099 = vpop.f32.mrb[0].mxu0
    %v1100 = vpop.f32.mrb[0].mxu0
    %v1101 = vpop.f32.mrb[0].mxu0
    %1102 = vdwg.mxu0
    %1103 = vrot.lane.b32.xlu0 %v418, 64
    %v1104 = vpop.permute.xlu0 %1103
    %v1106 = vsel %vm425, %v907, 0
    %v1109 = vsel %vm110, %v1104, 0
    %1111 = vmatprep.subr.bf16.mxu0 0
    %1112 = vmatpush1.bf16.msra.mxu0 %v1109
    %1113 = vmatprep.subr.bf16.mxu0 0
    %1114 = vmatpush1.bf16.msra.mxu0 0
    %1115 = vmatprep.subr.bf16.mxu0 0
    %1116 = vmatpush1.bf16.msra.mxu0 0
    %1117 = vmatprep.subr.bf16.mxu0 0
    %1118 = vmatpush1.bf16.msra.mxu0 0
    %1119 = vmatprep.subr.bf16.mxu0 0
    %1120 = vmatpush1.bf16.msra.mxu0 0
    %1121 = vmatprep.subr.bf16.mxu0 0
    %1122 = vmatpush1.bf16.msra.mxu0 0
    %1123 = vmatprep.subr.bf16.mxu0 0
    %1124 = vmatpush1.bf16.msra.mxu0 0
    %1125 = vmatprep.subr.bf16.mxu0 0
    %1126 = vmatpush1.bf16.msra.mxu0 0
    %1127 = vmatprep.subr.bf16.mxu0 0
    %1128 = vmatpush1.bf16.msra.mxu0 0
    %1129 = vmatprep.subr.bf16.mxu0 0
    %1130 = vmatpush1.bf16.msra.mxu0 0
    %1131 = vmatprep.subr.bf16.mxu0 0
    %1132 = vmatpush1.bf16.msra.mxu0 0
    %1133 = vmatprep.subr.bf16.mxu0 0
    %1134 = vmatpush1.bf16.msra.mxu0 0
    %1135 = vmatprep.subr.bf16.mxu0 0
    %1136 = vmatpush1.bf16.msra.mxu0 0
    %1137 = vmatprep.subr.bf16.mxu0 0
    %1138 = vmatpush1.bf16.msra.mxu0 0
    %1139 = vmatprep.subr.bf16.mxu0 0
    %1140 = vmatpush1.bf16.msra.mxu0 0
    %1141 = vmatprep.subr.bf16.mxu0 0
    %1142 = vmatpush1.bf16.msra.mxu0 0
    %1143 = vmatprep.mubr.bf16.mxu0 0
    %1144 = vmatmul.mubr.bf16.gmra.mrb[0].mxu0 %v1106
    %v1145 = vpop.f32.mrb[0].mxu0
    %v1146 = vadd.f32 0.0, %v1145
    %v1147 = vpop.f32.mrb[0].mxu0
    %v1148 = vpop.f32.mrb[0].mxu0
    %v1149 = vpop.f32.mrb[0].mxu0
    %1150 = vdwg.mxu0
    %1151 = vrot.lane.b32.xlu0 %v419, 64
    %v1152 = vpop.permute.xlu0 %1151
    %v1154 = vsel %vm425, %v908, 0
    %v1157 = vsel %vm110, %v1152, 0
    %1159 = vmatprep.subr.bf16.mxu0 0
    %1160 = vmatpush1.bf16.msra.mxu0 %v1157
    %1161 = vmatprep.subr.bf16.mxu0 0
    %1162 = vmatpush1.bf16.msra.mxu0 0
    %1163 = vmatprep.subr.bf16.mxu0 0
    %1164 = vmatpush1.bf16.msra.mxu0 0
    %1165 = vmatprep.subr.bf16.mxu0 0
    %1166 = vmatpush1.bf16.msra.mxu0 0
    %1167 = vmatprep.subr.bf16.mxu0 0
    %1168 = vmatpush1.bf16.msra.mxu0 0
    %1169 = vmatprep.subr.bf16.mxu0 0
    %1170 = vmatpush1.bf16.msra.mxu0 0
    %1171 = vmatprep.subr.bf16.mxu0 0
    %1172 = vmatpush1.bf16.msra.mxu0 0
    %1173 = vmatprep.subr.bf16.mxu0 0
    %1174 = vmatpush1.bf16.msra.mxu0 0
    %1175 = vmatprep.subr.bf16.mxu0 0
    %1176 = vmatpush1.bf16.msra.mxu0 0
    %1177 = vmatprep.subr.bf16.mxu0 0
    %1178 = vmatpush1.bf16.msra.mxu0 0
    %1179 = vmatprep.subr.bf16.mxu0 0
    %1180 = vmatpush1.bf16.msra.mxu0 0
    %1181 = vmatprep.subr.bf16.mxu0 0
    %1182 = vmatpush1.bf16.msra.mxu0 0
    %1183 = vmatprep.subr.bf16.mxu0 0
    %1184 = vmatpush1.bf16.msra.mxu0 0
    %1185 = vmatprep.subr.bf16.mxu0 0
    %1186 = vmatpush1.bf16.msra.mxu0 0
    %1187 = vmatprep.subr.bf16.mxu0 0
    %1188 = vmatpush1.bf16.msra.mxu0 0
    %1189 = vmatprep.subr.bf16.mxu0 0
    %1190 = vmatpush1.bf16.msra.mxu0 0
    %1191 = vmatprep.mubr.bf16.mxu0 0
    %1192 = vmatmul.mubr.bf16.gmra.mrb[0].mxu0 %v1154
    %v1193 = vpop.f32.mrb[0].mxu0
    %v1194 = vadd.f32 0.0, %v1193
    %v1195 = vpop.f32.mrb[0].mxu0
    %v1196 = vpop.f32.mrb[0].mxu0
    %v1197 = vpop.f32.mrb[0].mxu0
    %1198 = vdwg.mxu0
    %1199 = vrot.lane.b32.xlu0 %v420, 64
    %v1200 = vpop.permute.xlu0 %1199
    %v1202 = vsel %vm425, %v909, 0
    %v1205 = vsel %vm110, %v1200, 0
    %1207 = vmatprep.subr.bf16.mxu0 0
    %1208 = vmatpush1.bf16.msra.mxu0 %v1205
    %1209 = vmatprep.subr.bf16.mxu0 0
    %1210 = vmatpush1.bf16.msra.mxu0 0
    %1211 = vmatprep.subr.bf16.mxu0 0
    %1212 = vmatpush1.bf16.msra.mxu0 0
    %1213 = vmatprep.subr.bf16.mxu0 0
    %1214 = vmatpush1.bf16.msra.mxu0 0
    %1215 = vmatprep.subr.bf16.mxu0 0
    %1216 = vmatpush1.bf16.msra.mxu0 0
    %1217 = vmatprep.subr.bf16.mxu0 0
    %1218 = vmatpush1.bf16.msra.mxu0 0
    %1219 = vmatprep.subr.bf16.mxu0 0
    %1220 = vmatpush1.bf16.msra.mxu0 0
    %1221 = vmatprep.subr.bf16.mxu0 0
    %1222 = vmatpush1.bf16.msra.mxu0 0
    %1223 = vmatprep.subr.bf16.mxu0 0
    %1224 = vmatpush1.bf16.msra.mxu0 0
    %1225 = vmatprep.subr.bf16.mxu0 0
    %1226 = vmatpush1.bf16.msra.mxu0 0
    %1227 = vmatprep.subr.bf16.mxu0 0
    %1228 = vmatpush1.bf16.msra.mxu0 0
    %1229 = vmatprep.subr.bf16.mxu0 0
    %1230 = vmatpush1.bf16.msra.mxu0 0
    %1231 = vmatprep.subr.bf16.mxu0 0
    %1232 = vmatpush1.bf16.msra.mxu0 0
    %1233 = vmatprep.subr.bf16.mxu0 0
    %1234 = vmatpush1.bf16.msra.mxu0 0
    %1235 = vmatprep.subr.bf16.mxu0 0
    %1236 = vmatpush1.bf16.msra.mxu0 0
    %1237 = vmatprep.subr.bf16.mxu0 0
    %1238 = vmatpush1.bf16.msra.mxu0 0
    %1239 = vmatprep.mubr.bf16.mxu0 0
    %1240 = vmatmul.mubr.bf16.gmra.mrb[0].mxu0 %v1202
    %v1241 = vpop.f32.mrb[0].mxu0
    %v1242 = vadd.f32 0.0, %v1241
    %v1243 = vpop.f32.mrb[0].mxu0
    %v1244 = vpop.f32.mrb[0].mxu0
    %v1245 = vpop.f32.mrb[0].mxu0
    %1246 = vdwg.mxu0
    %1247 = vrot.lane.b32.xlu0 %v421, 64
    %v1248 = vpop.permute.xlu0 %1247
    %v1250 = vsel %vm425, %v910, 0
    %v1253 = vsel %vm110, %v1248, 0
    %1255 = vmatprep.subr.bf16.mxu0 0
    %1256 = vmatpush1.bf16.msra.mxu0 %v1253
    %1257 = vmatprep.subr.bf16.mxu0 0
    %1258 = vmatpush1.bf16.msra.mxu0 0
    %1259 = vmatprep.subr.bf16.mxu0 0
    %1260 = vmatpush1.bf16.msra.mxu0 0
    %1261 = vmatprep.subr.bf16.mxu0 0
    %1262 = vmatpush1.bf16.msra.mxu0 0
    %1263 = vmatprep.subr.bf16.mxu0 0
    %1264 = vmatpush1.bf16.msra.mxu0 0
    %1265 = vmatprep.subr.bf16.mxu0 0
    %1266 = vmatpush1.bf16.msra.mxu0 0
    %1267 = vmatprep.subr.bf16.mxu0 0
    %1268 = vmatpush1.bf16.msra.mxu0 0
    %1269 = vmatprep.subr.bf16.mxu0 0
    %1270 = vmatpush1.bf16.msra.mxu0 0
    %1271 = vmatprep.subr.bf16.mxu0 0
    %1272 = vmatpush1.bf16.msra.mxu0 0
    %1273 = vmatprep.subr.bf16.mxu0 0
    %1274 = vmatpush1.bf16.msra.mxu0 0
    %1275 = vmatprep.subr.bf16.mxu0 0
    %1276 = vmatpush1.bf16.msra.mxu0 0
    %1277 = vmatprep.subr.bf16.mxu0 0
    %1278 = vmatpush1.bf16.msra.mxu0 0
    %1279 = vmatprep.subr.bf16.mxu0 0
    %1280 = vmatpush1.bf16.msra.mxu0 0
    %1281 = vmatprep.subr.bf16.mxu0 0
    %1282 = vmatpush1.bf16.msra.mxu0 0
    %1283 = vmatprep.subr.bf16.mxu0 0
    %1284 = vmatpush1.bf16.msra.mxu0 0
    %1285 = vmatprep.subr.bf16.mxu0 0
    %1286 = vmatpush1.bf16.msra.mxu0 0
    %1287 = vmatprep.mubr.bf16.mxu0 0
    %1288 = vmatmul.mubr.bf16.gmra.mrb[0].mxu0 %v1250
    %v1289 = vpop.f32.mrb[0].mxu0
    %v1290 = vadd.f32 0.0, %v1289
    %v1291 = vpop.f32.mrb[0].mxu0
    %v1292 = vpop.f32.mrb[0].mxu0
    %v1293 = vpop.f32.mrb[0].mxu0
    %1294 = vdwg.mxu0
    %v1295 = vpack.c.bf16 %v1002, %v954
    %v1296 = vpack.c.bf16 %v1098, %v1050
    %v1297 = vpack.c.bf16 %v1194, %v1146
    %v1298 = vpack.c.bf16 %v1290, %v1242
    %v1299 = vld [vmem:[%s7] sm:$0xf]
    %v1300 = vld [vmem:[%s7 + $0x4] sm:$0xf]
    %v1301 = vld [vmem:[%s7 + $0x8] sm:$0xf]
    %v1302 = vld [vmem:[%s7 + $0xc] sm:$0xf]
    %v1304 = vsel %vm425, %v1295, 0
    %v1307 = vsel %vm110, %v1299, 0
    %1309 = vmatprep.subr.bf16.mxu0 0
    %1310 = vmatpush1.bf16.msra.mxu0 %v1307
    %1311 = vmatprep.subr.bf16.mxu0 0
    %1312 = vmatpush1.bf16.msra.mxu0 0
    %1313 = vmatprep.subr.bf16.mxu0 0
    %1314 = vmatpush1.bf16.msra.mxu0 0
    %1315 = vmatprep.subr.bf16.mxu0 0
    %1316 = vmatpush1.bf16.msra.mxu0 0
    %1317 = vmatprep.subr.bf16.mxu0 0
    %1318 = vmatpush1.bf16.msra.mxu0 0
    %1319 = vmatprep.subr.bf16.mxu0 0
    %1320 = vmatpush1.bf16.msra.mxu0 0
    %1321 = vmatprep.subr.bf16.mxu0 0
    %1322 = vmatpush1.bf16.msra.mxu0 0
    %1323 = vmatprep.subr.bf16.mxu0 0
    %1324 = vmatpush1.bf16.msra.mxu0 0
    %1325 = vmatprep.subr.bf16.mxu0 0
    %1326 = vmatpush1.bf16.msra.mxu0 0
    %1327 = vmatprep.subr.bf16.mxu0 0
    %1328 = vmatpush1.bf16.msra.mxu0 0
    %1329 = vmatprep.subr.bf16.mxu0 0
    %1330 = vmatpush1.bf16.msra.mxu0 0
    %1331 = vmatprep.subr.bf16.mxu0 0
    %1332 = vmatpush1.bf16.msra.mxu0 0
    %1333 = vmatprep.subr.bf16.mxu0 0
    %1334 = vmatpush1.bf16.msra.mxu0 0
    %1335 = vmatprep.subr.bf16.mxu0 0
    %1336 = vmatpush1.bf16.msra.mxu0 0
    %1337 = vmatprep.subr.bf16.mxu0 0
    %1338 = vmatpush1.bf16.msra.mxu0 0
    %1339 = vmatprep.subr.bf16.mxu0 0
    %1340 = vmatpush1.bf16.msra.mxu0 0
    %1341 = vmatprep.mubr.bf16.mxu0 0
    %1342 = vmatmul.mubr.bf16.gmra.mrb[0].mxu0 %v1304
    %v1343 = vpop.f32.mrb[0].mxu0
    %v1344 = vadd.f32 0.0, %v1343
    %v1345 = vpop.f32.mrb[0].mxu0
    %v1346 = vpop.f32.mrb[0].mxu0
    %v1347 = vadd.f32 0.0, %v1346
    %v1348 = vpop.f32.mrb[0].mxu0
    %1349 = vdwg.mxu0
    %v1351 = vsel %vm425, %v1296, 0
    %v1354 = vsel %vm110, %v1300, 0
    %1356 = vmatprep.subr.bf16.mxu0 0
    %1357 = vmatpush1.bf16.msra.mxu0 %v1354
    %1358 = vmatprep.subr.bf16.mxu0 0
    %1359 = vmatpush1.bf16.msra.mxu0 0
    %1360 = vmatprep.subr.bf16.mxu0 0
    %1361 = vmatpush1.bf16.msra.mxu0 0
    %1362 = vmatprep.subr.bf16.mxu0 0
    %1363 = vmatpush1.bf16.msra.mxu0 0
    %1364 = vmatprep.subr.bf16.mxu0 0
    %1365 = vmatpush1.bf16.msra.mxu0 0
    %1366 = vmatprep.subr.bf16.mxu0 0
    %1367 = vmatpush1.bf16.msra.mxu0 0
    %1368 = vmatprep.subr.bf16.mxu0 0
    %1369 = vmatpush1.bf16.msra.mxu0 0
    %1370 = vmatprep.subr.bf16.mxu0 0
    %1371 = vmatpush1.bf16.msra.mxu0 0
    %1372 = vmatprep.subr.bf16.mxu0 0
    %1373 = vmatpush1.bf16.msra.mxu0 0
    %1374 = vmatprep.subr.bf16.mxu0 0
    %1375 = vmatpush1.bf16.msra.mxu0 0
    %1376 = vmatprep.subr.bf16.mxu0 0
    %1377 = vmatpush1.bf16.msra.mxu0 0
    %1378 = vmatprep.subr.bf16.mxu0 0
    %1379 = vmatpush1.bf16.msra.mxu0 0
    %1380 = vmatprep.subr.bf16.mxu0 0
    %1381 = vmatpush1.bf16.msra.mxu0 0
    %1382 = vmatprep.subr.bf16.mxu0 0
    %1383 = vmatpush1.bf16.msra.mxu0 0
    %1384 = vmatprep.subr.bf16.mxu0 0
    %1385 = vmatpush1.bf16.msra.mxu0 0
    %1386 = vmatprep.subr.bf16.mxu0 0
    %1387 = vmatpush1.bf16.msra.mxu0 0
    %1388 = vmatprep.mubr.bf16.mxu0 0
    %1389 = vmatmul.mubr.bf16.gmra.mrb[0].mxu0 %v1351
    %v1390 = vpop.f32.mrb[0].mxu0
    %v1391 = vadd.f32 0.0, %v1390
    %v1392 = vpop.f32.mrb[0].mxu0
    %v1393 = vpop.f32.mrb[0].mxu0
    %v1394 = vadd.f32 0.0, %v1393
    %v1395 = vpop.f32.mrb[0].mxu0
    %1396 = vdwg.mxu0
    %v1398 = vsel %vm425, %v1297, 0
    %v1401 = vsel %vm110, %v1301, 0
    %1403 = vmatprep.subr.bf16.mxu0 0
    %1404 = vmatpush1.bf16.msra.mxu0 %v1401
    %1405 = vmatprep.subr.bf16.mxu0 0
    %1406 = vmatpush1.bf16.msra.mxu0 0
    %1407 = vmatprep.subr.bf16.mxu0 0
    %1408 = vmatpush1.bf16.msra.mxu0 0
    %1409 = vmatprep.subr.bf16.mxu0 0
    %1410 = vmatpush1.bf16.msra.mxu0 0
    %1411 = vmatprep.subr.bf16.mxu0 0
    %1412 = vmatpush1.bf16.msra.mxu0 0
    %1413 = vmatprep.subr.bf16.mxu0 0
    %1414 = vmatpush1.bf16.msra.mxu0 0
    %1415 = vmatprep.subr.bf16.mxu0 0
    %1416 = vmatpush1.bf16.msra.mxu0 0
    %1417 = vmatprep.subr.bf16.mxu0 0
    %1418 = vmatpush1.bf16.msra.mxu0 0
    %1419 = vmatprep.subr.bf16.mxu0 0
    %1420 = vmatpush1.bf16.msra.mxu0 0
    %1421 = vmatprep.subr.bf16.mxu0 0
    %1422 = vmatpush1.bf16.msra.mxu0 0
    %1423 = vmatprep.subr.bf16.mxu0 0
    %1424 = vmatpush1.bf16.msra.mxu0 0
    %1425 = vmatprep.subr.bf16.mxu0 0
    %1426 = vmatpush1.bf16.msra.mxu0 0
    %1427 = vmatprep.subr.bf16.mxu0 0
    %1428 = vmatpush1.bf16.msra.mxu0 0
    %1429 = vmatprep.subr.bf16.mxu0 0
    %1430 = vmatpush1.bf16.msra.mxu0 0
    %1431 = vmatprep.subr.bf16.mxu0 0
    %1432 = vmatpush1.bf16.msra.mxu0 0
    %1433 = vmatprep.subr.bf16.mxu0 0
    %1434 = vmatpush1.bf16.msra.mxu0 0
    %1435 = vmatprep.mubr.bf16.mxu0 0
    %1436 = vmatmul.mubr.bf16.gmra.mrb[0].mxu0 %v1398
    %v1437 = vpop.f32.mrb[0].mxu0
    %v1438 = vadd.f32 0.0, %v1437
    %v1439 = vpop.f32.mrb[0].mxu0
    %v1440 = vpop.f32.mrb[0].mxu0
    %v1441 = vadd.f32 0.0, %v1440
    %v1442 = vpop.f32.mrb[0].mxu0
    %1443 = vdwg.mxu0
    %v1445 = vsel %vm425, %v1298, 0
    %v1448 = vsel %vm110, %v1302, 0
    %1450 = vmatprep.subr.bf16.mxu0 0
    %1451 = vmatpush1.bf16.msra.mxu0 %v1448
    %1452 = vmatprep.subr.bf16.mxu0 0
    %1453 = vmatpush1.bf16.msra.mxu0 0
    %1454 = vmatprep.subr.bf16.mxu0 0
    %1455 = vmatpush1.bf16.msra.mxu0 0
    %1456 = vmatprep.subr.bf16.mxu0 0
    %1457 = vmatpush1.bf16.msra.mxu0 0
    %1458 = vmatprep.subr.bf16.mxu0 0
    %1459 = vmatpush1.bf16.msra.mxu0 0
    %1460 = vmatprep.subr.bf16.mxu0 0
    %1461 = vmatpush1.bf16.msra.mxu0 0
    %1462 = vmatprep.subr.bf16.mxu0 0
    %1463 = vmatpush1.bf16.msra.mxu0 0
    %1464 = vmatprep.subr.bf16.mxu0 0
    %1465 = vmatpush1.bf16.msra.mxu0 0
    %1466 = vmatprep.subr.bf16.mxu0 0
    %1467 = vmatpush1.bf16.msra.mxu0 0
    %1468 = vmatprep.subr.bf16.mxu0 0
    %1469 = vmatpush1.bf16.msra.mxu0 0
    %1470 = vmatprep.subr.bf16.mxu0 0
    %1471 = vmatpush1.bf16.msra.mxu0 0
    %1472 = vmatprep.subr.bf16.mxu0 0
    %1473 = vmatpush1.bf16.msra.mxu0 0
    %1474 = vmatprep.subr.bf16.mxu0 0
    %1475 = vmatpush1.bf16.msra.mxu0 0
    %1476 = vmatprep.subr.bf16.mxu0 0
    %1477 = vmatpush1.bf16.msra.mxu0 0
    %1478 = vmatprep.subr.bf16.mxu0 0
    %1479 = vmatpush1.bf16.msra.mxu0 0
    %1480 = vmatprep.subr.bf16.mxu0 0
    %1481 = vmatpush1.bf16.msra.mxu0 0
    %1482 = vmatprep.mubr.bf16.mxu0 0
    %1483 = vmatmul.mubr.bf16.gmra.mrb[0].mxu0 %v1445
    %v1484 = vpop.f32.mrb[0].mxu0
    %v1485 = vadd.f32 0.0, %v1484
    %v1486 = vpop.f32.mrb[0].mxu0
    %v1487 = vpop.f32.mrb[0].mxu0
    %v1488 = vadd.f32 0.0, %v1487
    %v1489 = vpop.f32.mrb[0].mxu0
    %1490 = vdwg.mxu0
    %v1491 = vlaneseq
    %v1492 = vshrl.u32 %v1491, 7
    %v1493 = vsub.s32 0, %v1492
    %v1494 = vrot.slane %v295, %v1493
    %v1495 = vadd.f32 %v1494, %v1344
    %v1496 = vadd.f32 %v1494, %v1347
    %v1497 = vadd.f32 %v1495, %v1391
    %v1498 = vadd.f32 %v1496, %v1394
    %v1499 = vadd.f32 %v1497, %v1438
    %v1500 = vadd.f32 %v1498, %v1441
    %v1501 = vadd.f32 %v1499, %v1485
    %v1502 = vadd.f32 %v1500, %v1488
    %v1503 = vadd.f32 %v254, %v1501
    %v1504 = vadd.f32 %v255, %v1502
    %v1505 = vsel %vm216, %v1503, 0.0
    %1506 = vadd.xlane.f32.xlu0 %v1505
    %v1507 = vpop.xlane.xlu0 %1506
    %v1508 = vsel %vm216, %v1504, 0.0
    %1509 = vadd.xlane.f32.xlu0 %v1508
    %v1510 = vpop.xlane.xlu0 %1509
    %v1511 = vmul.f32 %v1507, %v223
    %v1512 = vmul.f32 %v1510, %v223
    %v1513 = vsub.f32 %v1503, %v1511
    %v1514 = vsub.f32 %v1504, %v1512
    %v1515 = vmul.f32 %v1513, %v1513
    %v1516 = vmul.f32 %v1514, %v1514
    %v1517 = vsel %vm216, %v1515, 0.0
    %1518 = vadd.xlane.f32.xlu0 %v1517
    %v1519 = vpop.xlane.xlu0 %1518
    %v1520 = vsel %vm216, %v1516, 0.0
    %1521 = vadd.xlane.f32.xlu0 %v1520
    %v1522 = vpop.xlane.xlu0 %1521
    %v1523 = vmul.f32 %v1519, %v223
    %v1524 = vmul.f32 %v1522, %v223
    %v1525 = vadd.f32 %v1523, 1e-12
    %v1526 = vadd.f32 %v1524, 1e-12
    %v1527 = vrsqrt.pop %v1525
    %v1528 = vrsqrt.pop %v1526
    %v1529 = vmul.f32 %v1513, %v1527
    %v1530 = vmul.f32 %v1514, %v1528
    %v1531 = vlaneseq
    %v1532 = vshrl.u32 %v1531, 7
    %v1533 = vsub.s32 1, %v1532
    %v1534 = vrot.slane %v295, %v1533
    %v1535 = vmul.f32 %v1529, %v1534
    %v1536 = vmul.f32 %v1530, %v1534
    %v1537 = vlaneseq
    %v1538 = vshrl.u32 %v1537, 7
    %v1539 = vsub.s32 2, %v1538
    %v1540 = vrot.slane %v295, %v1539
    %v1541 = vadd.f32 %v1535, %v1540
    %v1542 = vadd.f32 %v1536, %v1540
    %v1543 = vpack.c.bf16 %v1542, %v1541
    %v1544 = vld [vmem:[%s9] sm:$0xf]
    %v1545 = vld [vmem:[%s9 + $0x4] sm:$0xf]
    %v1546 = vld [vmem:[%s9 + $0x8] sm:$0xf]
    %v1547 = vld [vmem:[%s9 + $0xc] sm:$0xf]
    %v1548 = vld [vmem:[%s10] sm:$0x1]
    %v1550 = vlaneseq
    %v1551 = vshrl.u32 %v1550, 7
    %v1552 = vsub.s32 0, %v1551
    %v1553 = vrot.slane %v1548, %v1552
    %v1559 = vunpack.c.l.b16 %v1544
    %v1560 = vunpack.c.l.b16 %v1545
    %v1561 = vunpack.c.l.b16 %v1546
    %v1562 = vunpack.c.l.b16 %v1547
    %v1563 = vpack.c.b16 %v1560, %v1559
    %v1564 = vpack.c.b16 %v1562, %v1561
    %v1568 = vsel %vm216, %v1543, 0
    %1570 = vmatprep.subr.bf16.mxu0 0
    %1571 = vmatpush1.bf16.msra.mxu0 %v1563
    %1572 = vmatprep.subr.bf16.mxu0 0
    %1573 = vmatpush1.bf16.msra.mxu0 %v1564
    %1574 = vmatprep.subr.bf16.mxu0 0
    %1575 = vmatpush1.bf16.msra.mxu0 0
    %1576 = vmatprep.subr.bf16.mxu0 0
    %1577 = vmatpush1.bf16.msra.mxu0 0
    %1578 = vmatprep.subr.bf16.mxu0 0
    %1579 = vmatpush1.bf16.msra.mxu0 0
    %1580 = vmatprep.subr.bf16.mxu0 0
    %1581 = vmatpush1.bf16.msra.mxu0 0
    %1582 = vmatprep.subr.bf16.mxu0 0
    %1583 = vmatpush1.bf16.msra.mxu0 0
    %1584 = vmatprep.subr.bf16.mxu0 0
    %1585 = vmatpush1.bf16.msra.mxu0 0
    %1586 = vmatprep.subr.bf16.mxu0 0
    %1587 = vmatpush1.bf16.msra.mxu0 0
    %1588 = vmatprep.subr.bf16.mxu0 0
    %1589 = vmatpush1.bf16.msra.mxu0 0
    %1590 = vmatprep.subr.bf16.mxu0 0
    %1591 = vmatpush1.bf16.msra.mxu0 0
    %1592 = vmatprep.subr.bf16.mxu0 0
    %1593 = vmatpush1.bf16.msra.mxu0 0
    %1594 = vmatprep.subr.bf16.mxu0 0
    %1595 = vmatpush1.bf16.msra.mxu0 0
    %1596 = vmatprep.subr.bf16.mxu0 0
    %1597 = vmatpush1.bf16.msra.mxu0 0
    %1598 = vmatprep.subr.bf16.mxu0 0
    %1599 = vmatpush1.bf16.msra.mxu0 0
    %1600 = vmatprep.subr.bf16.mxu0 0
    %1601 = vmatpush1.bf16.msra.mxu0 0
    %1602 = vmatprep.mubr.bf16.mxu0 0
    %1603 = vmatmul.mubr.bf16.gmra.mrb[0].mxu0 %v1568
    %v1604 = vpop.f32.mrb[0].mxu0
    %v1605 = vadd.f32 %v1553, %v1604
    %v1606 = vpop.f32.mrb[0].mxu0
    %v1607 = vpop.f32.mrb[0].mxu0
    %v1608 = vadd.f32 %v1553, %v1607
    %v1609 = vpop.f32.mrb[0].mxu0
    %1610 = vdwg.mxu0
    %v1611 = vmul.f32 %v1605, %v1605
    %v1612 = vmul.f32 %v1608, %v1608
    %v1613 = vmul.f32 %v1605, %v1611
    %v1614 = vmul.f32 %v1608, %v1612
    %v1615 = vmul.f32 %v1613, 0.044715
    %v1616 = vmul.f32 %v1614, 0.044715
    %v1617 = vadd.f32 %v1605, %v1615
    %v1618 = vadd.f32 %v1608, %v1616
    %v1619 = vmul.f32 %v1617, 0.7978846
    %v1620 = vmul.f32 %v1618, 0.7978846
    %v1621 = vtanh.pop %v1619
    %v1622 = vtanh.pop %v1620
    %v1623 = vadd.f32 %v1621, 1.0
    %v1624 = vadd.f32 %v1622, 1.0
    %v1625 = vmul.f32 %v1623, 0.5
    %v1626 = vmul.f32 %v1624, 0.5
    %v1627 = vmul.f32 %v1605, %v1625
    %v1628 = vmul.f32 %v1608, %v1626
    %v1629 = vpack.c.bf16 %v1628, %v1627
    %v1630 = vld [vmem:[%s11] sm:$0xf]
    %v1631 = vld [vmem:[%s11 + $0x4] sm:$0xf]
    %v1632 = vld [vmem:[%s11 + $0x8] sm:$0xf]
    %v1633 = vld [vmem:[%s11 + $0xc] sm:$0xf]
    %v1634 = vld [vmem:[%s11 + $0x10] sm:$0xf]
    %v1635 = vld [vmem:[%s11 + $0x14] sm:$0xf]
    %v1636 = vld [vmem:[%s11 + $0x18] sm:$0xf]
    %v1637 = vld [vmem:[%s11 + $0x1c] sm:$0xf]
    %v1638 = vlaneseq
    %v1639 = vshrl.u32 %v1638, 7
    %v1640 = vsub.s32 3, %v1639
    %v1641 = vrot.slane %v295, %v1640
    %v1650 = vunpack.c.l.b16 %v1630
    %v1651 = vunpack.c.l.b16 %v1631
    %v1652 = vunpack.c.l.b16 %v1632
    %v1653 = vunpack.c.l.b16 %v1633
    %v1654 = vunpack.c.l.b16 %v1634
    %v1655 = vunpack.c.l.b16 %v1635
    %v1656 = vunpack.c.l.b16 %v1636
    %v1657 = vunpack.c.l.b16 %v1637
    %v1658 = vpack.c.b16 %v1651, %v1650
    %v1659 = vpack.c.b16 %v1653, %v1652
    %v1660 = vpack.c.b16 %v1655, %v1654
    %v1661 = vpack.c.b16 %v1657, %v1656
    %vm1666 = vcmask 523264
    %v1668 = vsel %vm1666, %v1629, 0
    %1670 = vmatprep.subr.bf16.mxu0 0
    %1671 = vmatpush1.bf16.msra.mxu0 %v1658
    %1672 = vmatprep.subr.bf16.mxu0 0
    %1673 = vmatpush1.bf16.msra.mxu0 %v1659
    %1674 = vmatprep.subr.bf16.mxu0 0
    %1675 = vmatpush1.bf16.msra.mxu0 %v1660
    %1676 = vmatprep.subr.bf16.mxu0 0
    %1677 = vmatpush1.bf16.msra.mxu0 %v1661
    %1678 = vmatprep.subr.bf16.mxu0 0
    %1679 = vmatpush1.bf16.msra.mxu0 0
    %1680 = vmatprep.subr.bf16.mxu0 0
    %1681 = vmatpush1.bf16.msra.mxu0 0
    %1682 = vmatprep.subr.bf16.mxu0 0
    %1683 = vmatpush1.bf16.msra.mxu0 0
    %1684 = vmatprep.subr.bf16.mxu0 0
    %1685 = vmatpush1.bf16.msra.mxu0 0
    %1686 = vmatprep.subr.bf16.mxu0 0
    %1687 = vmatpush1.bf16.msra.mxu0 0
    %1688 = vmatprep.subr.bf16.mxu0 0
    %1689 = vmatpush1.bf16.msra.mxu0 0
    %1690 = vmatprep.subr.bf16.mxu0 0
    %1691 = vmatpush1.bf16.msra.mxu0 0
    %1692 = vmatprep.subr.bf16.mxu0 0
    %1693 = vmatpush1.bf16.msra.mxu0 0
    %1694 = vmatprep.subr.bf16.mxu0 0
    %1695 = vmatpush1.bf16.msra.mxu0 0
    %1696 = vmatprep.subr.bf16.mxu0 0
    %1697 = vmatpush1.bf16.msra.mxu0 0
    %1698 = vmatprep.subr.bf16.mxu0 0
    %1699 = vmatpush1.bf16.msra.mxu0 0
    %1700 = vmatprep.subr.bf16.mxu0 0
    %1701 = vmatpush1.bf16.msra.mxu0 0
    %1702 = vmatprep.mubr.bf16.mxu0 0
    %1703 = vmatmul.mubr.bf16.gmra.mrb[0].mxu0 %v1668
    %v1704 = vpop.f32.mrb[0].mxu0
    %v1705 = vadd.f32 %v1641, %v1704
    %v1706 = vpop.f32.mrb[0].mxu0
    %v1707 = vpop.f32.mrb[0].mxu0
    %v1708 = vadd.f32 %v1641, %v1707
    %v1709 = vpop.f32.mrb[0].mxu0
    %1710 = vdwg.mxu0
    %v1711 = vadd.f32 %v1541, %v1705
    %v1712 = vadd.f32 %v1542, %v1708
    %v1713 = vsel %vm216, %v1711, 0.0
    %1714 = vadd.xlane.f32.xlu0 %v1713
    %v1715 = vpop.xlane.xlu0 %1714
    %v1716 = vsel %vm216, %v1712, 0.0
    %1717 = vadd.xlane.f32.xlu0 %v1716
    %v1718 = vpop.xlane.xlu0 %1717
    %v1719 = vmul.f32 %v1715, %v223
    %v1720 = vmul.f32 %v1718, %v223
    %v1721 = vsub.f32 %v1711, %v1719
    %v1722 = vsub.f32 %v1712, %v1720
    %v1723 = vmul.f32 %v1721, %v1721
    %v1724 = vmul.f32 %v1722, %v1722
    %v1725 = vsel %vm216, %v1723, 0.0
    %1726 = vadd.xlane.f32.xlu0 %v1725
    %v1727 = vpop.xlane.xlu0 %1726
    %v1728 = vsel %vm216, %v1724, 0.0
    %1729 = vadd.xlane.f32.xlu0 %v1728
    %v1730 = vpop.xlane.xlu0 %1729
    %v1731 = vmul.f32 %v1727, %v223
    %v1732 = vmul.f32 %v1730, %v223
    %v1733 = vadd.f32 %v1731, 1e-12
    %v1734 = vadd.f32 %v1732, 1e-12
    %v1735 = vrsqrt.pop %v1733
    %v1736 = vrsqrt.pop %v1734
    %v1737 = vmul.f32 %v1721, %v1735
    %v1738 = vmul.f32 %v1722, %v1736
    %v1739 = vlaneseq
    %v1740 = vshrl.u32 %v1739, 7
    %v1741 = vsub.s32 4, %v1740
    %v1742 = vrot.slane %v295, %v1741
    %v1743 = vmul.f32 %v1737, %v1742
    %v1744 = vmul.f32 %v1738, %v1742
    %v1745 = vlaneseq
    %v1746 = vshrl.u32 %v1745, 7
    %v1747 = vsub.s32 5, %v1746
    %v1748 = vrot.slane %v295, %v1747
    %v1749 = vadd.f32 %v1743, %v1748
    %v1750 = vadd.f32 %v1744, %v1748
    %s1751 = scalar_lea.vmem %s8, 8
    %v1752 = vld [vmem:[%s1751] sm:$0x3f]
    %v1753 = vpack.c.bf16 %v1750, %v1749
    %s1754 = scalar_lea.vmem %s5, 16
    %v1755 = vld [vmem:[%s1754] sm:$0xf]
    %v1756 = vld [vmem:[%s1754 + $0x4] sm:$0xf]
    %v1757 = vld [vmem:[%s1754 + $0x8] sm:$0xf]
    %v1758 = vld [vmem:[%s1754 + $0xc] sm:$0xf]
    %s1759 = scalar_lea.vmem %s6, 1
    %v1760 = vld [vmem:[%s1759] sm:$0x1]
    %v1762 = vlaneseq
    %v1763 = vshrl.u32 %v1762, 7
    %v1764 = vsub.s32 0, %v1763
    %v1765 = vrot.slane %v1760, %v1764
    %v1771 = vunpack.c.l.b16 %v1755
    %v1772 = vunpack.c.l.b16 %v1756
    %v1773 = vunpack.c.l.b16 %v1757
    %v1774 = vunpack.c.l.b16 %v1758
    %v1775 = vpack.c.b16 %v1772, %v1771
    %v1776 = vpack.c.b16 %v1774, %v1773
    %v1780 = vsel %vm216, %v1753, 0
    %1782 = vmatprep.subr.bf16.mxu0 0
    %1783 = vmatpush1.bf16.msra.mxu0 %v1775
    %1784 = vmatprep.subr.bf16.mxu0 0
    %1785 = vmatpush1.bf16.msra.mxu0 %v1776
    %1786 = vmatprep.subr.bf16.mxu0 0
    %1787 = vmatpush1.bf16.msra.mxu0 0
    %1788 = vmatprep.subr.bf16.mxu0 0
    %1789 = vmatpush1.bf16.msra.mxu0 0
    %1790 = vmatprep.subr.bf16.mxu0 0
    %1791 = vmatpush1.bf16.msra.mxu0 0
    %1792 = vmatprep.subr.bf16.mxu0 0
    %1793 = vmatpush1.bf16.msra.mxu0 0
    %1794 = vmatprep.subr.bf16.mxu0 0
    %1795 = vmatpush1.bf16.msra.mxu0 0
    %1796 = vmatprep.subr.bf16.mxu0 0
    %1797 = vmatpush1.bf16.msra.mxu0 0
    %1798 = vmatprep.subr.bf16.mxu0 0
    %1799 = vmatpush1.bf16.msra.mxu0 0
    %1800 = vmatprep.subr.bf16.mxu0 0
    %1801 = vmatpush1.bf16.msra.mxu0 0
    %1802 = vmatprep.subr.bf16.mxu0 0
    %1803 = vmatpush1.bf16.msra.mxu0 0
    %1804 = vmatprep.subr.bf16.mxu0 0
    %1805 = vmatpush1.bf16.msra.mxu0 0
    %1806 = vmatprep.subr.bf16.mxu0 0
    %1807 = vmatpush1.bf16.msra.mxu0 0
    %1808 = vmatprep.subr.bf16.mxu0 0
    %1809 = vmatpush1.bf16.msra.mxu0 0
    %1810 = vmatprep.subr.bf16.mxu0 0
    %1811 = vmatpush1.bf16.msra.mxu0 0
    %1812 = vmatprep.subr.bf16.mxu0 0
    %1813 = vmatpush1.bf16.msra.mxu0 0
    %1814 = vmatprep.mubr.bf16.mxu0 0
    %1815 = vmatmul.mubr.bf16.gmra.mrb[0].mxu0 %v1780
    %v1816 = vpop.f32.mrb[0].mxu0
    %v1817 = vadd.f32 %v1765, %v1816
    %v1818 = vpop.f32.mrb[0].mxu0
    %v1819 = vpop.f32.mrb[0].mxu0
    %v1820 = vadd.f32 %v1765, %v1819
    %v1821 = vpop.f32.mrb[0].mxu0
    %1822 = vdwg.mxu0
    %v1823 = vmul.f32 %v1817, 0.35355338
    %v1824 = vmul.f32 %v1820, 0.35355338
    %1827 = vrot.lane.b32.xlu0 %v1823, 120
    %v1828 = vpop.permute.xlu0 %1827
    %1829 = vrot.lane.b32.xlu0 %v1824, 120
    %v1830 = vpop.permute.xlu0 %1829
    %1833 = vrot.lane.b32.xlu0 %v1823, 112
    %v1834 = vpop.permute.xlu0 %1833
    %1835 = vrot.lane.b32.xlu0 %v1824, 112
    %v1836 = vpop.permute.xlu0 %1835
    %1839 = vrot.lane.b32.xlu0 %v1823, 104
    %v1840 = vpop.permute.xlu0 %1839
    %1841 = vrot.lane.b32.xlu0 %v1824, 104
    %v1842 = vpop.permute.xlu0 %1841
    %v1845 = vpack.c.bf16 %v1823, %v1823
    %v1846 = vpack.c.bf16 %v1824, %v1824
    %v1847 = vpack.c.bf16 %v1828, %v1828
    %v1848 = vpack.c.bf16 %v1830, %v1830
    %v1849 = vpack.c.bf16 %v1834, %v1834
    %v1850 = vpack.c.bf16 %v1836, %v1836
    %v1851 = vpack.c.bf16 %v1840, %v1840
    %v1852 = vpack.c.bf16 %v1842, %v1842
    %1855 = vrot.lane.b32.xlu0 %v1817, 120
    %v1856 = vpop.permute.xlu0 %1855
    %1857 = vrot.lane.b32.xlu0 %v1820, 120
    %v1858 = vpop.permute.xlu0 %1857
    %1861 = vrot.lane.b32.xlu0 %v1817, 112
    %v1862 = vpop.permute.xlu0 %1861
    %1863 = vrot.lane.b32.xlu0 %v1820, 112
    %v1864 = vpop.permute.xlu0 %1863
    %1867 = vrot.lane.b32.xlu0 %v1817, 104
    %v1868 = vpop.permute.xlu0 %1867
    %1869 = vrot.lane.b32.xlu0 %v1820, 104
    %v1870 = vpop.permute.xlu0 %1869
    %v1873 = vpack.c.bf16 %v1817, %v1817
    %v1874 = vpack.c.bf16 %v1820, %v1820
    %v1875 = vpack.c.bf16 %v1856, %v1856
    %v1876 = vpack.c.bf16 %v1858, %v1858
    %v1877 = vpack.c.bf16 %v1862, %v1862
    %v1878 = vpack.c.bf16 %v1864, %v1864
    %v1879 = vpack.c.bf16 %v1868, %v1868
    %v1880 = vpack.c.bf16 %v1870, %v1870
    %1882 = vrot.lane.b32.xlu0 %v1873, 96
    %v1883 = vpop.permute.xlu0 %1882
    %v1885 = vsel %vm425, %v1845, 0
    %v1888 = vsel %vm425, %v1883, 0
    %1890 = vmatprep.subr.bf16.mxu0 0
    %1891 = vmatpush1.bf16.xpose.msra.mxu0 %v1888
    %1892 = vmatprep.subr.bf16.mxu0 0
    %1893 = vmatpush1.bf16.xpose.msra.mxu0 0
    %1894 = vmatprep.subr.bf16.mxu0 0
    %1895 = vmatpush1.bf16.xpose.msra.mxu0 0
    %1896 = vmatprep.subr.bf16.mxu0 0
    %1897 = vmatpush1.bf16.xpose.msra.mxu0 0
    %1898 = vmatprep.subr.bf16.mxu0 0
    %1899 = vmatpush1.bf16.xpose.msra.mxu0 0
    %1900 = vmatprep.subr.bf16.mxu0 0
    %1901 = vmatpush1.bf16.xpose.msra.mxu0 0
    %1902 = vmatprep.subr.bf16.mxu0 0
    %1903 = vmatpush1.bf16.xpose.msra.mxu0 0
    %1904 = vmatprep.subr.bf16.mxu0 0
    %1905 = vmatpush1.bf16.xpose.msra.mxu0 0
    %1906 = vmatprep.subr.bf16.mxu0 0
    %1907 = vmatpush1.bf16.xpose.msra.mxu0 0
    %1908 = vmatprep.subr.bf16.mxu0 0
    %1909 = vmatpush1.bf16.xpose.msra.mxu0 0
    %1910 = vmatprep.subr.bf16.mxu0 0
    %1911 = vmatpush1.bf16.xpose.msra.mxu0 0
    %1912 = vmatprep.subr.bf16.mxu0 0
    %1913 = vmatpush1.bf16.xpose.msra.mxu0 0
    %1914 = vmatprep.subr.bf16.mxu0 0
    %1915 = vmatpush1.bf16.xpose.msra.mxu0 0
    %1916 = vmatprep.subr.bf16.mxu0 0
    %1917 = vmatpush1.bf16.xpose.msra.mxu0 0
    %1918 = vmatprep.subr.bf16.mxu0 0
    %1919 = vmatpush1.bf16.xpose.msra.mxu0 0
    %1920 = vmatprep.subr.bf16.mxu0 0
    %1921 = vmatpush1.bf16.xpose.msra.mxu0 0
    %1922 = vmatprep.mubr.bf16.mxu0 0
    %1923 = vmatmul.mubr.bf16.gmra.mrb[0].mxu0 %v1885
    %v1924 = vpop.f32.mrb[0].mxu0
    %v1925 = vadd.f32 %v288, %v1924
    %v1926 = vpop.f32.mrb[0].mxu0
    %v1927 = vpop.f32.mrb[0].mxu0
    %v1928 = vpop.f32.mrb[0].mxu0
    %1929 = vdwg.mxu0
    %1931 = vrot.lane.b32.xlu0 %v1874, 96
    %v1932 = vpop.permute.xlu0 %1931
    %v1934 = vsel %vm425, %v1846, 0
    %v1937 = vsel %vm425, %v1932, 0
    %1939 = vmatprep.subr.bf16.mxu0 0
    %1940 = vmatpush1.bf16.xpose.msra.mxu0 %v1937
    %1941 = vmatprep.subr.bf16.mxu0 0
    %1942 = vmatpush1.bf16.xpose.msra.mxu0 0
    %1943 = vmatprep.subr.bf16.mxu0 0
    %1944 = vmatpush1.bf16.xpose.msra.mxu0 0
    %1945 = vmatprep.subr.bf16.mxu0 0
    %1946 = vmatpush1.bf16.xpose.msra.mxu0 0
    %1947 = vmatprep.subr.bf16.mxu0 0
    %1948 = vmatpush1.bf16.xpose.msra.mxu0 0
    %1949 = vmatprep.subr.bf16.mxu0 0
    %1950 = vmatpush1.bf16.xpose.msra.mxu0 0
    %1951 = vmatprep.subr.bf16.mxu0 0
    %1952 = vmatpush1.bf16.xpose.msra.mxu0 0
    %1953 = vmatprep.subr.bf16.mxu0 0
    %1954 = vmatpush1.bf16.xpose.msra.mxu0 0
    %1955 = vmatprep.subr.bf16.mxu0 0
    %1956 = vmatpush1.bf16.xpose.msra.mxu0 0
    %1957 = vmatprep.subr.bf16.mxu0 0
    %1958 = vmatpush1.bf16.xpose.msra.mxu0 0
    %1959 = vmatprep.subr.bf16.mxu0 0
    %1960 = vmatpush1.bf16.xpose.msra.mxu0 0
    %1961 = vmatprep.subr.bf16.mxu0 0
    %1962 = vmatpush1.bf16.xpose.msra.mxu0 0
    %1963 = vmatprep.subr.bf16.mxu0 0
    %1964 = vmatpush1.bf16.xpose.msra.mxu0 0
    %1965 = vmatprep.subr.bf16.mxu0 0
    %1966 = vmatpush1.bf16.xpose.msra.mxu0 0
    %1967 = vmatprep.subr.bf16.mxu0 0
    %1968 = vmatpush1.bf16.xpose.msra.mxu0 0
    %1969 = vmatprep.subr.bf16.mxu0 0
    %1970 = vmatpush1.bf16.xpose.msra.mxu0 0
    %1971 = vmatprep.mubr.bf16.mxu0 0
    %1972 = vmatmul.mubr.bf16.gmra.mrb[0].mxu0 %v1934
    %v1973 = vpop.f32.mrb[0].mxu0
    %v1974 = vadd.f32 %v292, %v1973
    %v1975 = vpop.f32.mrb[0].mxu0
    %v1976 = vpop.f32.mrb[0].mxu0
    %v1977 = vpop.f32.mrb[0].mxu0
    %1978 = vdwg.mxu0
    %1980 = vrot.lane.b32.xlu0 %v1875, 96
    %v1981 = vpop.permute.xlu0 %1980
    %v1983 = vsel %vm425, %v1847, 0
    %v1986 = vsel %vm425, %v1981, 0
    %1988 = vmatprep.subr.bf16.mxu0 0
    %1989 = vmatpush1.bf16.xpose.msra.mxu0 %v1986
    %1990 = vmatprep.subr.bf16.mxu0 0
    %1991 = vmatpush1.bf16.xpose.msra.mxu0 0
    %1992 = vmatprep.subr.bf16.mxu0 0
    %1993 = vmatpush1.bf16.xpose.msra.mxu0 0
    %1994 = vmatprep.subr.bf16.mxu0 0
    %1995 = vmatpush1.bf16.xpose.msra.mxu0 0
    %1996 = vmatprep.subr.bf16.mxu0 0
    %1997 = vmatpush1.bf16.xpose.msra.mxu0 0
    %1998 = vmatprep.subr.bf16.mxu0 0
    %1999 = vmatpush1.bf16.xpose.msra.mxu0 0
    %2000 = vmatprep.subr.bf16.mxu0 0
    %2001 = vmatpush1.bf16.xpose.msra.mxu0 0
    %2002 = vmatprep.subr.bf16.mxu0 0
    %2003 = vmatpush1.bf16.xpose.msra.mxu0 0
    %2004 = vmatprep.subr.bf16.mxu0 0
    %2005 = vmatpush1.bf16.xpose.msra.mxu0 0
    %2006 = vmatprep.subr.bf16.mxu0 0
    %2007 = vmatpush1.bf16.xpose.msra.mxu0 0
    %2008 = vmatprep.subr.bf16.mxu0 0
    %2009 = vmatpush1.bf16.xpose.msra.mxu0 0
    %2010 = vmatprep.subr.bf16.mxu0 0
    %2011 = vmatpush1.bf16.xpose.msra.mxu0 0
    %2012 = vmatprep.subr.bf16.mxu0 0
    %2013 = vmatpush1.bf16.xpose.msra.mxu0 0
    %2014 = vmatprep.subr.bf16.mxu0 0
    %2015 = vmatpush1.bf16.xpose.msra.mxu0 0
    %2016 = vmatprep.subr.bf16.mxu0 0
    %2017 = vmatpush1.bf16.xpose.msra.mxu0 0
    %2018 = vmatprep.subr.bf16.mxu0 0
    %2019 = vmatpush1.bf16.xpose.msra.mxu0 0
    %2020 = vmatprep.mubr.bf16.mxu0 0
    %2021 = vmatmul.mubr.bf16.gmra.mrb[0].mxu0 %v1983
    %v2022 = vpop.f32.mrb[0].mxu0
    %v2023 = vadd.f32 %v288, %v2022
    %v2024 = vpop.f32.mrb[0].mxu0
    %v2025 = vpop.f32.mrb[0].mxu0
    %v2026 = vpop.f32.mrb[0].mxu0
    %2027 = vdwg.mxu0
    %2029 = vrot.lane.b32.xlu0 %v1876, 96
    %v2030 = vpop.permute.xlu0 %2029
    %v2032 = vsel %vm425, %v1848, 0
    %v2035 = vsel %vm425, %v2030, 0
    %2037 = vmatprep.subr.bf16.mxu0 0
    %2038 = vmatpush1.bf16.xpose.msra.mxu0 %v2035
    %2039 = vmatprep.subr.bf16.mxu0 0
    %2040 = vmatpush1.bf16.xpose.msra.mxu0 0
    %2041 = vmatprep.subr.bf16.mxu0 0
    %2042 = vmatpush1.bf16.xpose.msra.mxu0 0
    %2043 = vmatprep.subr.bf16.mxu0 0
    %2044 = vmatpush1.bf16.xpose.msra.mxu0 0
    %2045 = vmatprep.subr.bf16.mxu0 0
    %2046 = vmatpush1.bf16.xpose.msra.mxu0 0
    %2047 = vmatprep.subr.bf16.mxu0 0
    %2048 = vmatpush1.bf16.xpose.msra.mxu0 0
    %2049 = vmatprep.subr.bf16.mxu0 0
    %2050 = vmatpush1.bf16.xpose.msra.mxu0 0
    %2051 = vmatprep.subr.bf16.mxu0 0
    %2052 = vmatpush1.bf16.xpose.msra.mxu0 0
    %2053 = vmatprep.subr.bf16.mxu0 0
    %2054 = vmatpush1.bf16.xpose.msra.mxu0 0
    %2055 = vmatprep.subr.bf16.mxu0 0
    %2056 = vmatpush1.bf16.xpose.msra.mxu0 0
    %2057 = vmatprep.subr.bf16.mxu0 0
    %2058 = vmatpush1.bf16.xpose.msra.mxu0 0
    %2059 = vmatprep.subr.bf16.mxu0 0
    %2060 = vmatpush1.bf16.xpose.msra.mxu0 0
    %2061 = vmatprep.subr.bf16.mxu0 0
    %2062 = vmatpush1.bf16.xpose.msra.mxu0 0
    %2063 = vmatprep.subr.bf16.mxu0 0
    %2064 = vmatpush1.bf16.xpose.msra.mxu0 0
    %2065 = vmatprep.subr.bf16.mxu0 0
    %2066 = vmatpush1.bf16.xpose.msra.mxu0 0
    %2067 = vmatprep.subr.bf16.mxu0 0
    %2068 = vmatpush1.bf16.xpose.msra.mxu0 0
    %2069 = vmatprep.mubr.bf16.mxu0 0
    %2070 = vmatmul.mubr.bf16.gmra.mrb[0].mxu0 %v2032
    %v2071 = vpop.f32.mrb[0].mxu0
    %v2072 = vadd.f32 %v292, %v2071
    %v2073 = vpop.f32.mrb[0].mxu0
    %v2074 = vpop.f32.mrb[0].mxu0
    %v2075 = vpop.f32.mrb[0].mxu0
    %2076 = vdwg.mxu0
    %2078 = vrot.lane.b32.xlu0 %v1877, 96
    %v2079 = vpop.permute.xlu0 %2078
    %v2081 = vsel %vm425, %v1849, 0
    %v2084 = vsel %vm425, %v2079, 0
    %2086 = vmatprep.subr.bf16.mxu0 0
    %2087 = vmatpush1.bf16.xpose.msra.mxu0 %v2084
    %2088 = vmatprep.subr.bf16.mxu0 0
    %2089 = vmatpush1.bf16.xpose.msra.mxu0 0
    %2090 = vmatprep.subr.bf16.mxu0 0
    %2091 = vmatpush1.bf16.xpose.msra.mxu0 0
    %2092 = vmatprep.subr.bf16.mxu0 0
    %2093 = vmatpush1.bf16.xpose.msra.mxu0 0
    %2094 = vmatprep.subr.bf16.mxu0 0
    %2095 = vmatpush1.bf16.xpose.msra.mxu0 0
    %2096 = vmatprep.subr.bf16.mxu0 0
    %2097 = vmatpush1.bf16.xpose.msra.mxu0 0
    %2098 = vmatprep.subr.bf16.mxu0 0
    %2099 = vmatpush1.bf16.xpose.msra.mxu0 0
    %2100 = vmatprep.subr.bf16.mxu0 0
    %2101 = vmatpush1.bf16.xpose.msra.mxu0 0
    %2102 = vmatprep.subr.bf16.mxu0 0
    %2103 = vmatpush1.bf16.xpose.msra.mxu0 0
    %2104 = vmatprep.subr.bf16.mxu0 0
    %2105 = vmatpush1.bf16.xpose.msra.mxu0 0
    %2106 = vmatprep.subr.bf16.mxu0 0
    %2107 = vmatpush1.bf16.xpose.msra.mxu0 0
    %2108 = vmatprep.subr.bf16.mxu0 0
    %2109 = vmatpush1.bf16.xpose.msra.mxu0 0
    %2110 = vmatprep.subr.bf16.mxu0 0
    %2111 = vmatpush1.bf16.xpose.msra.mxu0 0
    %2112 = vmatprep.subr.bf16.mxu0 0
    %2113 = vmatpush1.bf16.xpose.msra.mxu0 0
    %2114 = vmatprep.subr.bf16.mxu0 0
    %2115 = vmatpush1.bf16.xpose.msra.mxu0 0
    %2116 = vmatprep.subr.bf16.mxu0 0
    %2117 = vmatpush1.bf16.xpose.msra.mxu0 0
    %2118 = vmatprep.mubr.bf16.mxu0 0
    %2119 = vmatmul.mubr.bf16.gmra.mrb[0].mxu0 %v2081
    %v2120 = vpop.f32.mrb[0].mxu0
    %v2121 = vadd.f32 %v288, %v2120
    %v2122 = vpop.f32.mrb[0].mxu0
    %v2123 = vpop.f32.mrb[0].mxu0
    %v2124 = vpop.f32.mrb[0].mxu0
    %2125 = vdwg.mxu0
    %2127 = vrot.lane.b32.xlu0 %v1878, 96
    %v2128 = vpop.permute.xlu0 %2127
    %v2130 = vsel %vm425, %v1850, 0
    %v2133 = vsel %vm425, %v2128, 0
    %2135 = vmatprep.subr.bf16.mxu0 0
    %2136 = vmatpush1.bf16.xpose.msra.mxu0 %v2133
    %2137 = vmatprep.subr.bf16.mxu0 0
    %2138 = vmatpush1.bf16.xpose.msra.mxu0 0
    %2139 = vmatprep.subr.bf16.mxu0 0
    %2140 = vmatpush1.bf16.xpose.msra.mxu0 0
    %2141 = vmatprep.subr.bf16.mxu0 0
    %2142 = vmatpush1.bf16.xpose.msra.mxu0 0
    %2143 = vmatprep.subr.bf16.mxu0 0
    %2144 = vmatpush1.bf16.xpose.msra.mxu0 0
    %2145 = vmatprep.subr.bf16.mxu0 0
    %2146 = vmatpush1.bf16.xpose.msra.mxu0 0
    %2147 = vmatprep.subr.bf16.mxu0 0
    %2148 = vmatpush1.bf16.xpose.msra.mxu0 0
    %2149 = vmatprep.subr.bf16.mxu0 0
    %2150 = vmatpush1.bf16.xpose.msra.mxu0 0
    %2151 = vmatprep.subr.bf16.mxu0 0
    %2152 = vmatpush1.bf16.xpose.msra.mxu0 0
    %2153 = vmatprep.subr.bf16.mxu0 0
    %2154 = vmatpush1.bf16.xpose.msra.mxu0 0
    %2155 = vmatprep.subr.bf16.mxu0 0
    %2156 = vmatpush1.bf16.xpose.msra.mxu0 0
    %2157 = vmatprep.subr.bf16.mxu0 0
    %2158 = vmatpush1.bf16.xpose.msra.mxu0 0
    %2159 = vmatprep.subr.bf16.mxu0 0
    %2160 = vmatpush1.bf16.xpose.msra.mxu0 0
    %2161 = vmatprep.subr.bf16.mxu0 0
    %2162 = vmatpush1.bf16.xpose.msra.mxu0 0
    %2163 = vmatprep.subr.bf16.mxu0 0
    %2164 = vmatpush1.bf16.xpose.msra.mxu0 0
    %2165 = vmatprep.subr.bf16.mxu0 0
    %2166 = vmatpush1.bf16.xpose.msra.mxu0 0
    %2167 = vmatprep.mubr.bf16.mxu0 0
    %2168 = vmatmul.mubr.bf16.gmra.mrb[0].mxu0 %v2130
    %v2169 = vpop.f32.mrb[0].mxu0
    %v2170 = vadd.f32 %v292, %v2169
    %v2171 = vpop.f32.mrb[0].mxu0
    %v2172 = vpop.f32.mrb[0].mxu0
    %v2173 = vpop.f32.mrb[0].mxu0
    %2174 = vdwg.mxu0
    %2176 = vrot.lane.b32.xlu0 %v1879, 96
    %v2177 = vpop.permute.xlu0 %2176
    %v2179 = vsel %vm425, %v1851, 0
    %v2182 = vsel %vm425, %v2177, 0
    %2184 = vmatprep.subr.bf16.mxu0 0
    %2185 = vmatpush1.bf16.xpose.msra.mxu0 %v2182
    %2186 = vmatprep.subr.bf16.mxu0 0
    %2187 = vmatpush1.bf16.xpose.msra.mxu0 0
    %2188 = vmatprep.subr.bf16.mxu0 0
    %2189 = vmatpush1.bf16.xpose.msra.mxu0 0
    %2190 = vmatprep.subr.bf16.mxu0 0
    %2191 = vmatpush1.bf16.xpose.msra.mxu0 0
    %2192 = vmatprep.subr.bf16.mxu0 0
    %2193 = vmatpush1.bf16.xpose.msra.mxu0 0
    %2194 = vmatprep.subr.bf16.mxu0 0
    %2195 = vmatpush1.bf16.xpose.msra.mxu0 0
    %2196 = vmatprep.subr.bf16.mxu0 0
    %2197 = vmatpush1.bf16.xpose.msra.mxu0 0
    %2198 = vmatprep.subr.bf16.mxu0 0
    %2199 = vmatpush1.bf16.xpose.msra.mxu0 0
    %2200 = vmatprep.subr.bf16.mxu0 0
    %2201 = vmatpush1.bf16.xpose.msra.mxu0 0
    %2202 = vmatprep.subr.bf16.mxu0 0
    %2203 = vmatpush1.bf16.xpose.msra.mxu0 0
    %2204 = vmatprep.subr.bf16.mxu0 0
    %2205 = vmatpush1.bf16.xpose.msra.mxu0 0
    %2206 = vmatprep.subr.bf16.mxu0 0
    %2207 = vmatpush1.bf16.xpose.msra.mxu0 0
    %2208 = vmatprep.subr.bf16.mxu0 0
    %2209 = vmatpush1.bf16.xpose.msra.mxu0 0
    %2210 = vmatprep.subr.bf16.mxu0 0
    %2211 = vmatpush1.bf16.xpose.msra.mxu0 0
    %2212 = vmatprep.subr.bf16.mxu0 0
    %2213 = vmatpush1.bf16.xpose.msra.mxu0 0
    %2214 = vmatprep.subr.bf16.mxu0 0
    %2215 = vmatpush1.bf16.xpose.msra.mxu0 0
    %2216 = vmatprep.mubr.bf16.mxu0 0
    %2217 = vmatmul.mubr.bf16.gmra.mrb[0].mxu0 %v2179
    %v2218 = vpop.f32.mrb[0].mxu0
    %v2219 = vadd.f32 %v288, %v2218
    %v2220 = vpop.f32.mrb[0].mxu0
    %v2221 = vpop.f32.mrb[0].mxu0
    %v2222 = vpop.f32.mrb[0].mxu0
    %2223 = vdwg.mxu0
    %2225 = vrot.lane.b32.xlu0 %v1880, 96
    %v2226 = vpop.permute.xlu0 %2225
    %v2228 = vsel %vm425, %v1852, 0
    %v2231 = vsel %vm425, %v2226, 0
    %2233 = vmatprep.subr.bf16.mxu0 0
    %2234 = vmatpush1.bf16.xpose.msra.mxu0 %v2231
    %2235 = vmatprep.subr.bf16.mxu0 0
    %2236 = vmatpush1.bf16.xpose.msra.mxu0 0
    %2237 = vmatprep.subr.bf16.mxu0 0
    %2238 = vmatpush1.bf16.xpose.msra.mxu0 0
    %2239 = vmatprep.subr.bf16.mxu0 0
    %2240 = vmatpush1.bf16.xpose.msra.mxu0 0
    %2241 = vmatprep.subr.bf16.mxu0 0
    %2242 = vmatpush1.bf16.xpose.msra.mxu0 0
    %2243 = vmatprep.subr.bf16.mxu0 0
    %2244 = vmatpush1.bf16.xpose.msra.mxu0 0
    %2245 = vmatprep.subr.bf16.mxu0 0
    %2246 = vmatpush1.bf16.xpose.msra.mxu0 0
    %2247 = vmatprep.subr.bf16.mxu0 0
    %2248 = vmatpush1.bf16.xpose.msra.mxu0 0
    %2249 = vmatprep.subr.bf16.mxu0 0
    %2250 = vmatpush1.bf16.xpose.msra.mxu0 0
    %2251 = vmatprep.subr.bf16.mxu0 0
    %2252 = vmatpush1.bf16.xpose.msra.mxu0 0
    %2253 = vmatprep.subr.bf16.mxu0 0
    %2254 = vmatpush1.bf16.xpose.msra.mxu0 0
    %2255 = vmatprep.subr.bf16.mxu0 0
    %2256 = vmatpush1.bf16.xpose.msra.mxu0 0
    %2257 = vmatprep.subr.bf16.mxu0 0
    %2258 = vmatpush1.bf16.xpose.msra.mxu0 0
    %2259 = vmatprep.subr.bf16.mxu0 0
    %2260 = vmatpush1.bf16.xpose.msra.mxu0 0
    %2261 = vmatprep.subr.bf16.mxu0 0
    %2262 = vmatpush1.bf16.xpose.msra.mxu0 0
    %2263 = vmatprep.subr.bf16.mxu0 0
    %2264 = vmatpush1.bf16.xpose.msra.mxu0 0
    %2265 = vmatprep.mubr.bf16.mxu0 0
    %2266 = vmatmul.mubr.bf16.gmra.mrb[0].mxu0 %v2228
    %v2267 = vpop.f32.mrb[0].mxu0
    %v2268 = vadd.f32 %v292, %v2267
    %v2269 = vpop.f32.mrb[0].mxu0
    %v2270 = vpop.f32.mrb[0].mxu0
    %v2271 = vpop.f32.mrb[0].mxu0
    %2272 = vdwg.mxu0
    %v2273 = vsel %vm425, %v1925, -inf
    %2274 = vmax.xlane.f32.xlu0 %v2273
    %v2275 = vpop.xlane.xlu0 %2274
    %v2276 = vsel %vm425, %v1974, -inf
    %2277 = vmax.xlane.f32.xlu0 %v2276
    %v2278 = vpop.xlane.xlu0 %2277
    %v2279 = vsel %vm425, %v2023, -inf
    %2280 = vmax.xlane.f32.xlu0 %v2279
    %v2281 = vpop.xlane.xlu0 %2280
    %v2282 = vsel %vm425, %v2072, -inf
    %2283 = vmax.xlane.f32.xlu0 %v2282
    %v2284 = vpop.xlane.xlu0 %2283
    %v2285 = vsel %vm425, %v2121, -inf
    %2286 = vmax.xlane.f32.xlu0 %v2285
    %v2287 = vpop.xlane.xlu0 %2286
    %v2288 = vsel %vm425, %v2170, -inf
    %2289 = vmax.xlane.f32.xlu0 %v2288
    %v2290 = vpop.xlane.xlu0 %2289
    %v2291 = vsel %vm425, %v2219, -inf
    %2292 = vmax.xlane.f32.xlu0 %v2291
    %v2293 = vpop.xlane.xlu0 %2292
    %v2294 = vsel %vm425, %v2268, -inf
    %2295 = vmax.xlane.f32.xlu0 %v2294
    %v2296 = vpop.xlane.xlu0 %2295
    %v2297 = vsub.f32 %v1925, %v2275
    %v2298 = vsub.f32 %v1974, %v2278
    %v2299 = vsub.f32 %v2023, %v2281
    %v2300 = vsub.f32 %v2072, %v2284
    %v2301 = vsub.f32 %v2121, %v2287
    %v2302 = vsub.f32 %v2170, %v2290
    %v2303 = vsub.f32 %v2219, %v2293
    %v2304 = vsub.f32 %v2268, %v2296
    %v2305 = vmul.f32 %v2297, 1.442695
    %v2306 = vpow.pop %v2305
    %v2307 = vmul.f32 %v2298, 1.442695
    %v2308 = vpow.pop %v2307
    %v2309 = vmul.f32 %v2299, 1.442695
    %v2310 = vpow.pop %v2309
    %v2311 = vmul.f32 %v2300, 1.442695
    %v2312 = vpow.pop %v2311
    %v2313 = vmul.f32 %v2301, 1.442695
    %v2314 = vpow.pop %v2313
    %v2315 = vmul.f32 %v2302, 1.442695
    %v2316 = vpow.pop %v2315
    %v2317 = vmul.f32 %v2303, 1.442695
    %v2318 = vpow.pop %v2317
    %v2319 = vmul.f32 %v2304, 1.442695
    %v2320 = vpow.pop %v2319
    %v2321 = vsel %vm425, %v2306, 0.0
    %2322 = vadd.xlane.f32.xlu0 %v2321
    %v2323 = vpop.xlane.xlu0 %2322
    %v2324 = vsel %vm425, %v2308, 0.0
    %2325 = vadd.xlane.f32.xlu0 %v2324
    %v2326 = vpop.xlane.xlu0 %2325
    %v2327 = vsel %vm425, %v2310, 0.0
    %2328 = vadd.xlane.f32.xlu0 %v2327
    %v2329 = vpop.xlane.xlu0 %2328
    %v2330 = vsel %vm425, %v2312, 0.0
    %2331 = vadd.xlane.f32.xlu0 %v2330
    %v2332 = vpop.xlane.xlu0 %2331
    %v2333 = vsel %vm425, %v2314, 0.0
    %2334 = vadd.xlane.f32.xlu0 %v2333
    %v2335 = vpop.xlane.xlu0 %2334
    %v2336 = vsel %vm425, %v2316, 0.0
    %2337 = vadd.xlane.f32.xlu0 %v2336
    %v2338 = vpop.xlane.xlu0 %2337
    %v2339 = vsel %vm425, %v2318, 0.0
    %2340 = vadd.xlane.f32.xlu0 %v2339
    %v2341 = vpop.xlane.xlu0 %2340
    %v2342 = vsel %vm425, %v2320, 0.0
    %2343 = vadd.xlane.f32.xlu0 %v2342
    %v2344 = vpop.xlane.xlu0 %2343
    %v2345 = vrcp.pop %v2323
    %v2346 = vmul.f32 %v2306, %v2345
    %v2347 = vrcp.pop %v2326
    %v2348 = vmul.f32 %v2308, %v2347
    %v2349 = vrcp.pop %v2329
    %v2350 = vmul.f32 %v2310, %v2349
    %v2351 = vrcp.pop %v2332
    %v2352 = vmul.f32 %v2312, %v2351
    %v2353 = vrcp.pop %v2335
    %v2354 = vmul.f32 %v2314, %v2353
    %v2355 = vrcp.pop %v2338
    %v2356 = vmul.f32 %v2316, %v2355
    %v2357 = vrcp.pop %v2341
    %v2358 = vmul.f32 %v2318, %v2357
    %v2359 = vrcp.pop %v2344
    %v2360 = vmul.f32 %v2320, %v2359
    %v2361 = vpack.c.bf16 %v2346, %v2346
    %v2362 = vpack.c.bf16 %v2348, %v2348
    %v2363 = vpack.c.bf16 %v2350, %v2350
    %v2364 = vpack.c.bf16 %v2352, %v2352
    %v2365 = vpack.c.bf16 %v2354, %v2354
    %v2366 = vpack.c.bf16 %v2356, %v2356
    %v2367 = vpack.c.bf16 %v2358, %v2358
    %v2368 = vpack.c.bf16 %v2360, %v2360
    %2369 = vrot.lane.b32.xlu0 %v1873, 64
    %v2370 = vpop.permute.xlu0 %2369
    %v2372 = vsel %vm425, %v2361, 0
    %v2375 = vsel %vm110, %v2370, 0
    %2377 = vmatprep.subr.bf16.mxu0 0
    %2378 = vmatpush1.bf16.msra.mxu0 %v2375
    %2379 = vmatprep.subr.bf16.mxu0 0
    %2380 = vmatpush1.bf16.msra.mxu0 0
    %2381 = vmatprep.subr.bf16.mxu0 0
    %2382 = vmatpush1.bf16.msra.mxu0 0
    %2383 = vmatprep.subr.bf16.mxu0 0
    %2384 = vmatpush1.bf16.msra.mxu0 0
    %2385 = vmatprep.subr.bf16.mxu0 0
    %2386 = vmatpush1.bf16.msra.mxu0 0
    %2387 = vmatprep.subr.bf16.mxu0 0
    %2388 = vmatpush1.bf16.msra.mxu0 0
    %2389 = vmatprep.subr.bf16.mxu0 0
    %2390 = vmatpush1.bf16.msra.mxu0 0
    %2391 = vmatprep.subr.bf16.mxu0 0
    %2392 = vmatpush1.bf16.msra.mxu0 0
    %2393 = vmatprep.subr.bf16.mxu0 0
    %2394 = vmatpush1.bf16.msra.mxu0 0
    %2395 = vmatprep.subr.bf16.mxu0 0
    %2396 = vmatpush1.bf16.msra.mxu0 0
    %2397 = vmatprep.subr.bf16.mxu0 0
    %2398 = vmatpush1.bf16.msra.mxu0 0
    %2399 = vmatprep.subr.bf16.mxu0 0
    %2400 = vmatpush1.bf16.msra.mxu0 0
    %2401 = vmatprep.subr.bf16.mxu0 0
    %2402 = vmatpush1.bf16.msra.mxu0 0
    %2403 = vmatprep.subr.bf16.mxu0 0
    %2404 = vmatpush1.bf16.msra.mxu0 0
    %2405 = vmatprep.subr.bf16.mxu0 0
    %2406 = vmatpush1.bf16.msra.mxu0 0
    %2407 = vmatprep.subr.bf16.mxu0 0
    %2408 = vmatpush1.bf16.msra.mxu0 0
    %2409 = vmatprep.mubr.bf16.mxu0 0
    %2410 = vmatmul.mubr.bf16.gmra.mrb[0].mxu0 %v2372
    %v2411 = vpop.f32.mrb[0].mxu0
    %v2412 = vadd.f32 0.0, %v2411
    %v2413 = vpop.f32.mrb[0].mxu0
    %v2414 = vpop.f32.mrb[0].mxu0
    %v2415 = vpop.f32.mrb[0].mxu0
    %2416 = vdwg.mxu0
    %2417 = vrot.lane.b32.xlu0 %v1874, 64
    %v2418 = vpop.permute.xlu0 %2417
    %v2420 = vsel %vm425, %v2362, 0
    %v2423 = vsel %vm110, %v2418, 0
    %2425 = vmatprep.subr.bf16.mxu0 0
    %2426 = vmatpush1.bf16.msra.mxu0 %v2423
    %2427 = vmatprep.subr.bf16.mxu0 0
    %2428 = vmatpush1.bf16.msra.mxu0 0
    %2429 = vmatprep.subr.bf16.mxu0 0
    %2430 = vmatpush1.bf16.msra.mxu0 0
    %2431 = vmatprep.subr.bf16.mxu0 0
    %2432 = vmatpush1.bf16.msra.mxu0 0
    %2433 = vmatprep.subr.bf16.mxu0 0
    %2434 = vmatpush1.bf16.msra.mxu0 0
    %2435 = vmatprep.subr.bf16.mxu0 0
    %2436 = vmatpush1.bf16.msra.mxu0 0
    %2437 = vmatprep.subr.bf16.mxu0 0
    %2438 = vmatpush1.bf16.msra.mxu0 0
    %2439 = vmatprep.subr.bf16.mxu0 0
    %2440 = vmatpush1.bf16.msra.mxu0 0
    %2441 = vmatprep.subr.bf16.mxu0 0
    %2442 = vmatpush1.bf16.msra.mxu0 0
    %2443 = vmatprep.subr.bf16.mxu0 0
    %2444 = vmatpush1.bf16.msra.mxu0 0
    %2445 = vmatprep.subr.bf16.mxu0 0
    %2446 = vmatpush1.bf16.msra.mxu0 0
    %2447 = vmatprep.subr.bf16.mxu0 0
    %2448 = vmatpush1.bf16.msra.mxu0 0
    %2449 = vmatprep.subr.bf16.mxu0 0
    %2450 = vmatpush1.bf16.msra.mxu0 0
    %2451 = vmatprep.subr.bf16.mxu0 0
    %2452 = vmatpush1.bf16.msra.mxu0 0
    %2453 = vmatprep.subr.bf16.mxu0 0
    %2454 = vmatpush1.bf16.msra.mxu0 0
    %2455 = vmatprep.subr.bf16.mxu0 0
    %2456 = vmatpush1.bf16.msra.mxu0 0
    %2457 = vmatprep.mubr.bf16.mxu0 0
    %2458 = vmatmul.mubr.bf16.gmra.mrb[0].mxu0 %v2420
    %v2459 = vpop.f32.mrb[0].mxu0
    %v2460 = vadd.f32 0.0, %v2459
    %v2461 = vpop.f32.mrb[0].mxu0
    %v2462 = vpop.f32.mrb[0].mxu0
    %v2463 = vpop.f32.mrb[0].mxu0
    %2464 = vdwg.mxu0
    %2465 = vrot.lane.b32.xlu0 %v1875, 64
    %v2466 = vpop.permute.xlu0 %2465
    %v2468 = vsel %vm425, %v2363, 0
    %v2471 = vsel %vm110, %v2466, 0
    %2473 = vmatprep.subr.bf16.mxu0 0
    %2474 = vmatpush1.bf16.msra.mxu0 %v2471
    %2475 = vmatprep.subr.bf16.mxu0 0
    %2476 = vmatpush1.bf16.msra.mxu0 0
    %2477 = vmatprep.subr.bf16.mxu0 0
    %2478 = vmatpush1.bf16.msra.mxu0 0
    %2479 = vmatprep.subr.bf16.mxu0 0
    %2480 = vmatpush1.bf16.msra.mxu0 0
    %2481 = vmatprep.subr.bf16.mxu0 0
    %2482 = vmatpush1.bf16.msra.mxu0 0
    %2483 = vmatprep.subr.bf16.mxu0 0
    %2484 = vmatpush1.bf16.msra.mxu0 0
    %2485 = vmatprep.subr.bf16.mxu0 0
    %2486 = vmatpush1.bf16.msra.mxu0 0
    %2487 = vmatprep.subr.bf16.mxu0 0
    %2488 = vmatpush1.bf16.msra.mxu0 0
    %2489 = vmatprep.subr.bf16.mxu0 0
    %2490 = vmatpush1.bf16.msra.mxu0 0
    %2491 = vmatprep.subr.bf16.mxu0 0
    %2492 = vmatpush1.bf16.msra.mxu0 0
    %2493 = vmatprep.subr.bf16.mxu0 0
    %2494 = vmatpush1.bf16.msra.mxu0 0
    %2495 = vmatprep.subr.bf16.mxu0 0
    %2496 = vmatpush1.bf16.msra.mxu0 0
    %2497 = vmatprep.subr.bf16.mxu0 0
    %2498 = vmatpush1.bf16.msra.mxu0 0
    %2499 = vmatprep.subr.bf16.mxu0 0
    %2500 = vmatpush1.bf16.msra.mxu0 0
    %2501 = vmatprep.subr.bf16.mxu0 0
    %2502 = vmatpush1.bf16.msra.mxu0 0
    %2503 = vmatprep.subr.bf16.mxu0 0
    %2504 = vmatpush1.bf16.msra.mxu0 0
    %2505 = vmatprep.mubr.bf16.mxu0 0
    %2506 = vmatmul.mubr.bf16.gmra.mrb[0].mxu0 %v2468
    %v2507 = vpop.f32.mrb[0].mxu0
    %v2508 = vadd.f32 0.0, %v2507
    %v2509 = vpop.f32.mrb[0].mxu0
    %v2510 = vpop.f32.mrb[0].mxu0
    %v2511 = vpop.f32.mrb[0].mxu0
    %2512 = vdwg.mxu0
    %2513 = vrot.lane.b32.xlu0 %v1876, 64
    %v2514 = vpop.permute.xlu0 %2513
    %v2516 = vsel %vm425, %v2364, 0
    %v2519 = vsel %vm110, %v2514, 0
    %2521 = vmatprep.subr.bf16.mxu0 0
    %2522 = vmatpush1.bf16.msra.mxu0 %v2519
    %2523 = vmatprep.subr.bf16.mxu0 0
    %2524 = vmatpush1.bf16.msra.mxu0 0
    %2525 = vmatprep.subr.bf16.mxu0 0
    %2526 = vmatpush1.bf16.msra.mxu0 0
    %2527 = vmatprep.subr.bf16.mxu0 0
    %2528 = vmatpush1.bf16.msra.mxu0 0
    %2529 = vmatprep.subr.bf16.mxu0 0
    %2530 = vmatpush1.bf16.msra.mxu0 0
    %2531 = vmatprep.subr.bf16.mxu0 0
    %2532 = vmatpush1.bf16.msra.mxu0 0
    %2533 = vmatprep.subr.bf16.mxu0 0
    %2534 = vmatpush1.bf16.msra.mxu0 0
    %2535 = vmatprep.subr.bf16.mxu0 0
    %2536 = vmatpush1.bf16.msra.mxu0 0
    %2537 = vmatprep.subr.bf16.mxu0 0
    %2538 = vmatpush1.bf16.msra.mxu0 0
    %2539 = vmatprep.subr.bf16.mxu0 0
    %2540 = vmatpush1.bf16.msra.mxu0 0
    %2541 = vmatprep.subr.bf16.mxu0 0
    %2542 = vmatpush1.bf16.msra.mxu0 0
    %2543 = vmatprep.subr.bf16.mxu0 0
    %2544 = vmatpush1.bf16.msra.mxu0 0
    %2545 = vmatprep.subr.bf16.mxu0 0
    %2546 = vmatpush1.bf16.msra.mxu0 0
    %2547 = vmatprep.subr.bf16.mxu0 0
    %2548 = vmatpush1.bf16.msra.mxu0 0
    %2549 = vmatprep.subr.bf16.mxu0 0
    %2550 = vmatpush1.bf16.msra.mxu0 0
    %2551 = vmatprep.subr.bf16.mxu0 0
    %2552 = vmatpush1.bf16.msra.mxu0 0
    %2553 = vmatprep.mubr.bf16.mxu0 0
    %2554 = vmatmul.mubr.bf16.gmra.mrb[0].mxu0 %v2516
    %v2555 = vpop.f32.mrb[0].mxu0
    %v2556 = vadd.f32 0.0, %v2555
    %v2557 = vpop.f32.mrb[0].mxu0
    %v2558 = vpop.f32.mrb[0].mxu0
    %v2559 = vpop.f32.mrb[0].mxu0
    %2560 = vdwg.mxu0
    %2561 = vrot.lane.b32.xlu0 %v1877, 64
    %v2562 = vpop.permute.xlu0 %2561
    %v2564 = vsel %vm425, %v2365, 0
    %v2567 = vsel %vm110, %v2562, 0
    %2569 = vmatprep.subr.bf16.mxu0 0
    %2570 = vmatpush1.bf16.msra.mxu0 %v2567
    %2571 = vmatprep.subr.bf16.mxu0 0
    %2572 = vmatpush1.bf16.msra.mxu0 0
    %2573 = vmatprep.subr.bf16.mxu0 0
    %2574 = vmatpush1.bf16.msra.mxu0 0
    %2575 = vmatprep.subr.bf16.mxu0 0
    %2576 = vmatpush1.bf16.msra.mxu0 0
    %2577 = vmatprep.subr.bf16.mxu0 0
    %2578 = vmatpush1.bf16.msra.mxu0 0
    %2579 = vmatprep.subr.bf16.mxu0 0
    %2580 = vmatpush1.bf16.msra.mxu0 0
    %2581 = vmatprep.subr.bf16.mxu0 0
    %2582 = vmatpush1.bf16.msra.mxu0 0
    %2583 = vmatprep.subr.bf16.mxu0 0
    %2584 = vmatpush1.bf16.msra.mxu0 0
    %2585 = vmatprep.subr.bf16.mxu0 0
    %2586 = vmatpush1.bf16.msra.mxu0 0
    %2587 = vmatprep.subr.bf16.mxu0 0
    %2588 = vmatpush1.bf16.msra.mxu0 0
    %2589 = vmatprep.subr.bf16.mxu0 0
    %2590 = vmatpush1.bf16.msra.mxu0 0
    %2591 = vmatprep.subr.bf16.mxu0 0
    %2592 = vmatpush1.bf16.msra.mxu0 0
    %2593 = vmatprep.subr.bf16.mxu0 0
    %2594 = vmatpush1.bf16.msra.mxu0 0
    %2595 = vmatprep.subr.bf16.mxu0 0
    %2596 = vmatpush1.bf16.msra.mxu0 0
    %2597 = vmatprep.subr.bf16.mxu0 0
    %2598 = vmatpush1.bf16.msra.mxu0 0
    %2599 = vmatprep.subr.bf16.mxu0 0
    %2600 = vmatpush1.bf16.msra.mxu0 0
    %2601 = vmatprep.mubr.bf16.mxu0 0
    %2602 = vmatmul.mubr.bf16.gmra.mrb[0].mxu0 %v2564
    %v2603 = vpop.f32.mrb[0].mxu0
    %v2604 = vadd.f32 0.0, %v2603
    %v2605 = vpop.f32.mrb[0].mxu0
    %v2606 = vpop.f32.mrb[0].mxu0
    %v2607 = vpop.f32.mrb[0].mxu0
    %2608 = vdwg.mxu0
    %2609 = vrot.lane.b32.xlu0 %v1878, 64
    %v2610 = vpop.permute.xlu0 %2609
    %v2612 = vsel %vm425, %v2366, 0
    %v2615 = vsel %vm110, %v2610, 0
    %2617 = vmatprep.subr.bf16.mxu0 0
    %2618 = vmatpush1.bf16.msra.mxu0 %v2615
    %2619 = vmatprep.subr.bf16.mxu0 0
    %2620 = vmatpush1.bf16.msra.mxu0 0
    %2621 = vmatprep.subr.bf16.mxu0 0
    %2622 = vmatpush1.bf16.msra.mxu0 0
    %2623 = vmatprep.subr.bf16.mxu0 0
    %2624 = vmatpush1.bf16.msra.mxu0 0
    %2625 = vmatprep.subr.bf16.mxu0 0
    %2626 = vmatpush1.bf16.msra.mxu0 0
    %2627 = vmatprep.subr.bf16.mxu0 0
    %2628 = vmatpush1.bf16.msra.mxu0 0
    %2629 = vmatprep.subr.bf16.mxu0 0
    %2630 = vmatpush1.bf16.msra.mxu0 0
    %2631 = vmatprep.subr.bf16.mxu0 0
    %2632 = vmatpush1.bf16.msra.mxu0 0
    %2633 = vmatprep.subr.bf16.mxu0 0
    %2634 = vmatpush1.bf16.msra.mxu0 0
    %2635 = vmatprep.subr.bf16.mxu0 0
    %2636 = vmatpush1.bf16.msra.mxu0 0
    %2637 = vmatprep.subr.bf16.mxu0 0
    %2638 = vmatpush1.bf16.msra.mxu0 0
    %2639 = vmatprep.subr.bf16.mxu0 0
    %2640 = vmatpush1.bf16.msra.mxu0 0
    %2641 = vmatprep.subr.bf16.mxu0 0
    %2642 = vmatpush1.bf16.msra.mxu0 0
    %2643 = vmatprep.subr.bf16.mxu0 0
    %2644 = vmatpush1.bf16.msra.mxu0 0
    %2645 = vmatprep.subr.bf16.mxu0 0
    %2646 = vmatpush1.bf16.msra.mxu0 0
    %2647 = vmatprep.subr.bf16.mxu0 0
    %2648 = vmatpush1.bf16.msra.mxu0 0
    %2649 = vmatprep.mubr.bf16.mxu0 0
    %2650 = vmatmul.mubr.bf16.gmra.mrb[0].mxu0 %v2612
    %v2651 = vpop.f32.mrb[0].mxu0
    %v2652 = vadd.f32 0.0, %v2651
    %v2653 = vpop.f32.mrb[0].mxu0
    %v2654 = vpop.f32.mrb[0].mxu0
    %v2655 = vpop.f32.mrb[0].mxu0
    %2656 = vdwg.mxu0
    %2657 = vrot.lane.b32.xlu0 %v1879, 64
    %v2658 = vpop.permute.xlu0 %2657
    %v2660 = vsel %vm425, %v2367, 0
    %v2663 = vsel %vm110, %v2658, 0
    %2665 = vmatprep.subr.bf16.mxu0 0
    %2666 = vmatpush1.bf16.msra.mxu0 %v2663
    %2667 = vmatprep.subr.bf16.mxu0 0
    %2668 = vmatpush1.bf16.msra.mxu0 0
    %2669 = vmatprep.subr.bf16.mxu0 0
    %2670 = vmatpush1.bf16.msra.mxu0 0
    %2671 = vmatprep.subr.bf16.mxu0 0
    %2672 = vmatpush1.bf16.msra.mxu0 0
    %2673 = vmatprep.subr.bf16.mxu0 0
    %2674 = vmatpush1.bf16.msra.mxu0 0
    %2675 = vmatprep.subr.bf16.mxu0 0
    %2676 = vmatpush1.bf16.msra.mxu0 0
    %2677 = vmatprep.subr.bf16.mxu0 0
    %2678 = vmatpush1.bf16.msra.mxu0 0
    %2679 = vmatprep.subr.bf16.mxu0 0
    %2680 = vmatpush1.bf16.msra.mxu0 0
    %2681 = vmatprep.subr.bf16.mxu0 0
    %2682 = vmatpush1.bf16.msra.mxu0 0
    %2683 = vmatprep.subr.bf16.mxu0 0
    %2684 = vmatpush1.bf16.msra.mxu0 0
    %2685 = vmatprep.subr.bf16.mxu0 0
    %2686 = vmatpush1.bf16.msra.mxu0 0
    %2687 = vmatprep.subr.bf16.mxu0 0
    %2688 = vmatpush1.bf16.msra.mxu0 0
    %2689 = vmatprep.subr.bf16.mxu0 0
    %2690 = vmatpush1.bf16.msra.mxu0 0
    %2691 = vmatprep.subr.bf16.mxu0 0
    %2692 = vmatpush1.bf16.msra.mxu0 0
    %2693 = vmatprep.subr.bf16.mxu0 0
    %2694 = vmatpush1.bf16.msra.mxu0 0
    %2695 = vmatprep.subr.bf16.mxu0 0
    %2696 = vmatpush1.bf16.msra.mxu0 0
    %2697 = vmatprep.mubr.bf16.mxu0 0
    %2698 = vmatmul.mubr.bf16.gmra.mrb[0].mxu0 %v2660
    %v2699 = vpop.f32.mrb[0].mxu0
    %v2700 = vadd.f32 0.0, %v2699
    %v2701 = vpop.f32.mrb[0].mxu0
    %v2702 = vpop.f32.mrb[0].mxu0
    %v2703 = vpop.f32.mrb[0].mxu0
    %2704 = vdwg.mxu0
    %2705 = vrot.lane.b32.xlu0 %v1880, 64
    %v2706 = vpop.permute.xlu0 %2705
    %v2708 = vsel %vm425, %v2368, 0
    %v2711 = vsel %vm110, %v2706, 0
    %2713 = vmatprep.subr.bf16.mxu0 0
    %2714 = vmatpush1.bf16.msra.mxu0 %v2711
    %2715 = vmatprep.subr.bf16.mxu0 0
    %2716 = vmatpush1.bf16.msra.mxu0 0
    %2717 = vmatprep.subr.bf16.mxu0 0
    %2718 = vmatpush1.bf16.msra.mxu0 0
    %2719 = vmatprep.subr.bf16.mxu0 0
    %2720 = vmatpush1.bf16.msra.mxu0 0
    %2721 = vmatprep.subr.bf16.mxu0 0
    %2722 = vmatpush1.bf16.msra.mxu0 0
    %2723 = vmatprep.subr.bf16.mxu0 0
    %2724 = vmatpush1.bf16.msra.mxu0 0
    %2725 = vmatprep.subr.bf16.mxu0 0
    %2726 = vmatpush1.bf16.msra.mxu0 0
    %2727 = vmatprep.subr.bf16.mxu0 0
    %2728 = vmatpush1.bf16.msra.mxu0 0
    %2729 = vmatprep.subr.bf16.mxu0 0
    %2730 = vmatpush1.bf16.msra.mxu0 0
    %2731 = vmatprep.subr.bf16.mxu0 0
    %2732 = vmatpush1.bf16.msra.mxu0 0
    %2733 = vmatprep.subr.bf16.mxu0 0
    %2734 = vmatpush1.bf16.msra.mxu0 0
    %2735 = vmatprep.subr.bf16.mxu0 0
    %2736 = vmatpush1.bf16.msra.mxu0 0
    %2737 = vmatprep.subr.bf16.mxu0 0
    %2738 = vmatpush1.bf16.msra.mxu0 0
    %2739 = vmatprep.subr.bf16.mxu0 0
    %2740 = vmatpush1.bf16.msra.mxu0 0
    %2741 = vmatprep.subr.bf16.mxu0 0
    %2742 = vmatpush1.bf16.msra.mxu0 0
    %2743 = vmatprep.subr.bf16.mxu0 0
    %2744 = vmatpush1.bf16.msra.mxu0 0
    %2745 = vmatprep.mubr.bf16.mxu0 0
    %2746 = vmatmul.mubr.bf16.gmra.mrb[0].mxu0 %v2708
    %v2747 = vpop.f32.mrb[0].mxu0
    %v2748 = vadd.f32 0.0, %v2747
    %v2749 = vpop.f32.mrb[0].mxu0
    %v2750 = vpop.f32.mrb[0].mxu0
    %v2751 = vpop.f32.mrb[0].mxu0
    %2752 = vdwg.mxu0
    %v2753 = vpack.c.bf16 %v2460, %v2412
    %v2754 = vpack.c.bf16 %v2556, %v2508
    %v2755 = vpack.c.bf16 %v2652, %v2604
    %v2756 = vpack.c.bf16 %v2748, %v2700
    %s2757 = scalar_lea.vmem %s7, 16
    %v2758 = vld [vmem:[%s2757] sm:$0xf]
    %v2759 = vld [vmem:[%s2757 + $0x4] sm:$0xf]
    %v2760 = vld [vmem:[%s2757 + $0x8] sm:$0xf]
    %v2761 = vld [vmem:[%s2757 + $0xc] sm:$0xf]
    %v2763 = vsel %vm425, %v2753, 0
    %v2766 = vsel %vm110, %v2758, 0
    %2768 = vmatprep.subr.bf16.mxu0 0
    %2769 = vmatpush1.bf16.msra.mxu0 %v2766
    %2770 = vmatprep.subr.bf16.mxu0 0
    %2771 = vmatpush1.bf16.msra.mxu0 0
    %2772 = vmatprep.subr.bf16.mxu0 0
    %2773 = vmatpush1.bf16.msra.mxu0 0
    %2774 = vmatprep.subr.bf16.mxu0 0
    %2775 = vmatpush1.bf16.msra.mxu0 0
    %2776 = vmatprep.subr.bf16.mxu0 0
    %2777 = vmatpush1.bf16.msra.mxu0 0
    %2778 = vmatprep.subr.bf16.mxu0 0
    %2779 = vmatpush1.bf16.msra.mxu0 0
    %2780 = vmatprep.subr.bf16.mxu0 0
    %2781 = vmatpush1.bf16.msra.mxu0 0
    %2782 = vmatprep.subr.bf16.mxu0 0
    %2783 = vmatpush1.bf16.msra.mxu0 0
    %2784 = vmatprep.subr.bf16.mxu0 0
    %2785 = vmatpush1.bf16.msra.mxu0 0
    %2786 = vmatprep.subr.bf16.mxu0 0
    %2787 = vmatpush1.bf16.msra.mxu0 0
    %2788 = vmatprep.subr.bf16.mxu0 0
    %2789 = vmatpush1.bf16.msra.mxu0 0
    %2790 = vmatprep.subr.bf16.mxu0 0
    %2791 = vmatpush1.bf16.msra.mxu0 0
    %2792 = vmatprep.subr.bf16.mxu0 0
    %2793 = vmatpush1.bf16.msra.mxu0 0
    %2794 = vmatprep.subr.bf16.mxu0 0
    %2795 = vmatpush1.bf16.msra.mxu0 0
    %2796 = vmatprep.subr.bf16.mxu0 0
    %2797 = vmatpush1.bf16.msra.mxu0 0
    %2798 = vmatprep.subr.bf16.mxu0 0
    %2799 = vmatpush1.bf16.msra.mxu0 0
    %2800 = vmatprep.mubr.bf16.mxu0 0
    %2801 = vmatmul.mubr.bf16.gmra.mrb[0].mxu0 %v2763
    %v2802 = vpop.f32.mrb[0].mxu0
    %v2803 = vadd.f32 0.0, %v2802
    %v2804 = vpop.f32.mrb[0].mxu0
    %v2805 = vpop.f32.mrb[0].mxu0
    %v2806 = vadd.f32 0.0, %v2805
    %v2807 = vpop.f32.mrb[0].mxu0
    %2808 = vdwg.mxu0
    %v2810 = vsel %vm425, %v2754, 0
    %v2813 = vsel %vm110, %v2759, 0
    %2815 = vmatprep.subr.bf16.mxu0 0
    %2816 = vmatpush1.bf16.msra.mxu0 %v2813
    %2817 = vmatprep.subr.bf16.mxu0 0
    %2818 = vmatpush1.bf16.msra.mxu0 0
    %2819 = vmatprep.subr.bf16.mxu0 0
    %2820 = vmatpush1.bf16.msra.mxu0 0
    %2821 = vmatprep.subr.bf16.mxu0 0
    %2822 = vmatpush1.bf16.msra.mxu0 0
    %2823 = vmatprep.subr.bf16.mxu0 0
    %2824 = vmatpush1.bf16.msra.mxu0 0
    %2825 = vmatprep.subr.bf16.mxu0 0
    %2826 = vmatpush1.bf16.msra.mxu0 0
    %2827 = vmatprep.subr.bf16.mxu0 0
    %2828 = vmatpush1.bf16.msra.mxu0 0
    %2829 = vmatprep.subr.bf16.mxu0 0
    %2830 = vmatpush1.bf16.msra.mxu0 0
    %2831 = vmatprep.subr.bf16.mxu0 0
    %2832 = vmatpush1.bf16.msra.mxu0 0
    %2833 = vmatprep.subr.bf16.mxu0 0
    %2834 = vmatpush1.bf16.msra.mxu0 0
    %2835 = vmatprep.subr.bf16.mxu0 0
    %2836 = vmatpush1.bf16.msra.mxu0 0
    %2837 = vmatprep.subr.bf16.mxu0 0
    %2838 = vmatpush1.bf16.msra.mxu0 0
    %2839 = vmatprep.subr.bf16.mxu0 0
    %2840 = vmatpush1.bf16.msra.mxu0 0
    %2841 = vmatprep.subr.bf16.mxu0 0
    %2842 = vmatpush1.bf16.msra.mxu0 0
    %2843 = vmatprep.subr.bf16.mxu0 0
    %2844 = vmatpush1.bf16.msra.mxu0 0
    %2845 = vmatprep.subr.bf16.mxu0 0
    %2846 = vmatpush1.bf16.msra.mxu0 0
    %2847 = vmatprep.mubr.bf16.mxu0 0
    %2848 = vmatmul.mubr.bf16.gmra.mrb[0].mxu0 %v2810
    %v2849 = vpop.f32.mrb[0].mxu0
    %v2850 = vadd.f32 0.0, %v2849
    %v2851 = vpop.f32.mrb[0].mxu0
    %v2852 = vpop.f32.mrb[0].mxu0
    %v2853 = vadd.f32 0.0, %v2852
    %v2854 = vpop.f32.mrb[0].mxu0
    %2855 = vdwg.mxu0
    %v2857 = vsel %vm425, %v2755, 0
    %v2860 = vsel %vm110, %v2760, 0
    %2862 = vmatprep.subr.bf16.mxu0 0
    %2863 = vmatpush1.bf16.msra.mxu0 %v2860
    %2864 = vmatprep.subr.bf16.mxu0 0
    %2865 = vmatpush1.bf16.msra.mxu0 0
    %2866 = vmatprep.subr.bf16.mxu0 0
    %2867 = vmatpush1.bf16.msra.mxu0 0
    %2868 = vmatprep.subr.bf16.mxu0 0
    %2869 = vmatpush1.bf16.msra.mxu0 0
    %2870 = vmatprep.subr.bf16.mxu0 0
    %2871 = vmatpush1.bf16.msra.mxu0 0
    %2872 = vmatprep.subr.bf16.mxu0 0
    %2873 = vmatpush1.bf16.msra.mxu0 0
    %2874 = vmatprep.subr.bf16.mxu0 0
    %2875 = vmatpush1.bf16.msra.mxu0 0
    %2876 = vmatprep.subr.bf16.mxu0 0
    %2877 = vmatpush1.bf16.msra.mxu0 0
    %2878 = vmatprep.subr.bf16.mxu0 0
    %2879 = vmatpush1.bf16.msra.mxu0 0
    %2880 = vmatprep.subr.bf16.mxu0 0
    %2881 = vmatpush1.bf16.msra.mxu0 0
    %2882 = vmatprep.subr.bf16.mxu0 0
    %2883 = vmatpush1.bf16.msra.mxu0 0
    %2884 = vmatprep.subr.bf16.mxu0 0
    %2885 = vmatpush1.bf16.msra.mxu0 0
    %2886 = vmatprep.subr.bf16.mxu0 0
    %2887 = vmatpush1.bf16.msra.mxu0 0
    %2888 = vmatprep.subr.bf16.mxu0 0
    %2889 = vmatpush1.bf16.msra.mxu0 0
    %2890 = vmatprep.subr.bf16.mxu0 0
    %2891 = vmatpush1.bf16.msra.mxu0 0
    %2892 = vmatprep.subr.bf16.mxu0 0
    %2893 = vmatpush1.bf16.msra.mxu0 0
    %2894 = vmatprep.mubr.bf16.mxu0 0
    %2895 = vmatmul.mubr.bf16.gmra.mrb[0].mxu0 %v2857
    %v2896 = vpop.f32.mrb[0].mxu0
    %v2897 = vadd.f32 0.0, %v2896
    %v2898 = vpop.f32.mrb[0].mxu0
    %v2899 = vpop.f32.mrb[0].mxu0
    %v2900 = vadd.f32 0.0, %v2899
    %v2901 = vpop.f32.mrb[0].mxu0
    %2902 = vdwg.mxu0
    %v2904 = vsel %vm425, %v2756, 0
    %v2907 = vsel %vm110, %v2761, 0
    %2909 = vmatprep.subr.bf16.mxu0 0
    %2910 = vmatpush1.bf16.msra.mxu0 %v2907
    %2911 = vmatprep.subr.bf16.mxu0 0
    %2912 = vmatpush1.bf16.msra.mxu0 0
    %2913 = vmatprep.subr.bf16.mxu0 0
    %2914 = vmatpush1.bf16.msra.mxu0 0
    %2915 = vmatprep.subr.bf16.mxu0 0
    %2916 = vmatpush1.bf16.msra.mxu0 0
    %2917 = vmatprep.subr.bf16.mxu0 0
    %2918 = vmatpush1.bf16.msra.mxu0 0
    %2919 = vmatprep.subr.bf16.mxu0 0
    %2920 = vmatpush1.bf16.msra.mxu0 0
    %2921 = vmatprep.subr.bf16.mxu0 0
    %2922 = vmatpush1.bf16.msra.mxu0 0
    %2923 = vmatprep.subr.bf16.mxu0 0
    %2924 = vmatpush1.bf16.msra.mxu0 0
    %2925 = vmatprep.subr.bf16.mxu0 0
    %2926 = vmatpush1.bf16.msra.mxu0 0
    %2927 = vmatprep.subr.bf16.mxu0 0
    %2928 = vmatpush1.bf16.msra.mxu0 0
    %2929 = vmatprep.subr.bf16.mxu0 0
    %2930 = vmatpush1.bf16.msra.mxu0 0
    %2931 = vmatprep.subr.bf16.mxu0 0
    %2932 = vmatpush1.bf16.msra.mxu0 0
    %2933 = vmatprep.subr.bf16.mxu0 0
    %2934 = vmatpush1.bf16.msra.mxu0 0
    %2935 = vmatprep.subr.bf16.mxu0 0
    %2936 = vmatpush1.bf16.msra.mxu0 0
    %2937 = vmatprep.subr.bf16.mxu0 0
    %2938 = vmatpush1.bf16.msra.mxu0 0
    %2939 = vmatprep.subr.bf16.mxu0 0
    %2940 = vmatpush1.bf16.msra.mxu0 0
    %2941 = vmatprep.mubr.bf16.mxu0 0
    %2942 = vmatmul.mubr.bf16.gmra.mrb[0].mxu0 %v2904
    %v2943 = vpop.f32.mrb[0].mxu0
    %v2944 = vadd.f32 0.0, %v2943
    %v2945 = vpop.f32.mrb[0].mxu0
    %v2946 = vpop.f32.mrb[0].mxu0
    %v2947 = vadd.f32 0.0, %v2946
    %v2948 = vpop.f32.mrb[0].mxu0
    %2949 = vdwg.mxu0
    %v2950 = vlaneseq
    %v2951 = vshrl.u32 %v2950, 7
    %v2952 = vsub.s32 0, %v2951
    %v2953 = vrot.slane %v1752, %v2952
    %v2954 = vadd.f32 %v2953, %v2803
    %v2955 = vadd.f32 %v2953, %v2806
    %v2956 = vadd.f32 %v2954, %v2850
    %v2957 = vadd.f32 %v2955, %v2853
    %v2958 = vadd.f32 %v2956, %v2897
    %v2959 = vadd.f32 %v2957, %v2900
    %v2960 = vadd.f32 %v2958, %v2944
    %v2961 = vadd.f32 %v2959, %v2947
    %v2962 = vadd.f32 %v1749, %v2960
    %v2963 = vadd.f32 %v1750, %v2961
    %v2964 = vsel %vm216, %v2962, 0.0
    %2965 = vadd.xlane.f32.xlu0 %v2964
    %v2966 = vpop.xlane.xlu0 %2965
    %v2967 = vsel %vm216, %v2963, 0.0
    %2968 = vadd.xlane.f32.xlu0 %v2967
    %v2969 = vpop.xlane.xlu0 %2968
    %v2970 = vmul.f32 %v2966, %v223
    %v2971 = vmul.f32 %v2969, %v223
    %v2972 = vsub.f32 %v2962, %v2970
    %v2973 = vsub.f32 %v2963, %v2971
    %v2974 = vmul.f32 %v2972, %v2972
    %v2975 = vmul.f32 %v2973, %v2973
    %v2976 = vsel %vm216, %v2974, 0.0
    %2977 = vadd.xlane.f32.xlu0 %v2976
    %v2978 = vpop.xlane.xlu0 %2977
    %v2979 = vsel %vm216, %v2975, 0.0
    %2980 = vadd.xlane.f32.xlu0 %v2979
    %v2981 = vpop.xlane.xlu0 %2980
    %v2982 = vmul.f32 %v2978, %v223
    %v2983 = vmul.f32 %v2981, %v223
    %v2984 = vadd.f32 %v2982, 1e-12
    %v2985 = vadd.f32 %v2983, 1e-12
    %v2986 = vrsqrt.pop %v2984
    %v2987 = vrsqrt.pop %v2985
    %v2988 = vmul.f32 %v2972, %v2986
    %v2989 = vmul.f32 %v2973, %v2987
    %v2990 = vlaneseq
    %v2991 = vshrl.u32 %v2990, 7
    %v2992 = vsub.s32 1, %v2991
    %v2993 = vrot.slane %v1752, %v2992
    %v2994 = vmul.f32 %v2988, %v2993
    %v2995 = vmul.f32 %v2989, %v2993
    %v2996 = vlaneseq
    %v2997 = vshrl.u32 %v2996, 7
    %v2998 = vsub.s32 2, %v2997
    %v2999 = vrot.slane %v1752, %v2998
    %v3000 = vadd.f32 %v2994, %v2999
    %v3001 = vadd.f32 %v2995, %v2999
    %v3002 = vpack.c.bf16 %v3001, %v3000
    %s3003 = scalar_lea.vmem %s9, 16
    %v3004 = vld [vmem:[%s3003] sm:$0xf]
    %v3005 = vld [vmem:[%s3003 + $0x4] sm:$0xf]
    %v3006 = vld [vmem:[%s3003 + $0x8] sm:$0xf]
    %v3007 = vld [vmem:[%s3003 + $0xc] sm:$0xf]
    %s3008 = scalar_lea.vmem %s10, 1
    %v3009 = vld [vmem:[%s3008] sm:$0x1]
    %v3011 = vlaneseq
    %v3012 = vshrl.u32 %v3011, 7
    %v3013 = vsub.s32 0, %v3012
    %v3014 = vrot.slane %v3009, %v3013
    %v3020 = vunpack.c.l.b16 %v3004
    %v3021 = vunpack.c.l.b16 %v3005
    %v3022 = vunpack.c.l.b16 %v3006
    %v3023 = vunpack.c.l.b16 %v3007
    %v3024 = vpack.c.b16 %v3021, %v3020
    %v3025 = vpack.c.b16 %v3023, %v3022
    %v3029 = vsel %vm216, %v3002, 0
    %3031 = vmatprep.subr.bf16.mxu0 0
    %3032 = vmatpush1.bf16.msra.mxu0 %v3024
    %3033 = vmatprep.subr.bf16.mxu0 0
    %3034 = vmatpush1.bf16.msra.mxu0 %v3025
    %3035 = vmatprep.subr.bf16.mxu0 0
    %3036 = vmatpush1.bf16.msra.mxu0 0
    %3037 = vmatprep.subr.bf16.mxu0 0
    %3038 = vmatpush1.bf16.msra.mxu0 0
    %3039 = vmatprep.subr.bf16.mxu0 0
    %3040 = vmatpush1.bf16.msra.mxu0 0
    %3041 = vmatprep.subr.bf16.mxu0 0
    %3042 = vmatpush1.bf16.msra.mxu0 0
    %3043 = vmatprep.subr.bf16.mxu0 0
    %3044 = vmatpush1.bf16.msra.mxu0 0
    %3045 = vmatprep.subr.bf16.mxu0 0
    %3046 = vmatpush1.bf16.msra.mxu0 0
    %3047 = vmatprep.subr.bf16.mxu0 0
    %3048 = vmatpush1.bf16.msra.mxu0 0
    %3049 = vmatprep.subr.bf16.mxu0 0
    %3050 = vmatpush1.bf16.msra.mxu0 0
    %3051 = vmatprep.subr.bf16.mxu0 0
    %3052 = vmatpush1.bf16.msra.mxu0 0
    %3053 = vmatprep.subr.bf16.mxu0 0
    %3054 = vmatpush1.bf16.msra.mxu0 0
    %3055 = vmatprep.subr.bf16.mxu0 0
    %3056 = vmatpush1.bf16.msra.mxu0 0
    %3057 = vmatprep.subr.bf16.mxu0 0
    %3058 = vmatpush1.bf16.msra.mxu0 0
    %3059 = vmatprep.subr.bf16.mxu0 0
    %3060 = vmatpush1.bf16.msra.mxu0 0
    %3061 = vmatprep.subr.bf16.mxu0 0
    %3062 = vmatpush1.bf16.msra.mxu0 0
    %3063 = vmatprep.mubr.bf16.mxu0 0
    %3064 = vmatmul.mubr.bf16.gmra.mrb[0].mxu0 %v3029
    %v3065 = vpop.f32.mrb[0].mxu0
    %v3066 = vadd.f32 %v3014, %v3065
    %v3067 = vpop.f32.mrb[0].mxu0
    %v3068 = vpop.f32.mrb[0].mxu0
    %v3069 = vadd.f32 %v3014, %v3068
    %v3070 = vpop.f32.mrb[0].mxu0
    %3071 = vdwg.mxu0
    %v3072 = vmul.f32 %v3066, %v3066
    %v3073 = vmul.f32 %v3069, %v3069
    %v3074 = vmul.f32 %v3066, %v3072
    %v3075 = vmul.f32 %v3069, %v3073
    %v3076 = vmul.f32 %v3074, 0.044715
    %v3077 = vmul.f32 %v3075, 0.044715
    %v3078 = vadd.f32 %v3066, %v3076
    %v3079 = vadd.f32 %v3069, %v3077
    %v3080 = vmul.f32 %v3078, 0.7978846
    %v3081 = vmul.f32 %v3079, 0.7978846
    %v3082 = vtanh.pop %v3080
    %v3083 = vtanh.pop %v3081
    %v3084 = vadd.f32 %v3082, 1.0
    %v3085 = vadd.f32 %v3083, 1.0
    %v3086 = vmul.f32 %v3084, 0.5
    %v3087 = vmul.f32 %v3085, 0.5
    %v3088 = vmul.f32 %v3066, %v3086
    %v3089 = vmul.f32 %v3069, %v3087
    %v3090 = vpack.c.bf16 %v3089, %v3088
    %s3091 = scalar_lea.vmem %s11, 32
    %v3092 = vld [vmem:[%s3091] sm:$0xf]
    %v3093 = vld [vmem:[%s3091 + $0x4] sm:$0xf]
    %v3094 = vld [vmem:[%s3091 + $0x8] sm:$0xf]
    %v3095 = vld [vmem:[%s3091 + $0xc] sm:$0xf]
    %v3096 = vld [vmem:[%s3091 + $0x10] sm:$0xf]
    %v3097 = vld [vmem:[%s3091 + $0x14] sm:$0xf]
    %v3098 = vld [vmem:[%s3091 + $0x18] sm:$0xf]
    %v3099 = vld [vmem:[%s3091 + $0x1c] sm:$0xf]
    %v3100 = vlaneseq
    %v3101 = vshrl.u32 %v3100, 7
    %v3102 = vsub.s32 3, %v3101
    %v3103 = vrot.slane %v1752, %v3102
    %v3112 = vunpack.c.l.b16 %v3092
    %v3113 = vunpack.c.l.b16 %v3093
    %v3114 = vunpack.c.l.b16 %v3094
    %v3115 = vunpack.c.l.b16 %v3095
    %v3116 = vunpack.c.l.b16 %v3096
    %v3117 = vunpack.c.l.b16 %v3097
    %v3118 = vunpack.c.l.b16 %v3098
    %v3119 = vunpack.c.l.b16 %v3099
    %v3120 = vpack.c.b16 %v3113, %v3112
    %v3121 = vpack.c.b16 %v3115, %v3114
    %v3122 = vpack.c.b16 %v3117, %v3116
    %v3123 = vpack.c.b16 %v3119, %v3118
    %v3129 = vsel %vm1666, %v3090, 0
    %3131 = vmatprep.subr.bf16.mxu0 0
    %3132 = vmatpush1.bf16.msra.mxu0 %v3120
    %3133 = vmatprep.subr.bf16.mxu0 0
    %3134 = vmatpush1.bf16.msra.mxu0 %v3121
    %3135 = vmatprep.subr.bf16.mxu0 0
    %3136 = vmatpush1.bf16.msra.mxu0 %v3122
    %3137 = vmatprep.subr.bf16.mxu0 0
    %3138 = vmatpush1.bf16.msra.mxu0 %v3123
    %3139 = vmatprep.subr.bf16.mxu0 0
    %3140 = vmatpush1.bf16.msra.mxu0 0
    %3141 = vmatprep.subr.bf16.mxu0 0
    %3142 = vmatpush1.bf16.msra.mxu0 0
    %3143 = vmatprep.subr.bf16.mxu0 0
    %3144 = vmatpush1.bf16.msra.mxu0 0
    %3145 = vmatprep.subr.bf16.mxu0 0
    %3146 = vmatpush1.bf16.msra.mxu0 0
    %3147 = vmatprep.subr.bf16.mxu0 0
    %3148 = vmatpush1.bf16.msra.mxu0 0
    %3149 = vmatprep.subr.bf16.mxu0 0
    %3150 = vmatpush1.bf16.msra.mxu0 0
    %3151 = vmatprep.subr.bf16.mxu0 0
    %3152 = vmatpush1.bf16.msra.mxu0 0
    %3153 = vmatprep.subr.bf16.mxu0 0
    %3154 = vmatpush1.bf16.msra.mxu0 0
    %3155 = vmatprep.subr.bf16.mxu0 0
    %3156 = vmatpush1.bf16.msra.mxu0 0
    %3157 = vmatprep.subr.bf16.mxu0 0
    %3158 = vmatpush1.bf16.msra.mxu0 0
    %3159 = vmatprep.subr.bf16.mxu0 0
    %3160 = vmatpush1.bf16.msra.mxu0 0
    %3161 = vmatprep.subr.bf16.mxu0 0
    %3162 = vmatpush1.bf16.msra.mxu0 0
    %3163 = vmatprep.mubr.bf16.mxu0 0
    %3164 = vmatmul.mubr.bf16.gmra.mrb[0].mxu0 %v3129
    %v3165 = vpop.f32.mrb[0].mxu0
    %v3166 = vadd.f32 %v3103, %v3165
    %v3167 = vpop.f32.mrb[0].mxu0
    %v3168 = vpop.f32.mrb[0].mxu0
    %v3169 = vadd.f32 %v3103, %v3168
    %v3170 = vpop.f32.mrb[0].mxu0
    %3171 = vdwg.mxu0
    %v3172 = vadd.f32 %v3000, %v3166
    %v3173 = vadd.f32 %v3001, %v3169
    %v3174 = vsel %vm216, %v3172, 0.0
    %3175 = vadd.xlane.f32.xlu0 %v3174
    %v3176 = vpop.xlane.xlu0 %3175
    %v3177 = vsel %vm216, %v3173, 0.0
    %3178 = vadd.xlane.f32.xlu0 %v3177
    %v3179 = vpop.xlane.xlu0 %3178
    %v3180 = vmul.f32 %v3176, %v223
    %v3181 = vmul.f32 %v3179, %v223
    %v3182 = vsub.f32 %v3172, %v3180
    %v3183 = vsub.f32 %v3173, %v3181
    %v3184 = vmul.f32 %v3182, %v3182
    %v3185 = vmul.f32 %v3183, %v3183
    %v3186 = vsel %vm216, %v3184, 0.0
    %3187 = vadd.xlane.f32.xlu0 %v3186
    %v3188 = vpop.xlane.xlu0 %3187
    %v3189 = vsel %vm216, %v3185, 0.0
    %3190 = vadd.xlane.f32.xlu0 %v3189
    %v3191 = vpop.xlane.xlu0 %3190
    %v3192 = vmul.f32 %v3188, %v223
    %v3193 = vmul.f32 %v3191, %v223
    %v3194 = vadd.f32 %v3192, 1e-12
    %v3195 = vadd.f32 %v3193, 1e-12
    %v3196 = vrsqrt.pop %v3194
    %v3197 = vrsqrt.pop %v3195
    %v3198 = vmul.f32 %v3182, %v3196
    %v3199 = vmul.f32 %v3183, %v3197
    %v3200 = vlaneseq
    %v3201 = vshrl.u32 %v3200, 7
    %v3202 = vsub.s32 4, %v3201
    %v3203 = vrot.slane %v1752, %v3202
    %v3204 = vmul.f32 %v3198, %v3203
    %v3205 = vmul.f32 %v3199, %v3203
    %v3206 = vlaneseq
    %v3207 = vshrl.u32 %v3206, 7
    %v3208 = vsub.s32 5, %v3207
    %v3209 = vrot.slane %v1752, %v3208
    %v3210 = vadd.f32 %v3204, %v3209
    %v3211 = vadd.f32 %v3205, %v3209
    %v3212 = vpack.c.bf16 %v3210, %v3210
    %v3213 = vpack.c.bf16 %v3211, %v3211
    %v3214 = vld [vmem:[%s12] sm:$0xf]
    %v3215 = vld [vmem:[%s12 + $0x4] sm:$0xf]
    %v3216 = vld [vmem:[%s12 + $0x8] sm:$0xf]
    %v3217 = vld [vmem:[%s12 + $0xc] sm:$0xf]
    %v3218 = vlaneseq
    %v3219 = vshrl.u32 %v3218, 7
    %v3220 = vsub.s32 4, %v3219
    %v3221 = vrot.slane %v53, %v3220
    %v3224 = vunpack.c.l.b16 %v3212
    %v3225 = vunpack.c.l.b16 %v3213
    %v3226 = vrot.slane %v3225, 7
    %vm3227 = vcmask 1041409
    %v3228 = vsel %vm3227, %v3226, %v3224
    %v3229 = vpack.c.b16 %v3228, %v3228
    %v3234 = vunpack.c.l.b16 %v3214
    %v3235 = vunpack.c.l.b16 %v3215
    %v3236 = vunpack.c.l.b16 %v3216
    %v3237 = vunpack.c.l.b16 %v3217
    %v3238 = vpack.c.b16 %v3235, %v3234
    %v3239 = vpack.c.b16 %v3237, %v3236
    %v3243 = vsel %vm216, %v3229, 0
    %3245 = vmatprep.subr.bf16.mxu0 0
    %3246 = vmatpush1.bf16.msra.mxu0 %v3238
    %3247 = vmatprep.subr.bf16.mxu0 0
    %3248 = vmatpush1.bf16.msra.mxu0 %v3239
    %3249 = vmatprep.subr.bf16.mxu0 0
    %3250 = vmatpush1.bf16.msra.mxu0 0
    %3251 = vmatprep.subr.bf16.mxu0 0
    %3252 = vmatpush1.bf16.msra.mxu0 0
    %3253 = vmatprep.subr.bf16.mxu0 0
    %3254 = vmatpush1.bf16.msra.mxu0 0
    %3255 = vmatprep.subr.bf16.mxu0 0
    %3256 = vmatpush1.bf16.msra.mxu0 0
    %3257 = vmatprep.subr.bf16.mxu0 0
    %3258 = vmatpush1.bf16.msra.mxu0 0
    %3259 = vmatprep.subr.bf16.mxu0 0
    %3260 = vmatpush1.bf16.msra.mxu0 0
    %3261 = vmatprep.subr.bf16.mxu0 0
    %3262 = vmatpush1.bf16.msra.mxu0 0
    %3263 = vmatprep.subr.bf16.mxu0 0
    %3264 = vmatpush1.bf16.msra.mxu0 0
    %3265 = vmatprep.subr.bf16.mxu0 0
    %3266 = vmatpush1.bf16.msra.mxu0 0
    %3267 = vmatprep.subr.bf16.mxu0 0
    %3268 = vmatpush1.bf16.msra.mxu0 0
    %3269 = vmatprep.subr.bf16.mxu0 0
    %3270 = vmatpush1.bf16.msra.mxu0 0
    %3271 = vmatprep.subr.bf16.mxu0 0
    %3272 = vmatpush1.bf16.msra.mxu0 0
    %3273 = vmatprep.subr.bf16.mxu0 0
    %3274 = vmatpush1.bf16.msra.mxu0 0
    %3275 = vmatprep.subr.bf16.mxu0 0
    %3276 = vmatpush1.bf16.msra.mxu0 0
    %3277 = vmatprep.mubr.bf16.mxu0 0
    %3278 = vmatmul.mubr.bf16.gmra.mrb[0].mxu0 %v3243
    %v3279 = vpop.f32.mrb[0].mxu0
    %v3280 = vadd.f32 %v3221, %v3279
    %v3281 = vpop.f32.mrb[0].mxu0
    %v3282 = vpop.f32.mrb[0].mxu0
    %v3283 = vpop.f32.mrb[0].mxu0
    %3284 = vdwg.mxu0
    %v3285 = vtanh.pop %v3280
    %v3286 = vpack.c.bf16 %v3285, %v3285
    %v3287 = vld [vmem:[%s13] sm:$0xf]
    %v3288 = vld [vmem:[%s13 + $0x4] sm:$0xf]
    %v3289 = vld [vmem:[%s13 + $0x8] sm:$0xf]
    %v3290 = vld [vmem:[%s13 + $0xc] sm:$0xf]
    %v3291 = vld [vmem:[%s14] sm:$0x1]
    %v3293 = vlaneseq
    %v3294 = vshrl.u32 %v3293, 7
    %v3295 = vsub.s32 0, %v3294
    %v3296 = vrot.slane %v3291, %v3295
    %v3302 = vunpack.c.l.b16 %v3287
    %v3303 = vunpack.c.l.b16 %v3288
    %v3304 = vunpack.c.l.b16 %v3289
    %v3305 = vunpack.c.l.b16 %v3290
    %v3306 = vpack.c.b16 %v3303, %v3302
    %v3307 = vpack.c.b16 %v3305, %v3304
    %v3311 = vsel %vm216, %v3286, 0
    %3313 = vmatprep.subr.bf16.mxu0 0
    %3314 = vmatpush1.bf16.msra.mxu0 %v3306
    %3315 = vmatprep.subr.bf16.mxu0 0
    %3316 = vmatpush1.bf16.msra.mxu0 %v3307
    %3317 = vmatprep.subr.bf16.mxu0 0
    %3318 = vmatpush1.bf16.msra.mxu0 0
    %3319 = vmatprep.subr.bf16.mxu0 0
    %3320 = vmatpush1.bf16.msra.mxu0 0
    %3321 = vmatprep.subr.bf16.mxu0 0
    %3322 = vmatpush1.bf16.msra.mxu0 0
    %3323 = vmatprep.subr.bf16.mxu0 0
    %3324 = vmatpush1.bf16.msra.mxu0 0
    %3325 = vmatprep.subr.bf16.mxu0 0
    %3326 = vmatpush1.bf16.msra.mxu0 0
    %3327 = vmatprep.subr.bf16.mxu0 0
    %3328 = vmatpush1.bf16.msra.mxu0 0
    %3329 = vmatprep.subr.bf16.mxu0 0
    %3330 = vmatpush1.bf16.msra.mxu0 0
    %3331 = vmatprep.subr.bf16.mxu0 0
    %3332 = vmatpush1.bf16.msra.mxu0 0
    %3333 = vmatprep.subr.bf16.mxu0 0
    %3334 = vmatpush1.bf16.msra.mxu0 0
    %3335 = vmatprep.subr.bf16.mxu0 0
    %3336 = vmatpush1.bf16.msra.mxu0 0
    %3337 = vmatprep.subr.bf16.mxu0 0
    %3338 = vmatpush1.bf16.msra.mxu0 0
    %3339 = vmatprep.subr.bf16.mxu0 0
    %3340 = vmatpush1.bf16.msra.mxu0 0
    %3341 = vmatprep.subr.bf16.mxu0 0
    %3342 = vmatpush1.bf16.msra.mxu0 0
    %3343 = vmatprep.subr.bf16.mxu0 0
    %3344 = vmatpush1.bf16.msra.mxu0 0
    %3345 = vmatprep.mubr.bf16.mxu0 0
    %3346 = vmatmul.mubr.bf16.gmra.mrb[0].mxu0 %v3311
    %v3347 = vpop.f32.mrb[0].mxu0
    %v3348 = vadd.f32 %v3296, %v3347
    %v3349 = vpop.f32.mrb[0].mxu0
    %v3350 = vpop.f32.mrb[0].mxu0
    %v3351 = vpop.f32.mrb[0].mxu0
    %3352 = vdwg.mxu0
    %3353 = vst [vmem:[#allocation2] sm:$0x3] %v3348
    // Predicated region
    $region62: #{bert_classifier_forward.1} parent=1 // pred_check
      _
    $region63: #{bert_classifier_forward.1} parent=1 // pred_check_branch
      %3355 = sbr.rel (0) target = $region65
    $region64: #{bert_classifier_forward.1} parent=1 // pred_region
      %s3357 = ssub.s32 32, 32
      %3358 = vsyncadd [#allocation3], %s3357
      %s3360 = sshll.u32 [#allocation2], 4
      %s3361 = int_to_ptr.vmem [resolvable:$true] %s3360
      %3363 = dma.vmem_to_hbm [thread:$0]  %s3361, 32, %s15, [#allocation3]
    $region65: #{bert_classifier_forward.1} parent=1 // pred_fallthru
      _
    // Predicated region
    $region66: #{bert_classifier_forward.1} parent=1 // pred_check
      _
    $region67: #{bert_classifier_forward.1} parent=1 // pred_check_branch
      %3365 = sbr.rel (0) target = $region69
    $region68: #{bert_classifier_forward.1} parent=1 // pred_region
      %3366 = dma.done [#allocation3], 32
    $region69: #{bert_classifier_forward.1} parent=1 // pred_fallthru
      _
    %3367 = vsyncpa [#allocation3], 1

</llo_original>
